<compile_context>
chip_gen: v5e
topology: v5e:2x2
jax: 0.10.0
libtpu: 0.0.40
codegen_flags: <defaults>
</compile_context>

<pallas_src>
import math

import jax
import jax.numpy as jnp
import numpy as np
from jax.experimental import pallas as pl
from jax.experimental.pallas import tpu as pltpu

FEAT_IN = 9
N_WAIST = 4
N_LEG = 2
D_IN = FEAT_IN * N_WAIST      # 36
D_OUT = FEAT_IN * N_LEG       # 18
HORIZON = 5
HIDDEN = 64
LEVELS = 4
K = 3
N_OUT = HORIZON * D_OUT       # 90
N_OUT_PAD = 128               # lane-dense output block width

assert HIDDEN >= D_IN, "weight-blob packing assumes hidden width >= input width"


def _round_up(n, m):
    return (n + m - 1) // m * m


def _wblob_layout():
    """Row offsets inside the packed bf16 matmul-weight blob (taps stacked contiguously)."""
    offs = {}
    r = 0
    for lvl in range(LEVELS):
        offs[("w1", lvl)] = r
        r += K * HIDDEN                  # K taps stacked -> one fused (K*H, H) matrix
        offs[("w2", lvl)] = r
        r += HIDDEN
    return offs, r


def _fblob_layout():
    """Row offsets inside the small resident f32 blob (biases + delta head)."""
    offs = {}
    r = 0
    for lvl in range(LEVELS):
        offs[("b1", lvl)] = r
        r += 8
        offs[("b2", lvl)] = r
        r += 8
    offs["wd"] = r
    r += HIDDEN
    offs["bd"] = r
    r += 8
    return offs, r


_W_OFFS, _W_ROWS = _wblob_layout()
_F_OFFS, _F_ROWS = _fblob_layout()


def pack_weights(params):
    """Pack conv/1x1 weights into one bf16 blob; biases + delta head into one f32 blob."""
    wb = jnp.zeros((_W_ROWS, HIDDEN), jnp.float32)
    fb = jnp.zeros((_F_ROWS, HIDDEN), jnp.float32)
    for lvl in range(LEVELS):
        w1, b1, w2, b2 = params["levels"][lvl]     # w1:(K,c_in,H) b1:(H,) w2:(H,H) b2:(H,)
        c_in = w1.shape[1]
        o = _W_OFFS[("w1", lvl)]
        for j in range(K):
            wb = wb.at[o + j * HIDDEN:o + j * HIDDEN + c_in, :].set(w1[j])
        o = _W_OFFS[("w2", lvl)]
        wb = wb.at[o:o + HIDDEN, :].set(w2)
        fb = fb.at[_F_OFFS[("b1", lvl)], :].set(b1)
        fb = fb.at[_F_OFFS[("b2", lvl)], :].set(b2)
    wd, bd = params["delta"]                        # wd:(H, D_OUT) bd:(D_OUT,)
    o = _F_OFFS["wd"]
    fb = fb.at[o:o + HIDDEN, :D_OUT].set(wd)
    fb = fb.at[_F_OFFS["bd"], :D_OUT].set(bd)
    return wb.astype(jnp.bfloat16), fb


def ar_tcn_forward(x, y0, params, *, block_b=64):
    """x: (B, T, D_IN) f32, y0: (B, D_OUT) f32 -> (B, HORIZON, D_OUT) f32."""
    B, T, d_in = x.shape
    assert d_in == D_IN and y0.shape == (B, D_OUT)

    # Geometry of the time/sample slab.
    growth = (K - 1) * ((1 << LEVELS) - 1)          # total length growth = 30
    l_final = T + growth                            # final per-sample length (46 for T=16)
    stride = _round_up(l_final, 16)                 # per-sample stride (48), bf16-tile aligned
    pad_top = _round_up((K - 1) * (1 << (LEVELS - 1)), 16)   # >= max conv padding (16)

    # Batch tile (multiple of 8); keep >= 2 grid steps when possible (v7x has 2 TCs).
    b8 = _round_up(B, 8)
    bblk = min(_round_up(block_b, 8), b8)
    if b8 // bblk < 2 and b8 > 8:
        bblk = _round_up((b8 + 1) // 2, 8)
    Bp = _round_up(B, bblk)

    # Wrapper-side layout plumbing: lane-pad x to the hidden width and cast to bf16 so the
    # in-kernel staging is one aligned full-lane bulk store.
    xp = jnp.pad(x.astype(jnp.float32),
                 ((0, Bp - B), (0, 0), (0, HIDDEN - D_IN))).astype(jnp.bfloat16)
    y0p = jnp.pad(y0.astype(jnp.float32), ((0, Bp - B), (0, 0)))

    wblob, fblob = pack_weights(params)
    R = bblk * stride                               # matmul M dimension per grid step

    def kernel(x_ref, y0_ref, w_ref, f_ref, out_ref, slab_ref):
        # ---- stage the batch tile: zero the top pad rows + one bulk aligned store ----
        slab_ref[0:pad_top, :] = jnp.zeros((pad_top, HIDDEN), jnp.bfloat16)
        gap = jnp.zeros((bblk, stride - T, HIDDEN), jnp.bfloat16)
        x_in = jnp.concatenate([x_ref[...], gap], axis=1)        # (bblk, stride, HIDDEN)
        slab_ref[pad_top:pad_top + R, :] = x_in.reshape(R, HIDDEN)

        row_in_sample = jax.lax.broadcasted_iota(
            jnp.int32, (bblk, stride, HIDDEN), 1).reshape(R, HIDDEN)

        # ---- dilated TCN levels: fused 3-tap (R, 3H) @ (3H, H) bf16 MXU matmuls ----
        l_in = T
        h = None
        for lvl in range(LEVELS):
            dil = 1 << lvl
            pad = (K - 1) * dil
            l_out = l_in + pad
            base = pad_top - pad
            xa = jnp.concatenate(
                [slab_ref[base + j * dil:base + j * dil + R, :] for j in range(K)],
                axis=1)                                          # (R, K*HIDDEN) bf16
            w1o = _W_OFFS[("w1", lvl)]
            h1 = jnp.dot(xa, w_ref[w1o:w1o + K * HIDDEN, :],
                         preferred_element_type=jnp.float32)
            b1o = _F_OFFS[("b1", lvl)]
            h1 = jnp.maximum(h1 + f_ref[b1o:b1o + 1, :], 0.0)

            w2o = _W_OFFS[("w2", lvl)]
            b2o = _F_OFFS[("b2", lvl)]
            h2 = jnp.dot(h1.astype(jnp.bfloat16), w_ref[w2o:w2o + HIDDEN, :],
                         preferred_element_type=jnp.float32)
            h2 = jnp.maximum(h2 + f_ref[b2o:b2o + 1, :], 0.0)

            # Gap / tail rows must stay exact zeros: they are the next level's conv padding.
            h = jnp.where(row_in_sample < l_out, h2, 0.0)        # (R, HIDDEN) f32
            if lvl + 1 < LEVELS:
                slab_ref[pad_top:pad_top + R, :] = h.astype(jnp.bfloat16)
            l_in = l_out

        # ---- AdaptiveAvgPool1d(1): tile-aligned reshape + sublane-axis reduction ----
        pooled = jnp.sum(h.reshape(bblk, stride, HIDDEN), axis=1) * (1.0 / float(l_in))

        # ---- delta head (kept f32) + closed-form rollout y_t = y0 + t*d, lane-dense out ----
        wdo = _F_OFFS["wd"]
        bdo = _F_OFFS["bd"]
        d_full = jnp.dot(pooled, f_ref[wdo:wdo + HIDDEN, :],
                         preferred_element_type=jnp.float32) + f_ref[bdo:bdo + 1, :]
        d = d_full[:, :D_OUT]                                    # (bblk, D_OUT)
        y0v = y0_ref[...]                                        # (bblk, D_OUT) f32
        pieces = [y0v + float(t + 1) * d for t in range(HORIZON)]
        pieces.append(jnp.zeros((bblk, N_OUT_PAD - N_OUT), jnp.float32))
        out_ref[...] = jnp.concatenate(pieces, axis=1).astype(out_ref.dtype)

    grid_spec = pltpu.PrefetchScalarGridSpec(
        num_scalar_prefetch=0,
        grid=(Bp // bblk,),
        in_specs=[
            pl.BlockSpec((bblk, T, HIDDEN), lambda i: (i, 0, 0)),
            pl.BlockSpec((bblk, D_OUT), lambda i: (i, 0)),
            pl.BlockSpec(wblob.shape, lambda i: (0, 0)),   # resident bf16 matmul weights
            pl.BlockSpec(fblob.shape, lambda i: (0, 0)),   # resident f32 biases + head
        ],
        out_specs=pl.BlockSpec((bblk, N_OUT_PAD), lambda i: (i, 0)),
        scratch_shapes=[pltpu.VMEM((pad_top + R, HIDDEN), jnp.bfloat16)],
    )

    out_flat = pl.pallas_call(
        kernel,
        out_shape=jax.ShapeDtypeStruct((Bp, N_OUT_PAD), jnp.float32),
        grid_spec=grid_spec,
        compiler_params=pltpu.CompilerParams(dimension_semantics=("parallel",)),
    )(xp, y0p, wblob, fblob)

    return out_flat[:B, :N_OUT].reshape(B, HORIZON, D_OUT)


def init_params(key):
    """PyTorch-style uniform init, repacked into kernel-friendly natural layouts."""
    params = {"levels": []}
    ch = D_IN
    for _ in range(LEVELS):
        key, k1, k2, k3, k4 = jax.random.split(key, 5)
        bound1 = 1.0 / math.sqrt(ch * K)
        w1 = jax.random.uniform(k1, (HIDDEN, ch, K), jnp.float32, -bound1, bound1)
        b1 = jax.random.uniform(k2, (HIDDEN,), jnp.float32, -bound1, bound1)
        bound2 = 1.0 / math.sqrt(HIDDEN * 1)
        w2 = jax.random.uniform(k3, (HIDDEN, HIDDEN, 1), jnp.float32, -bound2, bound2)
        b2 = jax.random.uniform(k4, (HIDDEN,), jnp.float32, -bound2, bound2)
        params["levels"].append((
            jnp.transpose(w1, (2, 1, 0)),            # (K, c_in, HIDDEN)
            b1,                                      # (HIDDEN,)
            jnp.transpose(w2[:, :, 0], (1, 0)),      # (HIDDEN, HIDDEN)
            b2,                                      # (HIDDEN,)
        ))
        ch = HIDDEN

    key, k5, k6 = jax.random.split(key, 3)
    bound3 = 1.0 / math.sqrt(HIDDEN)
    wd = jax.random.uniform(k5, (D_OUT, HIDDEN), jnp.float32, -bound3, bound3)
    bd = jax.random.uniform(k6, (D_OUT,), jnp.float32, -bound3, bound3)
    params["delta"] = (jnp.transpose(wd, (1, 0)), bd)   # (HIDDEN, D_OUT), (D_OUT,)
    return params


def reference_forward(x, y0, params, *, compute_dtype=jnp.float32):
    """Pure-JAX reference.  With compute_dtype=bfloat16 it mirrors the kernel's precision
    policy (bf16 matmul operands, f32 accumulation / biases / pooling / delta head)."""
    def q(a):
        return a.astype(compute_dtype).astype(jnp.float32)

    h = x.astype(jnp.float32)
    B = x.shape[0]
    for lvl in range(LEVELS):
        w1, b1, w2, b2 = params["levels"][lvl]
        dil = 2 ** lvl
        pad = (K - 1) * dil
        l_out = h.shape[1] + pad
        hp = jnp.pad(q(h), ((0, 0), (pad, pad), (0, 0)))
        acc = jnp.zeros((B, l_out, HIDDEN), jnp.float32) + b1
        for j in range(K):
            acc = acc + jnp.einsum("btc,ch->bth",
                                   hp[:, j * dil: j * dil + l_out, :], q(w1[j]),
                                   preferred_element_type=jnp.float32)
        h1 = jnp.maximum(acc, 0.0)
        h = jnp.maximum(jnp.einsum("bth,hg->btg", q(h1), q(w2),
                                   preferred_element_type=jnp.float32) + b2, 0.0)
    pooled = jnp.mean(h, axis=1)
    d = pooled @ params["delta"][0] + params["delta"][1]
    steps = jnp.arange(1, HORIZON + 1, dtype=jnp.float32)[None, :, None]
    return y0[:, None, :] + steps * d[:, None, :]


if __name__ == "__main__":
    B, T = 2, 16
    key = jax.random.PRNGKey(0)
    key, kx, ky = jax.random.split(key, 3)
    x = jax.random.normal(kx, (B, T, D_IN), jnp.float32)
    y0 = jax.random.normal(ky, (B, D_OUT), jnp.float32)
    params = init_params(key)

    out = jax.block_until_ready(ar_tcn_forward(x, y0, params))
    assert out.shape == (B, HORIZON, D_OUT), out.shape

    # Tight check against a reference that mirrors the kernel's bf16 matmul policy.
    ref_bf16 = jax.block_until_ready(
        reference_forward(x, y0, params, compute_dtype=jnp.bfloat16))
    np.testing.assert_allclose(np.asarray(out), np.asarray(ref_bf16), rtol=5e-3, atol=5e-3)

    # Loose sanity check against the full-f32 reference (bf16 quantisation noise only).
    ref_f32 = jax.block_until_ready(reference_forward(x, y0, params))
    np.testing.assert_allclose(np.asarray(out), np.asarray(ref_f32), rtol=2e-1, atol=2e-1)

    print("KERNEL_OK")
</pallas_src>

<mosaic_0001>
module attributes {stable_mosaic.version = 11 : i64} {
  func.func @kernel(%arg0: i32, %arg1: memref<8x16x64xbf16, #tpu.memory_space<vmem>>, %arg2: memref<8x18xf32, #tpu.memory_space<vmem>>, %arg3: memref<1024x64xbf16, #tpu.memory_space<vmem>>, %arg4: memref<136x64xf32, #tpu.memory_space<vmem>>, %arg5: memref<8x128xf32, #tpu.memory_space<vmem>>, %arg6: memref<400x64xbf16, #tpu.memory_space<vmem>>) attributes {dimension_semantics = [#tpu.dimension_semantics<parallel>], iteration_bounds = array<i64: 1>, scalar_prefetch = 0 : i64, scratch_operands = 1 : i64, tpu.core_type = #tpu.core_type<tc>, window_params = [{transform_indices = @transform_0, window_bounds = array<i64: 8, 16, 64>}, {transform_indices = @transform_1, window_bounds = array<i64: 8, 18>}, {pipeline_mode = #tpu.pipeline_mode<synchronous>, transform_indices = @transform_2, window_bounds = array<i64: 1024, 64>}, {pipeline_mode = #tpu.pipeline_mode<synchronous>, transform_indices = @transform_3, window_bounds = array<i64: 136, 64>}, {transform_indices = @transform_4, window_bounds = array<i64: 8, 128>}]} {
    %cst = arith.constant 0.000000e+00 : bf16
    %0 = vector.broadcast %cst : bf16 to vector<16x64xbf16>
    %c0 = arith.constant 0 : index
    %c0_0 = arith.constant 0 : index
    %1 = vector.load %arg6[%c0, %c0_0] : memref<400x64xbf16, #tpu.memory_space<vmem>>, vector<16x64xbf16>
    tpu.vector_store %arg6[%c0, %c0_0], %0 {strides = array<i32>} : memref<400x64xbf16, #tpu.memory_space<vmem>>, vector<16x64xbf16>,
    %cst_1 = arith.constant 0.000000e+00 : bf16
    %2 = vector.broadcast %cst_1 : bf16 to vector<8x32x64xbf16>
    %c0_2 = arith.constant 0 : index
    %c0_3 = arith.constant 0 : index
    %c0_4 = arith.constant 0 : index
    %3 = vector.load %arg1[%c0_2, %c0_3, %c0_4] : memref<8x16x64xbf16, #tpu.memory_space<vmem>>, vector<8x16x64xbf16>
    %4 = tpu.concatenate %3, %2 in 1 : vector<8x16x64xbf16>, vector<8x32x64xbf16> -> vector<8x48x64xbf16>
    %5 = vector.shape_cast %4 : vector<8x48x64xbf16> to vector<384x64xbf16>
    %c16 = arith.constant 16 : index
    %c0_5 = arith.constant 0 : index
    %6 = vector.load %arg6[%c16, %c0_5] : memref<400x64xbf16, #tpu.memory_space<vmem>>, vector<384x64xbf16>
    tpu.vector_store %arg6[%c16, %c0_5], %5 {strides = array<i32>} : memref<400x64xbf16, #tpu.memory_space<vmem>>, vector<384x64xbf16>,
    %7 = tpu.iota {dimensions = array<i32: 1>} : vector<8x48x64xi32>
    %8 = vector.shape_cast %7 : vector<8x48x64xi32> to vector<384x64xi32>
    %c14 = arith.constant 14 : index
    %c0_6 = arith.constant 0 : index
    %9 = vector.load %arg6[%c14, %c0_6] : memref<400x64xbf16, #tpu.memory_space<vmem>>, vector<384x64xbf16>
    %c15 = arith.constant 15 : index
    %c0_7 = arith.constant 0 : index
    %10 = vector.load %arg6[%c15, %c0_7] : memref<400x64xbf16, #tpu.memory_space<vmem>>, vector<384x64xbf16>
    %c16_8 = arith.constant 16 : index
    %c0_9 = arith.constant 0 : index
    %11 = vector.load %arg6[%c16_8, %c0_9] : memref<400x64xbf16, #tpu.memory_space<vmem>>, vector<384x64xbf16>
    %12 = tpu.concatenate %9, %10, %11 in 1 : vector<384x64xbf16>, vector<384x64xbf16>, vector<384x64xbf16> -> vector<384x192xbf16>
    %c0_10 = arith.constant 0 : index
    %c0_11 = arith.constant 0 : index
    %13 = vector.load %arg3[%c0_10, %c0_11] : memref<1024x64xbf16, #tpu.memory_space<vmem>>, vector<192x64xbf16>
    %cst_12 = arith.constant dense<0.000000e+00> : vector<384x64xf32>
    %14 = tpu.matmul %12, %13, %cst_12 {dimension_numbers = #tpu.dot_dimension_numbers<[1], [0], [0], [1], [0, 0, 1, 1], [], []>} : vector<384x192xbf16>, vector<192x64xbf16>, vector<384x64xf32> -> vector<384x64xf32>
    %c0_13 = arith.constant 0 : index
    %c0_14 = arith.constant 0 : index
    %15 = vector.load %arg4[%c0_13, %c0_14] : memref<136x64xf32, #tpu.memory_space<vmem>>, vector<1x64xf32>
    %16 = vector.broadcast %15 : vector<1x64xf32> to vector<384x64xf32>
    %17 = arith.addf %14, %16 : vector<384x64xf32>
    %cst_15 = arith.constant 0.000000e+00 : f32
    %18 = vector.broadcast %cst_15 : f32 to vector<384x64xf32>
    %19 = arith.maximumf %17, %18 : vector<384x64xf32>
    %20 = arith.truncf %19 : vector<384x64xf32> to vector<384x64xbf16>
    %c192 = arith.constant 192 : index
    %c0_16 = arith.constant 0 : index
    %21 = vector.load %arg3[%c192, %c0_16] : memref<1024x64xbf16, #tpu.memory_space<vmem>>, vector<64x64xbf16>
    %cst_17 = arith.constant dense<0.000000e+00> : vector<384x64xf32>
    %22 = tpu.matmul %20, %21, %cst_17 {dimension_numbers = #tpu.dot_dimension_numbers<[1], [0], [0], [1], [0, 0, 1, 1], [], []>} : vector<384x64xbf16>, vector<64x64xbf16>, vector<384x64xf32> -> vector<384x64xf32>
    %c8 = arith.constant 8 : index
    %c0_18 = arith.constant 0 : index
    %23 = vector.load %arg4[%c8, %c0_18] : memref<136x64xf32, #tpu.memory_space<vmem>>, vector<1x64xf32>
    %24 = vector.broadcast %23 : vector<1x64xf32> to vector<384x64xf32>
    %25 = arith.addf %22, %24 : vector<384x64xf32>
    %cst_19 = arith.constant 0.000000e+00 : f32
    %26 = vector.broadcast %cst_19 : f32 to vector<384x64xf32>
    %27 = arith.maximumf %25, %26 : vector<384x64xf32>
    %c18_i32 = arith.constant 18 : i32
    %28 = vector.broadcast %c18_i32 : i32 to vector<384x64xi32>
    %29 = arith.cmpi slt, %8, %28 : vector<384x64xi32>
    %cst_20 = arith.constant 0.000000e+00 : f32
    %30 = vector.broadcast %cst_20 : f32 to vector<384x64xf32>
    %31 = arith.select %29, %27, %30 : vector<384x64xi1>, vector<384x64xf32>
    %32 = arith.truncf %31 : vector<384x64xf32> to vector<384x64xbf16>
    %c16_21 = arith.constant 16 : index
    %c0_22 = arith.constant 0 : index
    %33 = vector.load %arg6[%c16_21, %c0_22] : memref<400x64xbf16, #tpu.memory_space<vmem>>, vector<384x64xbf16>
    tpu.vector_store %arg6[%c16_21, %c0_22], %32 {strides = array<i32>} : memref<400x64xbf16, #tpu.memory_space<vmem>>, vector<384x64xbf16>,
    %c12 = arith.constant 12 : index
    %c0_23 = arith.constant 0 : index
    %34 = vector.load %arg6[%c12, %c0_23] : memref<400x64xbf16, #tpu.memory_space<vmem>>, vector<384x64xbf16>
    %c14_24 = arith.constant 14 : index
    %c0_25 = arith.constant 0 : index
    %35 = vector.load %arg6[%c14_24, %c0_25] : memref<400x64xbf16, #tpu.memory_space<vmem>>, vector<384x64xbf16>
    %c16_26 = arith.constant 16 : index
    %c0_27 = arith.constant 0 : index
    %36 = vector.load %arg6[%c16_26, %c0_27] : memref<400x64xbf16, #tpu.memory_space<vmem>>, vector<384x64xbf16>
    %37 = tpu.concatenate %34, %35, %36 in 1 : vector<384x64xbf16>, vector<384x64xbf16>, vector<384x64xbf16> -> vector<384x192xbf16>
    %c256 = arith.constant 256 : index
    %c0_28 = arith.constant 0 : index
    %38 = vector.load %arg3[%c256, %c0_28] : memref<1024x64xbf16, #tpu.memory_space<vmem>>, vector<192x64xbf16>
    %cst_29 = arith.constant dense<0.000000e+00> : vector<384x64xf32>
    %39 = tpu.matmul %37, %38, %cst_29 {dimension_numbers = #tpu.dot_dimension_numbers<[1], [0], [0], [1], [0, 0, 1, 1], [], []>} : vector<384x192xbf16>, vector<192x64xbf16>, vector<384x64xf32> -> vector<384x64xf32>
    %c16_30 = arith.constant 16 : index
    %c0_31 = arith.constant 0 : index
    %40 = vector.load %arg4[%c16_30, %c0_31] : memref<136x64xf32, #tpu.memory_space<vmem>>, vector<1x64xf32>
    %41 = vector.broadcast %40 : vector<1x64xf32> to vector<384x64xf32>
    %42 = arith.addf %39, %41 : vector<384x64xf32>
    %cst_32 = arith.constant 0.000000e+00 : f32
    %43 = vector.broadcast %cst_32 : f32 to vector<384x64xf32>
    %44 = arith.maximumf %42, %43 : vector<384x64xf32>
    %45 = arith.truncf %44 : vector<384x64xf32> to vector<384x64xbf16>
    %c448 = arith.constant 448 : index
    %c0_33 = arith.constant 0 : index
    %46 = vector.load %arg3[%c448, %c0_33] : memref<1024x64xbf16, #tpu.memory_space<vmem>>, vector<64x64xbf16>
    %cst_34 = arith.constant dense<0.000000e+00> : vector<384x64xf32>
    %47 = tpu.matmul %45, %46, %cst_34 {dimension_numbers = #tpu.dot_dimension_numbers<[1], [0], [0], [1], [0, 0, 1, 1], [], []>} : vector<384x64xbf16>, vector<64x64xbf16>, vector<384x64xf32> -> vector<384x64xf32>
    %c24 = arith.constant 24 : index
    %c0_35 = arith.constant 0 : index
    %48 = vector.load %arg4[%c24, %c0_35] : memref<136x64xf32, #tpu.memory_space<vmem>>, vector<1x64xf32>
    %49 = vector.broadcast %48 : vector<1x64xf32> to vector<384x64xf32>
    %50 = arith.addf %47, %49 : vector<384x64xf32>
    %cst_36 = arith.constant 0.000000e+00 : f32
    %51 = vector.broadcast %cst_36 : f32 to vector<384x64xf32>
    %52 = arith.maximumf %50, %51 : vector<384x64xf32>
    %c22_i32 = arith.constant 22 : i32
    %53 = vector.broadcast %c22_i32 : i32 to vector<384x64xi32>
    %54 = arith.cmpi slt, %8, %53 : vector<384x64xi32>
    %cst_37 = arith.constant 0.000000e+00 : f32
    %55 = vector.broadcast %cst_37 : f32 to vector<384x64xf32>
    %56 = arith.select %54, %52, %55 : vector<384x64xi1>, vector<384x64xf32>
    %57 = arith.truncf %56 : vector<384x64xf32> to vector<384x64xbf16>
    %c16_38 = arith.constant 16 : index
    %c0_39 = arith.constant 0 : index
    %58 = vector.load %arg6[%c16_38, %c0_39] : memref<400x64xbf16, #tpu.memory_space<vmem>>, vector<384x64xbf16>
    tpu.vector_store %arg6[%c16_38, %c0_39], %57 {strides = array<i32>} : memref<400x64xbf16, #tpu.memory_space<vmem>>, vector<384x64xbf16>,
    %c8_40 = arith.constant 8 : index
    %c0_41 = arith.constant 0 : index
    %59 = vector.load %arg6[%c8_40, %c0_41] : memref<400x64xbf16, #tpu.memory_space<vmem>>, vector<384x64xbf16>
    %c12_42 = arith.constant 12 : index
    %c0_43 = arith.constant 0 : index
    %60 = vector.load %arg6[%c12_42, %c0_43] : memref<400x64xbf16, #tpu.memory_space<vmem>>, vector<384x64xbf16>
    %c16_44 = arith.constant 16 : index
    %c0_45 = arith.constant 0 : index
    %61 = vector.load %arg6[%c16_44, %c0_45] : memref<400x64xbf16, #tpu.memory_space<vmem>>, vector<384x64xbf16>
    %62 = tpu.concatenate %59, %60, %61 in 1 : vector<384x64xbf16>, vector<384x64xbf16>, vector<384x64xbf16> -> vector<384x192xbf16>
    %c512 = arith.constant 512 : index
    %c0_46 = arith.constant 0 : index
    %63 = vector.load %arg3[%c512, %c0_46] : memref<1024x64xbf16, #tpu.memory_space<vmem>>, vector<192x64xbf16>
    %cst_47 = arith.constant dense<0.000000e+00> : vector<384x64xf32>
    %64 = tpu.matmul %62, %63, %cst_47 {dimension_numbers = #tpu.dot_dimension_numbers<[1], [0], [0], [1], [0, 0, 1, 1], [], []>} : vector<384x192xbf16>, vector<192x64xbf16>, vector<384x64xf32> -> vector<384x64xf32>
    %c32 = arith.constant 32 : index
    %c0_48 = arith.constant 0 : index
    %65 = vector.load %arg4[%c32, %c0_48] : memref<136x64xf32, #tpu.memory_space<vmem>>, vector<1x64xf32>
    %66 = vector.broadcast %65 : vector<1x64xf32> to vector<384x64xf32>
    %67 = arith.addf %64, %66 : vector<384x64xf32>
    %cst_49 = arith.constant 0.000000e+00 : f32
    %68 = vector.broadcast %cst_49 : f32 to vector<384x64xf32>
    %69 = arith.maximumf %67, %68 : vector<384x64xf32>
    %70 = arith.truncf %69 : vector<384x64xf32> to vector<384x64xbf16>
    %c704 = arith.constant 704 : index
    %c0_50 = arith.constant 0 : index
    %71 = vector.load %arg3[%c704, %c0_50] : memref<1024x64xbf16, #tpu.memory_space<vmem>>, vector<64x64xbf16>
    %cst_51 = arith.constant dense<0.000000e+00> : vector<384x64xf32>
    %72 = tpu.matmul %70, %71, %cst_51 {dimension_numbers = #tpu.dot_dimension_numbers<[1], [0], [0], [1], [0, 0, 1, 1], [], []>} : vector<384x64xbf16>, vector<64x64xbf16>, vector<384x64xf32> -> vector<384x64xf32>
    %c40 = arith.constant 40 : index
    %c0_52 = arith.constant 0 : index
    %73 = vector.load %arg4[%c40, %c0_52] : memref<136x64xf32, #tpu.memory_space<vmem>>, vector<1x64xf32>
    %74 = vector.broadcast %73 : vector<1x64xf32> to vector<384x64xf32>
    %75 = arith.addf %72, %74 : vector<384x64xf32>
    %cst_53 = arith.constant 0.000000e+00 : f32
    %76 = vector.broadcast %cst_53 : f32 to vector<384x64xf32>
    %77 = arith.maximumf %75, %76 : vector<384x64xf32>
    %c30_i32 = arith.constant 30 : i32
    %78 = vector.broadcast %c30_i32 : i32 to vector<384x64xi32>
    %79 = arith.cmpi slt, %8, %78 : vector<384x64xi32>
    %cst_54 = arith.constant 0.000000e+00 : f32
    %80 = vector.broadcast %cst_54 : f32 to vector<384x64xf32>
    %81 = arith.select %79, %77, %80 : vector<384x64xi1>, vector<384x64xf32>
    %82 = arith.truncf %81 : vector<384x64xf32> to vector<384x64xbf16>
    %c16_55 = arith.constant 16 : index
    %c0_56 = arith.constant 0 : index
    %83 = vector.load %arg6[%c16_55, %c0_56] : memref<400x64xbf16, #tpu.memory_space<vmem>>, vector<384x64xbf16>
    tpu.vector_store %arg6[%c16_55, %c0_56], %82 {strides = array<i32>} : memref<400x64xbf16, #tpu.memory_space<vmem>>, vector<384x64xbf16>,
    %c0_57 = arith.constant 0 : index
    %c0_58 = arith.constant 0 : index
    %84 = vector.load %arg6[%c0_57, %c0_58] : memref<400x64xbf16, #tpu.memory_space<vmem>>, vector<384x64xbf16>
    %c8_59 = arith.constant 8 : index
    %c0_60 = arith.constant 0 : index
    %85 = vector.load %arg6[%c8_59, %c0_60] : memref<400x64xbf16, #tpu.memory_space<vmem>>, vector<384x64xbf16>
    %c16_61 = arith.constant 16 : index
    %c0_62 = arith.constant 0 : index
    %86 = vector.load %arg6[%c16_61, %c0_62] : memref<400x64xbf16, #tpu.memory_space<vmem>>, vector<384x64xbf16>
    %87 = tpu.concatenate %84, %85, %86 in 1 : vector<384x64xbf16>, vector<384x64xbf16>, vector<384x64xbf16> -> vector<384x192xbf16>
    %c768 = arith.constant 768 : index
    %c0_63 = arith.constant 0 : index
    %88 = vector.load %arg3[%c768, %c0_63] : memref<1024x64xbf16, #tpu.memory_space<vmem>>, vector<192x64xbf16>
    %cst_64 = arith.constant dense<0.000000e+00> : vector<384x64xf32>
    %89 = tpu.matmul %87, %88, %cst_64 {dimension_numbers = #tpu.dot_dimension_numbers<[1], [0], [0], [1], [0, 0, 1, 1], [], []>} : vector<384x192xbf16>, vector<192x64xbf16>, vector<384x64xf32> -> vector<384x64xf32>
    %c48 = arith.constant 48 : index
    %c0_65 = arith.constant 0 : index
    %90 = vector.load %arg4[%c48, %c0_65] : memref<136x64xf32, #tpu.memory_space<vmem>>, vector<1x64xf32>
    %91 = vector.broadcast %90 : vector<1x64xf32> to vector<384x64xf32>
    %92 = arith.addf %89, %91 : vector<384x64xf32>
    %cst_66 = arith.constant 0.000000e+00 : f32
    %93 = vector.broadcast %cst_66 : f32 to vector<384x64xf32>
    %94 = arith.maximumf %92, %93 : vector<384x64xf32>
    %95 = arith.truncf %94 : vector<384x64xf32> to vector<384x64xbf16>
    %c960 = arith.constant 960 : index
    %c0_67 = arith.constant 0 : index
    %96 = vector.load %arg3[%c960, %c0_67] : memref<1024x64xbf16, #tpu.memory_space<vmem>>, vector<64x64xbf16>
    %cst_68 = arith.constant dense<0.000000e+00> : vector<384x64xf32>
    %97 = tpu.matmul %95, %96, %cst_68 {dimension_numbers = #tpu.dot_dimension_numbers<[1], [0], [0], [1], [0, 0, 1, 1], [], []>} : vector<384x64xbf16>, vector<64x64xbf16>, vector<384x64xf32> -> vector<384x64xf32>
    %c56 = arith.constant 56 : index
    %c0_69 = arith.constant 0 : index
    %98 = vector.load %arg4[%c56, %c0_69] : memref<136x64xf32, #tpu.memory_space<vmem>>, vector<1x64xf32>
    %99 = vector.broadcast %98 : vector<1x64xf32> to vector<384x64xf32>
    %100 = arith.addf %97, %99 : vector<384x64xf32>
    %cst_70 = arith.constant 0.000000e+00 : f32
    %101 = vector.broadcast %cst_70 : f32 to vector<384x64xf32>
    %102 = arith.maximumf %100, %101 : vector<384x64xf32>
    %c46_i32 = arith.constant 46 : i32
    %103 = vector.broadcast %c46_i32 : i32 to vector<384x64xi32>
    %104 = arith.cmpi slt, %8, %103 : vector<384x64xi32>
    %cst_71 = arith.constant 0.000000e+00 : f32
    %105 = vector.broadcast %cst_71 : f32 to vector<384x64xf32>
    %106 = arith.select %104, %102, %105 : vector<384x64xi1>, vector<384x64xf32>
    %107 = vector.shape_cast %106 : vector<384x64xf32> to vector<8x48x64xf32>
    %cst_72 = arith.constant dense<0.000000e+00> : vector<8x64xf32>
    %108 = vector.multi_reduction <add>, %107, %cst_72 [1] : vector<8x48x64xf32> to vector<8x64xf32>
    %cst_73 = arith.constant 0.0217391308 : f32
    %109 = vector.broadcast %cst_73 : f32 to vector<8x64xf32>
    %110 = arith.mulf %108, %109 : vector<8x64xf32>
    %c64 = arith.constant 64 : index
    %c0_74 = arith.constant 0 : index
    %111 = vector.load %arg4[%c64, %c0_74] : memref<136x64xf32, #tpu.memory_space<vmem>>, vector<64x64xf32>
    %cst_75 = arith.constant dense<0.000000e+00> : vector<8x64xf32>
    %112 = tpu.matmul %110, %111, %cst_75 {dimension_numbers = #tpu.dot_dimension_numbers<[1], [0], [0], [1], [0, 0, 1, 1], [], []>} : vector<8x64xf32>, vector<64x64xf32>, vector<8x64xf32> -> vector<8x64xf32>
    %c128 = arith.constant 128 : index
    %c0_76 = arith.constant 0 : index
    %113 = vector.load %arg4[%c128, %c0_76] : memref<136x64xf32, #tpu.memory_space<vmem>>, vector<1x64xf32>
    %114 = vector.broadcast %113 : vector<1x64xf32> to vector<8x64xf32>
    %115 = arith.addf %112, %114 : vector<8x64xf32>
    %116 = vector.extract_strided_slice %115 {offsets = [0, 0], sizes = [8, 18], strides = [1, 1]} : vector<8x64xf32> to vector<8x18xf32>
    %c0_77 = arith.constant 0 : index
    %c0_78 = arith.constant 0 : index
    %117 = vector.load %arg2[%c0_77, %c0_78] : memref<8x18xf32, #tpu.memory_space<vmem>>, vector<8x18xf32>
    %cst_79 = arith.constant 1.000000e+00 : f32
    %118 = vector.broadcast %cst_79 : f32 to vector<8x18xf32>
    %119 = arith.mulf %118, %116 : vector<8x18xf32>
    %120 = arith.addf %117, %119 : vector<8x18xf32>
    %cst_80 = arith.constant 2.000000e+00 : f32
    %121 = vector.broadcast %cst_80 : f32 to vector<8x18xf32>
    %122 = arith.mulf %121, %116 : vector<8x18xf32>
    %123 = arith.addf %117, %122 : vector<8x18xf32>
    %cst_81 = arith.constant 3.000000e+00 : f32
    %124 = vector.broadcast %cst_81 : f32 to vector<8x18xf32>
    %125 = arith.mulf %124, %116 : vector<8x18xf32>
    %126 = arith.addf %117, %125 : vector<8x18xf32>
    %cst_82 = arith.constant 4.000000e+00 : f32
    %127 = vector.broadcast %cst_82 : f32 to vector<8x18xf32>
    %128 = arith.mulf %127, %116 : vector<8x18xf32>
    %129 = arith.addf %117, %128 : vector<8x18xf32>
    %cst_83 = arith.constant 5.000000e+00 : f32
    %130 = vector.broadcast %cst_83 : f32 to vector<8x18xf32>
    %131 = arith.mulf %130, %116 : vector<8x18xf32>
    %132 = arith.addf %117, %131 : vector<8x18xf32>
    %cst_84 = arith.constant 0.000000e+00 : f32
    %133 = vector.broadcast %cst_84 : f32 to vector<8x38xf32>
    %134 = tpu.concatenate %120, %123, %126, %129, %132, %133 in 1 : vector<8x18xf32>, vector<8x18xf32>, vector<8x18xf32>, vector<8x18xf32>, vector<8x18xf32>, vector<8x38xf32> -> vector<8x128xf32>
    %c0_85 = arith.constant 0 : index
    %c0_86 = arith.constant 0 : index
    %135 = vector.load %arg5[%c0_85, %c0_86] : memref<8x128xf32, #tpu.memory_space<vmem>>, vector<8x128xf32>
    tpu.vector_store %arg5[%c0_85, %c0_86], %134 {strides = array<i32>} : memref<8x128xf32, #tpu.memory_space<vmem>>, vector<8x128xf32>,
    return
  }
  func.func @transform_0(%arg0: i32) -> (i32, i32, i32) {
    %c0_i32 = arith.constant 0 : i32
    %c0_i32_0 = arith.constant 0 : i32
    %c0_i32_1 = arith.constant 0 : i32
    return %arg0, %c0_i32, %c0_i32_0 : i32, i32, i32
  }
  func.func @transform_1(%arg0: i32) -> (i32, i32) {
    %c0_i32 = arith.constant 0 : i32
    %c0_i32_0 = arith.constant 0 : i32
    return %arg0, %c0_i32 : i32, i32
  }
  func.func @transform_2(%arg0: i32) -> (i32, i32) {
    %c0_i32 = arith.constant 0 : i32
    %c0_i32_0 = arith.constant 0 : i32
    %c0_i32_1 = arith.constant 0 : i32
    return %c0_i32, %c0_i32_0 : i32, i32
  }
  func.func @transform_3(%arg0: i32) -> (i32, i32) {
    %c0_i32 = arith.constant 0 : i32
    %c0_i32_0 = arith.constant 0 : i32
    %c0_i32_1 = arith.constant 0 : i32
    return %c0_i32, %c0_i32_0 : i32, i32
  }
  func.func @transform_4(%arg0: i32) -> (i32, i32) {
    %c0_i32 = arith.constant 0 : i32
    %c0_i32_0 = arith.constant 0 : i32
    return %arg0, %c0_i32 : i32, i32
  }
}

</mosaic_0001>

<llo_original>
// kernel: tpu_custom_call.1
$region0: #{tpu_custom_call.1}
  #allocation0 [shape = 'u32[]', space=smem, size = 0x4, offset = 0x4, fixed_abs, tag = 'smem constant byte address 0x4 - core index']
  #allocation1 [shape = 'u32[72,128]{1,0:T(1,128)}', space=vmem, size = 0x9000, scoped, tag = 'internal scratch']
  #allocation2 [shape = 'bf16[400,64]{1,0:T(8,128)(2,1)}', space=vmem, size = 0x19000, scoped, tag = 'scratch operand']
  %s0 = inlined_call_operand.vmem [shape: bf16[8,16,64], index: 0, kind: input, shape index: {}]
  %s1 = inlined_call_operand.vmem [shape: f32[8,18], index: 1, kind: input, shape index: {}]
  %s2 = inlined_call_operand.vmem [shape: bf16[1024,64], index: 2, kind: input, shape index: {}]
  %s3 = inlined_call_operand.vmem [shape: f32[136,64], index: 3, kind: input, shape index: {}]
  %s4 = inlined_call_operand.hbm [shape: f32[8,128], index: 4, kind: output, shape index: {}]
  %s5 = sld [smem:[#allocation0]]
  $region26: #{tpu_custom_call.1} parent=0
    _
  %s7 = ssub.s32 1, %s5
  %s8 = scalar_select 0, %s7, %s5
  $region1: #{tpu_custom_call.1} parent=0
    #allocation3 [shape = 'u8[4096]{0}', space=vmem, size = 0x1000, scoped, tag = 'output window, operand 0, single buffered']
    #allocation4 [shape = 's32[1]{0}', space=sflag, size = 0x4, scoped, tag = 'scoped memory for tpu_custom_call.1']
    %9 = vsyncpa [#allocation4], 0
    // Predicated region
    $region2: #{tpu_custom_call.1} parent=1 // pred_check
      _
    $region3: #{tpu_custom_call.1} parent=1 // pred_check_branch
      %11 = sbr.rel (0) target = $region5
    $region4: #{tpu_custom_call.1} parent=1 // pred_region
      _
    $region5: #{tpu_custom_call.1} parent=1 // pred_fallthru
      _
    // Predicated region
    $region6: #{tpu_custom_call.1} parent=1 // pred_check
      _
    $region7: #{tpu_custom_call.1} parent=1 // pred_check_branch
      %13 = sbr.rel (0) target = $region9
    $region8: #{tpu_custom_call.1} parent=1 // pred_region
      _
    $region9: #{tpu_custom_call.1} parent=1 // pred_fallthru
      _
    // Predicated region
    $region10: #{tpu_custom_call.1} parent=1 // pred_check
      _
    $region11: #{tpu_custom_call.1} parent=1 // pred_check_branch
      %15 = sbr.rel (0) target = $region13
    $region12: #{tpu_custom_call.1} parent=1 // pred_region
      _
    $region13: #{tpu_custom_call.1} parent=1 // pred_fallthru
      _
    // Predicated region
    $region14: #{tpu_custom_call.1} parent=1 // pred_check
      _
    $region15: #{tpu_custom_call.1} parent=1 // pred_check_branch
      %17 = sbr.rel (0) target = $region17
    $region16: #{tpu_custom_call.1} parent=1 // pred_region
      _
    $region17: #{tpu_custom_call.1} parent=1 // pred_fallthru
      _
    %vm19 = vcmask 519168
    %20 = vst.msk [vmem:[#allocation2] sm:$0xf] %vm19, 0
    %21 = vst.msk [vmem:[#allocation2 + $0x4] sm:$0xf] %vm19, 0
    %v22 = vld [vmem:[%s0] sm:$0xf]
    %v23 = vld [vmem:[%s0 + $0x4] sm:$0xf]
    %v24 = vld [vmem:[%s0 + $0x8] sm:$0xf]
    %v25 = vld [vmem:[%s0 + $0xc] sm:$0xf]
    %v26 = vld [vmem:[%s0 + $0x10] sm:$0xf]
    %v27 = vld [vmem:[%s0 + $0x14] sm:$0xf]
    %v28 = vld [vmem:[%s0 + $0x18] sm:$0xf]
    %v29 = vld [vmem:[%s0 + $0x1c] sm:$0xf]
    %v30 = vld [vmem:[%s0 + $0x20] sm:$0xf]
    %v31 = vld [vmem:[%s0 + $0x24] sm:$0xf]
    %v32 = vld [vmem:[%s0 + $0x28] sm:$0xf]
    %v33 = vld [vmem:[%s0 + $0x2c] sm:$0xf]
    %v34 = vld [vmem:[%s0 + $0x30] sm:$0xf]
    %v35 = vld [vmem:[%s0 + $0x34] sm:$0xf]
    %v36 = vld [vmem:[%s0 + $0x38] sm:$0xf]
    %v37 = vld [vmem:[%s0 + $0x3c] sm:$0xf]
    %v54 = vunpack.c.l.b16 %v22
    %v55 = vunpack.c.l.b16 %v23
    %v56 = vunpack.c.l.b16 %v24
    %v57 = vunpack.c.l.b16 %v25
    %v58 = vunpack.c.l.b16 %v26
    %v59 = vunpack.c.l.b16 %v27
    %v60 = vunpack.c.l.b16 %v28
    %v61 = vunpack.c.l.b16 %v29
    %v62 = vunpack.c.l.b16 %v30
    %v63 = vunpack.c.l.b16 %v31
    %v64 = vunpack.c.l.b16 %v32
    %v65 = vunpack.c.l.b16 %v33
    %v66 = vunpack.c.l.b16 %v34
    %v67 = vunpack.c.l.b16 %v35
    %v68 = vunpack.c.l.b16 %v36
    %v69 = vunpack.c.l.b16 %v37
    %v71 = vunpack.c.l.b16 0
    %v72 = vunpack.c.h.b16 0
    %v73 = vpack.c.b16 %v54, %v54
    %v74 = vpack.c.b16 %v55, %v55
    %v75 = vpack.c.b16 %v71, %v71
    %v76 = vpack.c.b16 %v72, %v72
    %v77 = vpack.c.b16 %v56, %v56
    %v78 = vpack.c.b16 %v57, %v57
    %v79 = vpack.c.b16 %v58, %v58
    %v80 = vpack.c.b16 %v59, %v59
    %v81 = vpack.c.b16 %v60, %v60
    %v82 = vpack.c.b16 %v61, %v61
    %v83 = vpack.c.b16 %v62, %v62
    %v84 = vpack.c.b16 %v63, %v63
    %v85 = vpack.c.b16 %v64, %v64
    %v86 = vpack.c.b16 %v65, %v65
    %v87 = vpack.c.b16 %v66, %v66
    %v88 = vpack.c.b16 %v67, %v67
    %v89 = vpack.c.b16 %v68, %v68
    %v90 = vpack.c.b16 %v69, %v69
    %109 = vst.msk [vmem:[#allocation2 + $0x8] sm:$0xf] %vm19, %v73
    %110 = vst.msk [vmem:[#allocation2 + $0xc] sm:$0xf] %vm19, %v74
    %111 = vst.msk [vmem:[#allocation2 + $0x10] sm:$0xf] %vm19, %v75
    %112 = vst.msk [vmem:[#allocation2 + $0x14] sm:$0xf] %vm19, %v76
    %113 = vst.msk [vmem:[#allocation2 + $0x18] sm:$0xf] %vm19, %v75
    %114 = vst.msk [vmem:[#allocation2 + $0x1c] sm:$0xf] %vm19, %v76
    %115 = vst.msk [vmem:[#allocation2 + $0x20] sm:$0xf] %vm19, %v77
    %116 = vst.msk [vmem:[#allocation2 + $0x24] sm:$0xf] %vm19, %v78
    %117 = vst.msk [vmem:[#allocation2 + $0x28] sm:$0xf] %vm19, %v75
    %118 = vst.msk [vmem:[#allocation2 + $0x2c] sm:$0xf] %vm19, %v76
    %119 = vst.msk [vmem:[#allocation2 + $0x30] sm:$0xf] %vm19, %v75
    %120 = vst.msk [vmem:[#allocation2 + $0x34] sm:$0xf] %vm19, %v76
    %121 = vst.msk [vmem:[#allocation2 + $0x38] sm:$0xf] %vm19, %v79
    %122 = vst.msk [vmem:[#allocation2 + $0x3c] sm:$0xf] %vm19, %v80
    %123 = vst.msk [vmem:[#allocation2 + $0x40] sm:$0xf] %vm19, %v75
    %124 = vst.msk [vmem:[#allocation2 + $0x44] sm:$0xf] %vm19, %v76
    %125 = vst.msk [vmem:[#allocation2 + $0x48] sm:$0xf] %vm19, %v75
    %126 = vst.msk [vmem:[#allocation2 + $0x4c] sm:$0xf] %vm19, %v76
    %127 = vst.msk [vmem:[#allocation2 + $0x50] sm:$0xf] %vm19, %v81
    %128 = vst.msk [vmem:[#allocation2 + $0x54] sm:$0xf] %vm19, %v82
    %129 = vst.msk [vmem:[#allocation2 + $0x58] sm:$0xf] %vm19, %v75
    %130 = vst.msk [vmem:[#allocation2 + $0x5c] sm:$0xf] %vm19, %v76
    %131 = vst.msk [vmem:[#allocation2 + $0x60] sm:$0xf] %vm19, %v75
    %132 = vst.msk [vmem:[#allocation2 + $0x64] sm:$0xf] %vm19, %v76
    %133 = vst.msk [vmem:[#allocation2 + $0x68] sm:$0xf] %vm19, %v83
    %134 = vst.msk [vmem:[#allocation2 + $0x6c] sm:$0xf] %vm19, %v84
    %135 = vst.msk [vmem:[#allocation2 + $0x70] sm:$0xf] %vm19, %v75
    %136 = vst.msk [vmem:[#allocation2 + $0x74] sm:$0xf] %vm19, %v76
    %137 = vst.msk [vmem:[#allocation2 + $0x78] sm:$0xf] %vm19, %v75
    %138 = vst.msk [vmem:[#allocation2 + $0x7c] sm:$0xf] %vm19, %v76
    %139 = vst.msk [vmem:[#allocation2 + $0x80] sm:$0xf] %vm19, %v85
    %140 = vst.msk [vmem:[#allocation2 + $0x84] sm:$0xf] %vm19, %v86
    %141 = vst.msk [vmem:[#allocation2 + $0x88] sm:$0xf] %vm19, %v75
    %142 = vst.msk [vmem:[#allocation2 + $0x8c] sm:$0xf] %vm19, %v76
    %143 = vst.msk [vmem:[#allocation2 + $0x90] sm:$0xf] %vm19, %v75
    %144 = vst.msk [vmem:[#allocation2 + $0x94] sm:$0xf] %vm19, %v76
    %145 = vst.msk [vmem:[#allocation2 + $0x98] sm:$0xf] %vm19, %v87
    %146 = vst.msk [vmem:[#allocation2 + $0x9c] sm:$0xf] %vm19, %v88
    %147 = vst.msk [vmem:[#allocation2 + $0xa0] sm:$0xf] %vm19, %v75
    %148 = vst.msk [vmem:[#allocation2 + $0xa4] sm:$0xf] %vm19, %v76
    %149 = vst.msk [vmem:[#allocation2 + $0xa8] sm:$0xf] %vm19, %v75
    %150 = vst.msk [vmem:[#allocation2 + $0xac] sm:$0xf] %vm19, %v76
    %151 = vst.msk [vmem:[#allocation2 + $0xb0] sm:$0xf] %vm19, %v89
    %152 = vst.msk [vmem:[#allocation2 + $0xb4] sm:$0xf] %vm19, %v90
    %153 = vst.msk [vmem:[#allocation2 + $0xb8] sm:$0xf] %vm19, %v75
    %154 = vst.msk [vmem:[#allocation2 + $0xbc] sm:$0xf] %vm19, %v76
    %155 = vst.msk [vmem:[#allocation2 + $0xc0] sm:$0xf] %vm19, %v75
    %156 = vst.msk [vmem:[#allocation2 + $0xc4] sm:$0xf] %vm19, %v76
    %v157 = vlaneseq
    %v158 = vshrl.u32 %v157, 7
    %v159 = vadd.s32 %v158, 8
    %v160 = vadd.s32 %v158, 16
    %v161 = vadd.s32 %v158, 24
    %v162 = vadd.s32 %v158, 32
    %v163 = vadd.s32 %v158, 40
    %v164 = vld [vmem:[#allocation2 + $0x4] sm:$0x8]
    %v165 = vld [vmem:[#allocation2 + $0x8] sm:$0xf]
    %v166 = vld [vmem:[#allocation2 + $0xc] sm:$0xf]
    %v167 = vld [vmem:[#allocation2 + $0x10] sm:$0xf]
    %v168 = vld [vmem:[#allocation2 + $0x14] sm:$0xf]
    %v169 = vld [vmem:[#allocation2 + $0x18] sm:$0xf]
    %v170 = vld [vmem:[#allocation2 + $0x1c] sm:$0xf]
    %v171 = vld [vmem:[#allocation2 + $0x20] sm:$0xf]
    %v172 = vld [vmem:[#allocation2 + $0x24] sm:$0xf]
    %v173 = vld [vmem:[#allocation2 + $0x28] sm:$0xf]
    %v174 = vld [vmem:[#allocation2 + $0x2c] sm:$0xf]
    %v175 = vld [vmem:[#allocation2 + $0x30] sm:$0xf]
    %v176 = vld [vmem:[#allocation2 + $0x34] sm:$0xf]
    %v177 = vld [vmem:[#allocation2 + $0x38] sm:$0xf]
    %v178 = vld [vmem:[#allocation2 + $0x3c] sm:$0xf]
    %v179 = vld [vmem:[#allocation2 + $0x40] sm:$0xf]
    %v180 = vld [vmem:[#allocation2 + $0x44] sm:$0xf]
    %v181 = vld [vmem:[#allocation2 + $0x48] sm:$0xf]
    %v182 = vld [vmem:[#allocation2 + $0x4c] sm:$0xf]
    %v183 = vld [vmem:[#allocation2 + $0x50] sm:$0xf]
    %v184 = vld [vmem:[#allocation2 + $0x54] sm:$0xf]
    %v185 = vld [vmem:[#allocation2 + $0x58] sm:$0xf]
    %v186 = vld [vmem:[#allocation2 + $0x5c] sm:$0xf]
    %v187 = vld [vmem:[#allocation2 + $0x60] sm:$0xf]
    %v188 = vld [vmem:[#allocation2 + $0x64] sm:$0xf]
    %v189 = vld [vmem:[#allocation2 + $0x68] sm:$0xf]
    %v190 = vld [vmem:[#allocation2 + $0x6c] sm:$0xf]
    %v191 = vld [vmem:[#allocation2 + $0x70] sm:$0xf]
    %v192 = vld [vmem:[#allocation2 + $0x74] sm:$0xf]
    %v193 = vld [vmem:[#allocation2 + $0x78] sm:$0xf]
    %v194 = vld [vmem:[#allocation2 + $0x7c] sm:$0xf]
    %v195 = vld [vmem:[#allocation2 + $0x80] sm:$0xf]
    %v196 = vld [vmem:[#allocation2 + $0x84] sm:$0xf]
    %v197 = vld [vmem:[#allocation2 + $0x88] sm:$0xf]
    %v198 = vld [vmem:[#allocation2 + $0x8c] sm:$0xf]
    %v199 = vld [vmem:[#allocation2 + $0x90] sm:$0xf]
    %v200 = vld [vmem:[#allocation2 + $0x94] sm:$0xf]
    %v201 = vld [vmem:[#allocation2 + $0x98] sm:$0xf]
    %v202 = vld [vmem:[#allocation2 + $0x9c] sm:$0xf]
    %v203 = vld [vmem:[#allocation2 + $0xa0] sm:$0xf]
    %v204 = vld [vmem:[#allocation2 + $0xa4] sm:$0xf]
    %v205 = vld [vmem:[#allocation2 + $0xa8] sm:$0xf]
    %v206 = vld [vmem:[#allocation2 + $0xac] sm:$0xf]
    %v207 = vld [vmem:[#allocation2 + $0xb0] sm:$0xf]
    %v208 = vld [vmem:[#allocation2 + $0xb4] sm:$0xf]
    %v209 = vld [vmem:[#allocation2 + $0xb8] sm:$0xf]
    %v210 = vld [vmem:[#allocation2 + $0xbc] sm:$0xf]
    %v211 = vld [vmem:[#allocation2 + $0xc0] sm:$0xf]
    %v212 = vld [vmem:[#allocation2 + $0xc4] sm:$0x7]
    %v213 = vld [vmem:[#allocation2 + $0xc4] sm:$0xf]
    %v263 = vunpack.c.l.b16 %v164
    %v264 = vunpack.c.l.b16 %v165
    %v265 = vunpack.c.l.b16 %v166
    %v266 = vunpack.c.l.b16 %v167
    %v267 = vunpack.c.l.b16 %v168
    %v268 = vunpack.c.l.b16 %v169
    %v269 = vunpack.c.l.b16 %v170
    %v270 = vunpack.c.l.b16 %v171
    %v271 = vunpack.c.l.b16 %v172
    %v272 = vunpack.c.l.b16 %v173
    %v273 = vunpack.c.l.b16 %v174
    %v274 = vunpack.c.l.b16 %v175
    %v275 = vunpack.c.l.b16 %v176
    %v276 = vunpack.c.l.b16 %v177
    %v277 = vunpack.c.l.b16 %v178
    %v278 = vunpack.c.l.b16 %v179
    %v279 = vunpack.c.l.b16 %v180
    %v280 = vunpack.c.l.b16 %v181
    %v281 = vunpack.c.l.b16 %v182
    %v282 = vunpack.c.l.b16 %v183
    %v283 = vunpack.c.l.b16 %v184
    %v284 = vunpack.c.l.b16 %v185
    %v285 = vunpack.c.l.b16 %v186
    %v286 = vunpack.c.l.b16 %v187
    %v287 = vunpack.c.l.b16 %v188
    %v288 = vunpack.c.l.b16 %v189
    %v289 = vunpack.c.l.b16 %v190
    %v290 = vunpack.c.l.b16 %v191
    %v291 = vunpack.c.l.b16 %v192
    %v292 = vunpack.c.l.b16 %v193
    %v293 = vunpack.c.l.b16 %v194
    %v294 = vunpack.c.l.b16 %v195
    %v295 = vunpack.c.l.b16 %v196
    %v296 = vunpack.c.l.b16 %v197
    %v297 = vunpack.c.l.b16 %v198
    %v298 = vunpack.c.l.b16 %v199
    %v299 = vunpack.c.l.b16 %v200
    %v300 = vunpack.c.l.b16 %v201
    %v301 = vunpack.c.l.b16 %v202
    %v302 = vunpack.c.l.b16 %v203
    %v303 = vunpack.c.l.b16 %v204
    %v304 = vunpack.c.l.b16 %v205
    %v305 = vunpack.c.l.b16 %v206
    %v306 = vunpack.c.l.b16 %v207
    %v307 = vunpack.c.l.b16 %v208
    %v308 = vunpack.c.l.b16 %v209
    %v309 = vunpack.c.l.b16 %v210
    %v310 = vunpack.c.l.b16 %v211
    %v311 = vunpack.c.l.b16 %v212
    %v312 = vpack.c.b16 %v264, %v263
    %v313 = vpack.c.b16 %v266, %v265
    %v314 = vpack.c.b16 %v268, %v267
    %v315 = vpack.c.b16 %v270, %v269
    %v316 = vpack.c.b16 %v272, %v271
    %v317 = vpack.c.b16 %v274, %v273
    %v318 = vpack.c.b16 %v276, %v275
    %v319 = vpack.c.b16 %v278, %v277
    %v320 = vpack.c.b16 %v280, %v279
    %v321 = vpack.c.b16 %v282, %v281
    %v322 = vpack.c.b16 %v284, %v283
    %v323 = vpack.c.b16 %v286, %v285
    %v324 = vpack.c.b16 %v288, %v287
    %v325 = vpack.c.b16 %v290, %v289
    %v326 = vpack.c.b16 %v292, %v291
    %v327 = vpack.c.b16 %v294, %v293
    %v328 = vpack.c.b16 %v296, %v295
    %v329 = vpack.c.b16 %v298, %v297
    %v330 = vpack.c.b16 %v300, %v299
    %v331 = vpack.c.b16 %v302, %v301
    %v332 = vpack.c.b16 %v304, %v303
    %v333 = vpack.c.b16 %v306, %v305
    %v334 = vpack.c.b16 %v308, %v307
    %v335 = vpack.c.b16 %v310, %v309
    %v336 = vpack.c.b16 %v311, %v311
    %v338 = vunpack.c.l.b16 %v213
    %v339 = vpack.c.b16 %v338, %v338
    %vm340 = vsmask.f32 7424
    %v342 = vshrl.u32 %v312, 16
    %v344 = vshll.u32 %v312, 16
    %v346 = vrot.slane %v344, 1
    %v347 = vor.u32 %v342, %v346
    %v349 = vshll.u32 %v313, 16
    %v351 = vrot.slane %v349, 1
    %v352 = vsel %vm340, %v347, %v351
    %v353 = vshrl.u32 %v313, 16
    %v355 = vor.u32 %v353, %v351
    %v357 = vshll.u32 %v314, 16
    %v359 = vrot.slane %v357, 1
    %v360 = vsel %vm340, %v355, %v359
    %v361 = vshrl.u32 %v314, 16
    %v363 = vor.u32 %v361, %v359
    %v365 = vshll.u32 %v315, 16
    %v367 = vrot.slane %v365, 1
    %v368 = vsel %vm340, %v363, %v367
    %v369 = vshrl.u32 %v315, 16
    %v371 = vor.u32 %v369, %v367
    %v373 = vshll.u32 %v316, 16
    %v375 = vrot.slane %v373, 1
    %v376 = vsel %vm340, %v371, %v375
    %v377 = vshrl.u32 %v316, 16
    %v379 = vor.u32 %v377, %v375
    %v381 = vshll.u32 %v317, 16
    %v383 = vrot.slane %v381, 1
    %v384 = vsel %vm340, %v379, %v383
    %v385 = vshrl.u32 %v317, 16
    %v387 = vor.u32 %v385, %v383
    %v389 = vshll.u32 %v318, 16
    %v391 = vrot.slane %v389, 1
    %v392 = vsel %vm340, %v387, %v391
    %v393 = vshrl.u32 %v318, 16
    %v395 = vor.u32 %v393, %v391
    %v397 = vshll.u32 %v319, 16
    %v399 = vrot.slane %v397, 1
    %v400 = vsel %vm340, %v395, %v399
    %v401 = vshrl.u32 %v319, 16
    %v403 = vor.u32 %v401, %v399
    %v405 = vshll.u32 %v320, 16
    %v407 = vrot.slane %v405, 1
    %v408 = vsel %vm340, %v403, %v407
    %v409 = vshrl.u32 %v320, 16
    %v411 = vor.u32 %v409, %v407
    %v413 = vshll.u32 %v321, 16
    %v415 = vrot.slane %v413, 1
    %v416 = vsel %vm340, %v411, %v415
    %v417 = vshrl.u32 %v321, 16
    %v419 = vor.u32 %v417, %v415
    %v421 = vshll.u32 %v322, 16
    %v423 = vrot.slane %v421, 1
    %v424 = vsel %vm340, %v419, %v423
    %v425 = vshrl.u32 %v322, 16
    %v427 = vor.u32 %v425, %v423
    %v429 = vshll.u32 %v323, 16
    %v431 = vrot.slane %v429, 1
    %v432 = vsel %vm340, %v427, %v431
    %v433 = vshrl.u32 %v323, 16
    %v435 = vor.u32 %v433, %v431
    %v437 = vshll.u32 %v324, 16
    %v439 = vrot.slane %v437, 1
    %v440 = vsel %vm340, %v435, %v439
    %v441 = vshrl.u32 %v324, 16
    %v443 = vor.u32 %v441, %v439
    %v445 = vshll.u32 %v325, 16
    %v447 = vrot.slane %v445, 1
    %v448 = vsel %vm340, %v443, %v447
    %v449 = vshrl.u32 %v325, 16
    %v451 = vor.u32 %v449, %v447
    %v453 = vshll.u32 %v326, 16
    %v455 = vrot.slane %v453, 1
    %v456 = vsel %vm340, %v451, %v455
    %v457 = vshrl.u32 %v326, 16
    %v459 = vor.u32 %v457, %v455
    %v461 = vshll.u32 %v327, 16
    %v463 = vrot.slane %v461, 1
    %v464 = vsel %vm340, %v459, %v463
    %v465 = vshrl.u32 %v327, 16
    %v467 = vor.u32 %v465, %v463
    %v469 = vshll.u32 %v328, 16
    %v471 = vrot.slane %v469, 1
    %v472 = vsel %vm340, %v467, %v471
    %v473 = vshrl.u32 %v328, 16
    %v475 = vor.u32 %v473, %v471
    %v477 = vshll.u32 %v329, 16
    %v479 = vrot.slane %v477, 1
    %v480 = vsel %vm340, %v475, %v479
    %v481 = vshrl.u32 %v329, 16
    %v483 = vor.u32 %v481, %v479
    %v485 = vshll.u32 %v330, 16
    %v487 = vrot.slane %v485, 1
    %v488 = vsel %vm340, %v483, %v487
    %v489 = vshrl.u32 %v330, 16
    %v491 = vor.u32 %v489, %v487
    %v493 = vshll.u32 %v331, 16
    %v495 = vrot.slane %v493, 1
    %v496 = vsel %vm340, %v491, %v495
    %v497 = vshrl.u32 %v331, 16
    %v499 = vor.u32 %v497, %v495
    %v501 = vshll.u32 %v332, 16
    %v503 = vrot.slane %v501, 1
    %v504 = vsel %vm340, %v499, %v503
    %v505 = vshrl.u32 %v332, 16
    %v507 = vor.u32 %v505, %v503
    %v509 = vshll.u32 %v333, 16
    %v511 = vrot.slane %v509, 1
    %v512 = vsel %vm340, %v507, %v511
    %v513 = vshrl.u32 %v333, 16
    %v515 = vor.u32 %v513, %v511
    %v517 = vshll.u32 %v334, 16
    %v519 = vrot.slane %v517, 1
    %v520 = vsel %vm340, %v515, %v519
    %v521 = vshrl.u32 %v334, 16
    %v523 = vor.u32 %v521, %v519
    %v525 = vshll.u32 %v335, 16
    %v527 = vrot.slane %v525, 1
    %v528 = vsel %vm340, %v523, %v527
    %v529 = vshrl.u32 %v335, 16
    %v531 = vor.u32 %v529, %v527
    %v533 = vshll.u32 %v339, 16
    %v535 = vrot.slane %v533, 1
    %v536 = vsel %vm340, %v531, %v535
    %v537 = vshrl.u32 %v339, 16
    %v539 = vor.u32 %v537, %v535
    %540 = vrot.lane.b32.xlu0 %v352, 64
    %v541 = vpop.permute.xlu0 %540
    %542 = vrot.lane.b32.xlu0 %v360, 64
    %v543 = vpop.permute.xlu0 %542
    %544 = vrot.lane.b32.xlu0 %v368, 64
    %v545 = vpop.permute.xlu0 %544
    %546 = vrot.lane.b32.xlu0 %v376, 64
    %v547 = vpop.permute.xlu0 %546
    %548 = vrot.lane.b32.xlu0 %v384, 64
    %v549 = vpop.permute.xlu0 %548
    %550 = vrot.lane.b32.xlu0 %v392, 64
    %v551 = vpop.permute.xlu0 %550
    %552 = vrot.lane.b32.xlu0 %v400, 64
    %v553 = vpop.permute.xlu0 %552
    %554 = vrot.lane.b32.xlu0 %v408, 64
    %v555 = vpop.permute.xlu0 %554
    %556 = vrot.lane.b32.xlu0 %v416, 64
    %v557 = vpop.permute.xlu0 %556
    %558 = vrot.lane.b32.xlu0 %v424, 64
    %v559 = vpop.permute.xlu0 %558
    %560 = vrot.lane.b32.xlu0 %v432, 64
    %v561 = vpop.permute.xlu0 %560
    %562 = vrot.lane.b32.xlu0 %v440, 64
    %v563 = vpop.permute.xlu0 %562
    %564 = vrot.lane.b32.xlu0 %v448, 64
    %v565 = vpop.permute.xlu0 %564
    %566 = vrot.lane.b32.xlu0 %v456, 64
    %v567 = vpop.permute.xlu0 %566
    %568 = vrot.lane.b32.xlu0 %v464, 64
    %v569 = vpop.permute.xlu0 %568
    %570 = vrot.lane.b32.xlu0 %v472, 64
    %v571 = vpop.permute.xlu0 %570
    %572 = vrot.lane.b32.xlu0 %v480, 64
    %v573 = vpop.permute.xlu0 %572
    %574 = vrot.lane.b32.xlu0 %v488, 64
    %v575 = vpop.permute.xlu0 %574
    %576 = vrot.lane.b32.xlu0 %v496, 64
    %v577 = vpop.permute.xlu0 %576
    %578 = vrot.lane.b32.xlu0 %v504, 64
    %v579 = vpop.permute.xlu0 %578
    %580 = vrot.lane.b32.xlu0 %v512, 64
    %v581 = vpop.permute.xlu0 %580
    %582 = vrot.lane.b32.xlu0 %v520, 64
    %v583 = vpop.permute.xlu0 %582
    %584 = vrot.lane.b32.xlu0 %v528, 64
    %v585 = vpop.permute.xlu0 %584
    %586 = vrot.lane.b32.xlu0 %v536, 64
    %v587 = vpop.permute.xlu0 %586
    %588 = vrot.lane.b32.xlu0 %v539, 64
    %v589 = vpop.permute.xlu0 %588
    %v590 = vpack.c.b16 %v265, %v264
    %v591 = vpack.c.b16 %v267, %v266
    %v592 = vpack.c.b16 %v269, %v268
    %v593 = vpack.c.b16 %v271, %v270
    %v594 = vpack.c.b16 %v273, %v272
    %v595 = vpack.c.b16 %v275, %v274
    %v596 = vpack.c.b16 %v277, %v276
    %v597 = vpack.c.b16 %v279, %v278
    %v598 = vpack.c.b16 %v281, %v280
    %v599 = vpack.c.b16 %v283, %v282
    %v600 = vpack.c.b16 %v285, %v284
    %v601 = vpack.c.b16 %v287, %v286
    %v602 = vpack.c.b16 %v289, %v288
    %v603 = vpack.c.b16 %v291, %v290
    %v604 = vpack.c.b16 %v293, %v292
    %v605 = vpack.c.b16 %v295, %v294
    %v606 = vpack.c.b16 %v297, %v296
    %v607 = vpack.c.b16 %v299, %v298
    %v608 = vpack.c.b16 %v301, %v300
    %v609 = vpack.c.b16 %v303, %v302
    %v610 = vpack.c.b16 %v305, %v304
    %v611 = vpack.c.b16 %v307, %v306
    %v612 = vpack.c.b16 %v309, %v308
    %v613 = vpack.c.b16 %v338, %v310
    %vm614 = vcmask 1042432
    %v615 = vrot.slane %v590, 5
    %v616 = vrot.slane %v591, 5
    %v617 = vsel %vm614, %v615, %v616
    %v618 = vrot.slane %v592, 5
    %v619 = vsel %vm614, %v616, %v618
    %v620 = vrot.slane %v593, 5
    %v621 = vsel %vm614, %v618, %v620
    %v622 = vrot.slane %v594, 5
    %v623 = vsel %vm614, %v620, %v622
    %v624 = vrot.slane %v595, 5
    %v625 = vsel %vm614, %v622, %v624
    %v626 = vrot.slane %v596, 5
    %v627 = vsel %vm614, %v624, %v626
    %v628 = vrot.slane %v597, 5
    %v629 = vsel %vm614, %v626, %v628
    %v630 = vrot.slane %v598, 5
    %v631 = vsel %vm614, %v628, %v630
    %v632 = vrot.slane %v599, 5
    %v633 = vsel %vm614, %v630, %v632
    %v634 = vrot.slane %v600, 5
    %v635 = vsel %vm614, %v632, %v634
    %v636 = vrot.slane %v601, 5
    %v637 = vsel %vm614, %v634, %v636
    %v638 = vrot.slane %v602, 5
    %v639 = vsel %vm614, %v636, %v638
    %v640 = vrot.slane %v603, 5
    %v641 = vsel %vm614, %v638, %v640
    %v642 = vrot.slane %v604, 5
    %v643 = vsel %vm614, %v640, %v642
    %v644 = vrot.slane %v605, 5
    %v645 = vsel %vm614, %v642, %v644
    %v646 = vrot.slane %v606, 5
    %v647 = vsel %vm614, %v644, %v646
    %v648 = vrot.slane %v607, 5
    %v649 = vsel %vm614, %v646, %v648
    %v650 = vrot.slane %v608, 5
    %v651 = vsel %vm614, %v648, %v650
    %v652 = vrot.slane %v609, 5
    %v653 = vsel %vm614, %v650, %v652
    %v654 = vrot.slane %v610, 5
    %v655 = vsel %vm614, %v652, %v654
    %v656 = vrot.slane %v611, 5
    %v657 = vsel %vm614, %v654, %v656
    %v658 = vrot.slane %v612, 5
    %v659 = vsel %vm614, %v656, %v658
    %v660 = vrot.slane %v613, 5
    %v661 = vsel %vm614, %v658, %v660
    %vm662 = vcmask 523264
    %v664 = vsel %vm662, %v312, %v541
    %v666 = vsel %vm662, %v313, %v543
    %v668 = vsel %vm662, %v314, %v545
    %v670 = vsel %vm662, %v315, %v547
    %v672 = vsel %vm662, %v316, %v549
    %v674 = vsel %vm662, %v317, %v551
    %v676 = vsel %vm662, %v318, %v553
    %v678 = vsel %vm662, %v319, %v555
    %v680 = vsel %vm662, %v320, %v557
    %v682 = vsel %vm662, %v321, %v559
    %v684 = vsel %vm662, %v322, %v561
    %v686 = vsel %vm662, %v323, %v563
    %v688 = vsel %vm662, %v324, %v565
    %v690 = vsel %vm662, %v325, %v567
    %v692 = vsel %vm662, %v326, %v569
    %v694 = vsel %vm662, %v327, %v571
    %v696 = vsel %vm662, %v328, %v573
    %v698 = vsel %vm662, %v329, %v575
    %v700 = vsel %vm662, %v330, %v577
    %v702 = vsel %vm662, %v331, %v579
    %v704 = vsel %vm662, %v332, %v581
    %v706 = vsel %vm662, %v333, %v583
    %v708 = vsel %vm662, %v334, %v585
    %v710 = vsel %vm662, %v335, %v587
    %v713 = vsel %vm662, %v336, %v589
    %v714 = vld [vmem:[%s2] sm:$0xf]
    %v715 = vld [vmem:[%s2 + $0x4] sm:$0xf]
    %v716 = vld [vmem:[%s2 + $0x8] sm:$0xf]
    %v717 = vld [vmem:[%s2 + $0xc] sm:$0xf]
    %v718 = vld [vmem:[%s2 + $0x10] sm:$0xf]
    %v719 = vld [vmem:[%s2 + $0x14] sm:$0xf]
    %v720 = vld [vmem:[%s2 + $0x18] sm:$0xf]
    %v721 = vld [vmem:[%s2 + $0x1c] sm:$0xf]
    %v722 = vld [vmem:[%s2 + $0x20] sm:$0xf]
    %v723 = vld [vmem:[%s2 + $0x24] sm:$0xf]
    %v724 = vld [vmem:[%s2 + $0x28] sm:$0xf]
    %v725 = vld [vmem:[%s2 + $0x2c] sm:$0xf]
    %v726 = vld [vmem:[%s2 + $0x30] sm:$0xf]
    %v727 = vld [vmem:[%s2 + $0x34] sm:$0xf]
    %v728 = vld [vmem:[%s2 + $0x38] sm:$0xf]
    %v729 = vld [vmem:[%s2 + $0x3c] sm:$0xf]
    %v730 = vld [vmem:[%s2 + $0x40] sm:$0xf]
    %v731 = vld [vmem:[%s2 + $0x44] sm:$0xf]
    %v732 = vld [vmem:[%s2 + $0x48] sm:$0xf]
    %v733 = vld [vmem:[%s2 + $0x4c] sm:$0xf]
    %v734 = vld [vmem:[%s2 + $0x50] sm:$0xf]
    %v735 = vld [vmem:[%s2 + $0x54] sm:$0xf]
    %v736 = vld [vmem:[%s2 + $0x58] sm:$0xf]
    %v737 = vld [vmem:[%s2 + $0x5c] sm:$0xf]
    %v738 = vld [vmem:[%s3] sm:$0x1]
    %v739 = vperm.slane %v738, 0
    %vm765 = vcmask 1044480
    %v766 = vrot.slane %v664, 3
    %v767 = vrot.slane %v666, 3
    %v768 = vsel %vm765, %v766, %v767
    %v769 = vrot.slane %v615, 3
    %v770 = vrot.slane %v617, 3
    %v771 = vsel %vm765, %v769, %v770
    %v772 = vrot.slane %v668, 3
    %v773 = vsel %vm765, %v767, %v772
    %v774 = vrot.slane %v619, 3
    %v775 = vsel %vm765, %v770, %v774
    %v776 = vrot.slane %v670, 3
    %v777 = vsel %vm765, %v772, %v776
    %v778 = vrot.slane %v621, 3
    %v779 = vsel %vm765, %v774, %v778
    %v780 = vrot.slane %v672, 3
    %v781 = vsel %vm765, %v776, %v780
    %v782 = vrot.slane %v623, 3
    %v783 = vsel %vm765, %v778, %v782
    %v784 = vrot.slane %v674, 3
    %v785 = vsel %vm765, %v780, %v784
    %v786 = vrot.slane %v625, 3
    %v787 = vsel %vm765, %v782, %v786
    %v788 = vrot.slane %v676, 3
    %v789 = vsel %vm765, %v784, %v788
    %v790 = vrot.slane %v627, 3
    %v791 = vsel %vm765, %v786, %v790
    %v792 = vrot.slane %v678, 3
    %v793 = vsel %vm765, %v788, %v792
    %v794 = vrot.slane %v629, 3
    %v795 = vsel %vm765, %v790, %v794
    %v796 = vrot.slane %v680, 3
    %v797 = vsel %vm765, %v792, %v796
    %v798 = vrot.slane %v631, 3
    %v799 = vsel %vm765, %v794, %v798
    %v800 = vrot.slane %v682, 3
    %v801 = vsel %vm765, %v796, %v800
    %v802 = vrot.slane %v633, 3
    %v803 = vsel %vm765, %v798, %v802
    %v804 = vrot.slane %v684, 3
    %v805 = vsel %vm765, %v800, %v804
    %v806 = vrot.slane %v635, 3
    %v807 = vsel %vm765, %v802, %v806
    %v808 = vrot.slane %v686, 3
    %v809 = vsel %vm765, %v804, %v808
    %v810 = vrot.slane %v637, 3
    %v811 = vsel %vm765, %v806, %v810
    %v812 = vrot.slane %v688, 3
    %v813 = vsel %vm765, %v808, %v812
    %v814 = vrot.slane %v639, 3
    %v815 = vsel %vm765, %v810, %v814
    %v816 = vrot.slane %v690, 3
    %v817 = vsel %vm765, %v812, %v816
    %v818 = vrot.slane %v641, 3
    %v819 = vsel %vm765, %v814, %v818
    %v820 = vrot.slane %v692, 3
    %v821 = vsel %vm765, %v816, %v820
    %v822 = vrot.slane %v643, 3
    %v823 = vsel %vm765, %v818, %v822
    %v824 = vrot.slane %v694, 3
    %v825 = vsel %vm765, %v820, %v824
    %v826 = vrot.slane %v645, 3
    %v827 = vsel %vm765, %v822, %v826
    %v828 = vrot.slane %v696, 3
    %v829 = vsel %vm765, %v824, %v828
    %v830 = vrot.slane %v647, 3
    %v831 = vsel %vm765, %v826, %v830
    %v832 = vrot.slane %v698, 3
    %v833 = vsel %vm765, %v828, %v832
    %v834 = vrot.slane %v649, 3
    %v835 = vsel %vm765, %v830, %v834
    %v836 = vrot.slane %v700, 3
    %v837 = vsel %vm765, %v832, %v836
    %v838 = vrot.slane %v651, 3
    %v839 = vsel %vm765, %v834, %v838
    %v840 = vrot.slane %v702, 3
    %v841 = vsel %vm765, %v836, %v840
    %v842 = vrot.slane %v653, 3
    %v843 = vsel %vm765, %v838, %v842
    %v844 = vrot.slane %v704, 3
    %v845 = vsel %vm765, %v840, %v844
    %v846 = vrot.slane %v655, 3
    %v847 = vsel %vm765, %v842, %v846
    %v848 = vrot.slane %v706, 3
    %v849 = vsel %vm765, %v844, %v848
    %v850 = vrot.slane %v657, 3
    %v851 = vsel %vm765, %v846, %v850
    %v852 = vrot.slane %v708, 3
    %v853 = vsel %vm765, %v848, %v852
    %v854 = vrot.slane %v659, 3
    %v855 = vsel %vm765, %v850, %v854
    %v856 = vrot.slane %v710, 3
    %v857 = vsel %vm765, %v852, %v856
    %v858 = vrot.slane %v661, 3
    %v859 = vsel %vm765, %v854, %v858
    %v860 = vrot.slane %v713, 3
    %v861 = vsel %vm765, %v856, %v860
    %v862 = vrot.slane %v660, 3
    %v863 = vsel %vm765, %v858, %v862
    %v912 = vunpack.c.l.b16 %v714
    %v913 = vunpack.c.l.b16 %v715
    %v914 = vunpack.c.l.b16 %v716
    %v915 = vunpack.c.l.b16 %v717
    %v916 = vunpack.c.l.b16 %v718
    %v917 = vunpack.c.l.b16 %v719
    %v918 = vunpack.c.l.b16 %v720
    %v919 = vunpack.c.l.b16 %v721
    %v920 = vunpack.c.l.b16 %v722
    %v921 = vunpack.c.l.b16 %v723
    %v922 = vunpack.c.l.b16 %v724
    %v923 = vunpack.c.l.b16 %v725
    %v924 = vunpack.c.l.b16 %v726
    %v925 = vunpack.c.l.b16 %v727
    %v926 = vunpack.c.l.b16 %v728
    %v927 = vunpack.c.l.b16 %v729
    %v928 = vunpack.c.l.b16 %v730
    %v929 = vunpack.c.l.b16 %v731
    %v930 = vunpack.c.l.b16 %v732
    %v931 = vunpack.c.l.b16 %v733
    %v932 = vunpack.c.l.b16 %v734
    %v933 = vunpack.c.l.b16 %v735
    %v934 = vunpack.c.l.b16 %v736
    %v935 = vunpack.c.l.b16 %v737
    %v936 = vpack.c.b16 %v913, %v912
    %v937 = vpack.c.b16 %v915, %v914
    %v938 = vpack.c.b16 %v917, %v916
    %v939 = vpack.c.b16 %v919, %v918
    %v940 = vpack.c.b16 %v921, %v920
    %v941 = vpack.c.b16 %v923, %v922
    %v942 = vpack.c.b16 %v925, %v924
    %v943 = vpack.c.b16 %v927, %v926
    %v944 = vpack.c.b16 %v929, %v928
    %v945 = vpack.c.b16 %v931, %v930
    %v946 = vpack.c.b16 %v933, %v932
    %v947 = vpack.c.b16 %v935, %v934
    %v961 = vsel %vm662, %v771, 0
    %v964 = vsel %vm662, %v775, 0
    %v967 = vsel %vm662, %v779, 0
    %v970 = vsel %vm662, %v783, 0
    %v973 = vsel %vm662, %v787, 0
    %v976 = vsel %vm662, %v791, 0
    %v979 = vsel %vm662, %v795, 0
    %v982 = vsel %vm662, %v799, 0
    %v985 = vsel %vm662, %v803, 0
    %v988 = vsel %vm662, %v807, 0
    %v991 = vsel %vm662, %v811, 0
    %v994 = vsel %vm662, %v815, 0
    %v997 = vsel %vm662, %v819, 0
    %v1000 = vsel %vm662, %v823, 0
    %v1003 = vsel %vm662, %v827, 0
    %v1006 = vsel %vm662, %v831, 0
    %v1009 = vsel %vm662, %v835, 0
    %v1012 = vsel %vm662, %v839, 0
    %v1015 = vsel %vm662, %v843, 0
    %v1018 = vsel %vm662, %v847, 0
    %v1021 = vsel %vm662, %v851, 0
    %v1024 = vsel %vm662, %v855, 0
    %v1027 = vsel %vm662, %v859, 0
    %v1030 = vsel %vm662, %v863, 0
    %1032 = vmatpush.bf16.msra.mxu0 %v943
    %1033 = vmatpush.bf16.msra.mxu0 %v942
    %1034 = vmatpush.bf16.msra.mxu0 %v941
    %1035 = vmatpush.bf16.msra.mxu0 %v940
    %1036 = vmatpush.bf16.msra.mxu0 %v939
    %1037 = vmatpush.bf16.msra.mxu0 %v938
    %1038 = vmatpush.bf16.msra.mxu0 %v937
    %1039 = vmatpush.bf16.msra.mxu0 %v936
    %1040 = vmatmul.bf16.gmra.mxu0 %v768
    %v1041 = vpop.f32.mrf.mxu0
    %v1042 = vadd.f32 %v739, %v1041
    %v1043 = vpop.f32.mrf.mxu0
    %v1044 = vadd.f32 %v739, %v1043
    %1045 = vmatmul.bf16.gmra.mxu0 %v773
    %v1046 = vpop.f32.mrf.mxu0
    %v1047 = vadd.f32 %v739, %v1046
    %v1048 = vpop.f32.mrf.mxu0
    %v1049 = vadd.f32 %v739, %v1048
    %1050 = vmatmul.bf16.gmra.mxu0 %v777
    %v1051 = vpop.f32.mrf.mxu0
    %v1052 = vadd.f32 %v739, %v1051
    %v1053 = vpop.f32.mrf.mxu0
    %v1054 = vadd.f32 %v739, %v1053
    %1055 = vmatmul.bf16.gmra.mxu0 %v781
    %v1056 = vpop.f32.mrf.mxu0
    %v1057 = vadd.f32 %v739, %v1056
    %v1058 = vpop.f32.mrf.mxu0
    %v1059 = vadd.f32 %v739, %v1058
    %1060 = vmatmul.bf16.gmra.mxu0 %v785
    %v1061 = vpop.f32.mrf.mxu0
    %v1062 = vadd.f32 %v739, %v1061
    %v1063 = vpop.f32.mrf.mxu0
    %v1064 = vadd.f32 %v739, %v1063
    %1065 = vmatmul.bf16.gmra.mxu0 %v789
    %v1066 = vpop.f32.mrf.mxu0
    %v1067 = vadd.f32 %v739, %v1066
    %v1068 = vpop.f32.mrf.mxu0
    %v1069 = vadd.f32 %v739, %v1068
    %1070 = vmatmul.bf16.gmra.mxu0 %v793
    %v1071 = vpop.f32.mrf.mxu0
    %v1072 = vadd.f32 %v739, %v1071
    %v1073 = vpop.f32.mrf.mxu0
    %v1074 = vadd.f32 %v739, %v1073
    %1075 = vmatmul.bf16.gmra.mxu0 %v797
    %v1076 = vpop.f32.mrf.mxu0
    %v1077 = vadd.f32 %v739, %v1076
    %v1078 = vpop.f32.mrf.mxu0
    %v1079 = vadd.f32 %v739, %v1078
    %1080 = vmatmul.bf16.gmra.mxu0 %v801
    %v1081 = vpop.f32.mrf.mxu0
    %v1082 = vadd.f32 %v739, %v1081
    %v1083 = vpop.f32.mrf.mxu0
    %v1084 = vadd.f32 %v739, %v1083
    %1085 = vmatmul.bf16.gmra.mxu0 %v805
    %v1086 = vpop.f32.mrf.mxu0
    %v1087 = vadd.f32 %v739, %v1086
    %v1088 = vpop.f32.mrf.mxu0
    %v1089 = vadd.f32 %v739, %v1088
    %1090 = vmatmul.bf16.gmra.mxu0 %v809
    %v1091 = vpop.f32.mrf.mxu0
    %v1092 = vadd.f32 %v739, %v1091
    %v1093 = vpop.f32.mrf.mxu0
    %v1094 = vadd.f32 %v739, %v1093
    %1095 = vmatmul.bf16.gmra.mxu0 %v813
    %v1096 = vpop.f32.mrf.mxu0
    %v1097 = vadd.f32 %v739, %v1096
    %v1098 = vpop.f32.mrf.mxu0
    %v1099 = vadd.f32 %v739, %v1098
    %1100 = vmatmul.bf16.gmra.mxu0 %v817
    %v1101 = vpop.f32.mrf.mxu0
    %v1102 = vadd.f32 %v739, %v1101
    %v1103 = vpop.f32.mrf.mxu0
    %v1104 = vadd.f32 %v739, %v1103
    %1105 = vmatmul.bf16.gmra.mxu0 %v821
    %v1106 = vpop.f32.mrf.mxu0
    %v1107 = vadd.f32 %v739, %v1106
    %v1108 = vpop.f32.mrf.mxu0
    %v1109 = vadd.f32 %v739, %v1108
    %1110 = vmatmul.bf16.gmra.mxu0 %v825
    %v1111 = vpop.f32.mrf.mxu0
    %v1112 = vadd.f32 %v739, %v1111
    %v1113 = vpop.f32.mrf.mxu0
    %v1114 = vadd.f32 %v739, %v1113
    %1115 = vmatmul.bf16.gmra.mxu0 %v829
    %v1116 = vpop.f32.mrf.mxu0
    %v1117 = vadd.f32 %v739, %v1116
    %v1118 = vpop.f32.mrf.mxu0
    %v1119 = vadd.f32 %v739, %v1118
    %1120 = vmatmul.bf16.gmra.mxu0 %v833
    %v1121 = vpop.f32.mrf.mxu0
    %v1122 = vadd.f32 %v739, %v1121
    %v1123 = vpop.f32.mrf.mxu0
    %v1124 = vadd.f32 %v739, %v1123
    %1125 = vmatmul.bf16.gmra.mxu0 %v837
    %v1126 = vpop.f32.mrf.mxu0
    %v1127 = vadd.f32 %v739, %v1126
    %v1128 = vpop.f32.mrf.mxu0
    %v1129 = vadd.f32 %v739, %v1128
    %1130 = vmatmul.bf16.gmra.mxu0 %v841
    %v1131 = vpop.f32.mrf.mxu0
    %v1132 = vadd.f32 %v739, %v1131
    %v1133 = vpop.f32.mrf.mxu0
    %v1134 = vadd.f32 %v739, %v1133
    %1135 = vmatmul.bf16.gmra.mxu0 %v845
    %v1136 = vpop.f32.mrf.mxu0
    %v1137 = vadd.f32 %v739, %v1136
    %v1138 = vpop.f32.mrf.mxu0
    %v1139 = vadd.f32 %v739, %v1138
    %1140 = vmatmul.bf16.gmra.mxu0 %v849
    %v1141 = vpop.f32.mrf.mxu0
    %v1142 = vadd.f32 %v739, %v1141
    %v1143 = vpop.f32.mrf.mxu0
    %v1144 = vadd.f32 %v739, %v1143
    %1145 = vmatmul.bf16.gmra.mxu0 %v853
    %v1146 = vpop.f32.mrf.mxu0
    %v1147 = vadd.f32 %v739, %v1146
    %v1148 = vpop.f32.mrf.mxu0
    %v1149 = vadd.f32 %v739, %v1148
    %1150 = vmatmul.bf16.gmra.mxu0 %v857
    %v1151 = vpop.f32.mrf.mxu0
    %v1152 = vadd.f32 %v739, %v1151
    %v1153 = vpop.f32.mrf.mxu0
    %v1154 = vadd.f32 %v739, %v1153
    %1155 = vmatmul.bf16.gmra.mxu0 %v861
    %v1156 = vpop.f32.mrf.mxu0
    %v1157 = vadd.f32 %v739, %v1156
    %v1158 = vpop.f32.mrf.mxu0
    %v1159 = vadd.f32 %v739, %v1158
    %1160 = vdwg.mxu0
    %1161 = vmatpush.bf16.msra.mxu0 0
    %1162 = vmatpush.bf16.msra.mxu0 0
    %1163 = vmatpush.bf16.msra.mxu0 0
    %1164 = vmatpush.bf16.msra.mxu0 0
    %1165 = vmatpush.bf16.msra.mxu0 %v947
    %1166 = vmatpush.bf16.msra.mxu0 %v946
    %1167 = vmatpush.bf16.msra.mxu0 %v945
    %1168 = vmatpush.bf16.msra.mxu0 %v944
    %1169 = vmatmul.bf16.gmra.mxu0 %v961
    %v1170 = vpop.f32.mrf.mxu0
    %v1171 = vadd.f32 %v1042, %v1170
    %v1172 = vpop.f32.mrf.mxu0
    %v1173 = vadd.f32 %v1044, %v1172
    %1174 = vmatmul.bf16.gmra.mxu0 %v964
    %v1175 = vpop.f32.mrf.mxu0
    %v1176 = vadd.f32 %v1047, %v1175
    %v1177 = vpop.f32.mrf.mxu0
    %v1178 = vadd.f32 %v1049, %v1177
    %1179 = vmatmul.bf16.gmra.mxu0 %v967
    %v1180 = vpop.f32.mrf.mxu0
    %v1181 = vadd.f32 %v1052, %v1180
    %v1182 = vpop.f32.mrf.mxu0
    %v1183 = vadd.f32 %v1054, %v1182
    %1184 = vmatmul.bf16.gmra.mxu0 %v970
    %v1185 = vpop.f32.mrf.mxu0
    %v1186 = vadd.f32 %v1057, %v1185
    %v1187 = vpop.f32.mrf.mxu0
    %v1188 = vadd.f32 %v1059, %v1187
    %1189 = vmatmul.bf16.gmra.mxu0 %v973
    %v1190 = vpop.f32.mrf.mxu0
    %v1191 = vadd.f32 %v1062, %v1190
    %v1192 = vpop.f32.mrf.mxu0
    %v1193 = vadd.f32 %v1064, %v1192
    %1194 = vmatmul.bf16.gmra.mxu0 %v976
    %v1195 = vpop.f32.mrf.mxu0
    %v1196 = vadd.f32 %v1067, %v1195
    %v1197 = vpop.f32.mrf.mxu0
    %v1198 = vadd.f32 %v1069, %v1197
    %1199 = vmatmul.bf16.gmra.mxu0 %v979
    %v1200 = vpop.f32.mrf.mxu0
    %v1201 = vadd.f32 %v1072, %v1200
    %v1202 = vpop.f32.mrf.mxu0
    %v1203 = vadd.f32 %v1074, %v1202
    %1204 = vmatmul.bf16.gmra.mxu0 %v982
    %v1205 = vpop.f32.mrf.mxu0
    %v1206 = vadd.f32 %v1077, %v1205
    %v1207 = vpop.f32.mrf.mxu0
    %v1208 = vadd.f32 %v1079, %v1207
    %1209 = vmatmul.bf16.gmra.mxu0 %v985
    %v1210 = vpop.f32.mrf.mxu0
    %v1211 = vadd.f32 %v1082, %v1210
    %v1212 = vpop.f32.mrf.mxu0
    %v1213 = vadd.f32 %v1084, %v1212
    %1214 = vmatmul.bf16.gmra.mxu0 %v988
    %v1215 = vpop.f32.mrf.mxu0
    %v1216 = vadd.f32 %v1087, %v1215
    %v1217 = vpop.f32.mrf.mxu0
    %v1218 = vadd.f32 %v1089, %v1217
    %1219 = vmatmul.bf16.gmra.mxu0 %v991
    %v1220 = vpop.f32.mrf.mxu0
    %v1221 = vadd.f32 %v1092, %v1220
    %v1222 = vpop.f32.mrf.mxu0
    %v1223 = vadd.f32 %v1094, %v1222
    %1224 = vmatmul.bf16.gmra.mxu0 %v994
    %v1225 = vpop.f32.mrf.mxu0
    %v1226 = vadd.f32 %v1097, %v1225
    %v1227 = vpop.f32.mrf.mxu0
    %v1228 = vadd.f32 %v1099, %v1227
    %1229 = vmatmul.bf16.gmra.mxu0 %v997
    %v1230 = vpop.f32.mrf.mxu0
    %v1231 = vadd.f32 %v1102, %v1230
    %v1232 = vpop.f32.mrf.mxu0
    %v1233 = vadd.f32 %v1104, %v1232
    %1234 = vmatmul.bf16.gmra.mxu0 %v1000
    %v1235 = vpop.f32.mrf.mxu0
    %v1236 = vadd.f32 %v1107, %v1235
    %v1237 = vpop.f32.mrf.mxu0
    %v1238 = vadd.f32 %v1109, %v1237
    %1239 = vmatmul.bf16.gmra.mxu0 %v1003
    %v1240 = vpop.f32.mrf.mxu0
    %v1241 = vadd.f32 %v1112, %v1240
    %v1242 = vpop.f32.mrf.mxu0
    %v1243 = vadd.f32 %v1114, %v1242
    %1244 = vmatmul.bf16.gmra.mxu0 %v1006
    %v1245 = vpop.f32.mrf.mxu0
    %v1246 = vadd.f32 %v1117, %v1245
    %v1247 = vpop.f32.mrf.mxu0
    %v1248 = vadd.f32 %v1119, %v1247
    %1249 = vmatmul.bf16.gmra.mxu0 %v1009
    %v1250 = vpop.f32.mrf.mxu0
    %v1251 = vadd.f32 %v1122, %v1250
    %v1252 = vpop.f32.mrf.mxu0
    %v1253 = vadd.f32 %v1124, %v1252
    %1254 = vmatmul.bf16.gmra.mxu0 %v1012
    %v1255 = vpop.f32.mrf.mxu0
    %v1256 = vadd.f32 %v1127, %v1255
    %v1257 = vpop.f32.mrf.mxu0
    %v1258 = vadd.f32 %v1129, %v1257
    %1259 = vmatmul.bf16.gmra.mxu0 %v1015
    %v1260 = vpop.f32.mrf.mxu0
    %v1261 = vadd.f32 %v1132, %v1260
    %v1262 = vpop.f32.mrf.mxu0
    %v1263 = vadd.f32 %v1134, %v1262
    %1264 = vmatmul.bf16.gmra.mxu0 %v1018
    %v1265 = vpop.f32.mrf.mxu0
    %v1266 = vadd.f32 %v1137, %v1265
    %v1267 = vpop.f32.mrf.mxu0
    %v1268 = vadd.f32 %v1139, %v1267
    %1269 = vmatmul.bf16.gmra.mxu0 %v1021
    %v1270 = vpop.f32.mrf.mxu0
    %v1271 = vadd.f32 %v1142, %v1270
    %v1272 = vpop.f32.mrf.mxu0
    %v1273 = vadd.f32 %v1144, %v1272
    %1274 = vmatmul.bf16.gmra.mxu0 %v1024
    %v1275 = vpop.f32.mrf.mxu0
    %v1276 = vadd.f32 %v1147, %v1275
    %v1277 = vpop.f32.mrf.mxu0
    %v1278 = vadd.f32 %v1149, %v1277
    %1279 = vmatmul.bf16.gmra.mxu0 %v1027
    %v1280 = vpop.f32.mrf.mxu0
    %v1281 = vadd.f32 %v1152, %v1280
    %v1282 = vpop.f32.mrf.mxu0
    %v1283 = vadd.f32 %v1154, %v1282
    %1284 = vmatmul.bf16.gmra.mxu0 %v1030
    %v1285 = vpop.f32.mrf.mxu0
    %v1286 = vadd.f32 %v1157, %v1285
    %v1287 = vpop.f32.mrf.mxu0
    %v1288 = vadd.f32 %v1159, %v1287
    %1289 = vdwg.mxu0
    %v1290 = vmax.f32 %v1171, 0.0
    %v1291 = vmax.f32 %v1173, 0.0
    %v1292 = vmax.f32 %v1176, 0.0
    %v1293 = vmax.f32 %v1178, 0.0
    %v1294 = vmax.f32 %v1181, 0.0
    %v1295 = vmax.f32 %v1183, 0.0
    %v1296 = vmax.f32 %v1186, 0.0
    %v1297 = vmax.f32 %v1188, 0.0
    %v1298 = vmax.f32 %v1191, 0.0
    %v1299 = vmax.f32 %v1193, 0.0
    %v1300 = vmax.f32 %v1196, 0.0
    %v1301 = vmax.f32 %v1198, 0.0
    %v1302 = vmax.f32 %v1201, 0.0
    %v1303 = vmax.f32 %v1203, 0.0
    %v1304 = vmax.f32 %v1206, 0.0
    %v1305 = vmax.f32 %v1208, 0.0
    %v1306 = vmax.f32 %v1211, 0.0
    %v1307 = vmax.f32 %v1213, 0.0
    %v1308 = vmax.f32 %v1216, 0.0
    %v1309 = vmax.f32 %v1218, 0.0
    %v1310 = vmax.f32 %v1221, 0.0
    %v1311 = vmax.f32 %v1223, 0.0
    %v1312 = vmax.f32 %v1226, 0.0
    %v1313 = vmax.f32 %v1228, 0.0
    %v1314 = vmax.f32 %v1231, 0.0
    %v1315 = vmax.f32 %v1233, 0.0
    %v1316 = vmax.f32 %v1236, 0.0
    %v1317 = vmax.f32 %v1238, 0.0
    %v1318 = vmax.f32 %v1241, 0.0
    %v1319 = vmax.f32 %v1243, 0.0
    %v1320 = vmax.f32 %v1246, 0.0
    %v1321 = vmax.f32 %v1248, 0.0
    %v1322 = vmax.f32 %v1251, 0.0
    %v1323 = vmax.f32 %v1253, 0.0
    %v1324 = vmax.f32 %v1256, 0.0
    %v1325 = vmax.f32 %v1258, 0.0
    %v1326 = vmax.f32 %v1261, 0.0
    %v1327 = vmax.f32 %v1263, 0.0
    %v1328 = vmax.f32 %v1266, 0.0
    %v1329 = vmax.f32 %v1268, 0.0
    %v1330 = vmax.f32 %v1271, 0.0
    %v1331 = vmax.f32 %v1273, 0.0
    %v1332 = vmax.f32 %v1276, 0.0
    %v1333 = vmax.f32 %v1278, 0.0
    %v1334 = vmax.f32 %v1281, 0.0
    %v1335 = vmax.f32 %v1283, 0.0
    %v1336 = vmax.f32 %v1286, 0.0
    %v1337 = vmax.f32 %v1288, 0.0
    %v1338 = vpack.c.bf16 %v1291, %v1290
    %v1339 = vpack.c.bf16 %v1293, %v1292
    %v1340 = vpack.c.bf16 %v1295, %v1294
    %v1341 = vpack.c.bf16 %v1297, %v1296
    %v1342 = vpack.c.bf16 %v1299, %v1298
    %v1343 = vpack.c.bf16 %v1301, %v1300
    %v1344 = vpack.c.bf16 %v1303, %v1302
    %v1345 = vpack.c.bf16 %v1305, %v1304
    %v1346 = vpack.c.bf16 %v1307, %v1306
    %v1347 = vpack.c.bf16 %v1309, %v1308
    %v1348 = vpack.c.bf16 %v1311, %v1310
    %v1349 = vpack.c.bf16 %v1313, %v1312
    %v1350 = vpack.c.bf16 %v1315, %v1314
    %v1351 = vpack.c.bf16 %v1317, %v1316
    %v1352 = vpack.c.bf16 %v1319, %v1318
    %v1353 = vpack.c.bf16 %v1321, %v1320
    %v1354 = vpack.c.bf16 %v1323, %v1322
    %v1355 = vpack.c.bf16 %v1325, %v1324
    %v1356 = vpack.c.bf16 %v1327, %v1326
    %v1357 = vpack.c.bf16 %v1329, %v1328
    %v1358 = vpack.c.bf16 %v1331, %v1330
    %v1359 = vpack.c.bf16 %v1333, %v1332
    %v1360 = vpack.c.bf16 %v1335, %v1334
    %v1361 = vpack.c.bf16 %v1337, %v1336
    %v1362 = vld [vmem:[%s2 + $0x60] sm:$0xf]
    %v1363 = vld [vmem:[%s2 + $0x64] sm:$0xf]
    %v1364 = vld [vmem:[%s2 + $0x68] sm:$0xf]
    %v1365 = vld [vmem:[%s2 + $0x6c] sm:$0xf]
    %v1366 = vld [vmem:[%s2 + $0x70] sm:$0xf]
    %v1367 = vld [vmem:[%s2 + $0x74] sm:$0xf]
    %v1368 = vld [vmem:[%s2 + $0x78] sm:$0xf]
    %v1369 = vld [vmem:[%s2 + $0x7c] sm:$0xf]
    %v1370 = vld [vmem:[%s3 + $0x8] sm:$0x1]
    %v1371 = vperm.slane %v1370, 0
    %v1380 = vunpack.c.l.b16 %v1362
    %v1381 = vunpack.c.l.b16 %v1363
    %v1382 = vunpack.c.l.b16 %v1364
    %v1383 = vunpack.c.l.b16 %v1365
    %v1384 = vunpack.c.l.b16 %v1366
    %v1385 = vunpack.c.l.b16 %v1367
    %v1386 = vunpack.c.l.b16 %v1368
    %v1387 = vunpack.c.l.b16 %v1369
    %v1388 = vpack.c.b16 %v1381, %v1380
    %v1389 = vpack.c.b16 %v1383, %v1382
    %v1390 = vpack.c.b16 %v1385, %v1384
    %v1391 = vpack.c.b16 %v1387, %v1386
    %v1397 = vsel %vm662, %v1338, 0
    %v1400 = vsel %vm662, %v1339, 0
    %v1403 = vsel %vm662, %v1340, 0
    %v1406 = vsel %vm662, %v1341, 0
    %v1409 = vsel %vm662, %v1342, 0
    %v1412 = vsel %vm662, %v1343, 0
    %v1415 = vsel %vm662, %v1344, 0
    %v1418 = vsel %vm662, %v1345, 0
    %v1421 = vsel %vm662, %v1346, 0
    %v1424 = vsel %vm662, %v1347, 0
    %v1427 = vsel %vm662, %v1348, 0
    %v1430 = vsel %vm662, %v1349, 0
    %v1433 = vsel %vm662, %v1350, 0
    %v1436 = vsel %vm662, %v1351, 0
    %v1439 = vsel %vm662, %v1352, 0
    %v1442 = vsel %vm662, %v1353, 0
    %v1445 = vsel %vm662, %v1354, 0
    %v1448 = vsel %vm662, %v1355, 0
    %v1451 = vsel %vm662, %v1356, 0
    %v1454 = vsel %vm662, %v1357, 0
    %v1457 = vsel %vm662, %v1358, 0
    %v1460 = vsel %vm662, %v1359, 0
    %v1463 = vsel %vm662, %v1360, 0
    %v1466 = vsel %vm662, %v1361, 0
    %1468 = vmatpush.bf16.msra.mxu0 0
    %1469 = vmatpush.bf16.msra.mxu0 0
    %1470 = vmatpush.bf16.msra.mxu0 0
    %1471 = vmatpush.bf16.msra.mxu0 0
    %1472 = vmatpush.bf16.msra.mxu0 %v1391
    %1473 = vmatpush.bf16.msra.mxu0 %v1390
    %1474 = vmatpush.bf16.msra.mxu0 %v1389
    %1475 = vmatpush.bf16.msra.mxu0 %v1388
    %1476 = vmatmul.bf16.gmra.mxu0 %v1397
    %v1477 = vpop.f32.mrf.mxu0
    %v1478 = vadd.f32 %v1371, %v1477
    %v1479 = vpop.f32.mrf.mxu0
    %v1480 = vadd.f32 %v1371, %v1479
    %1481 = vmatmul.bf16.gmra.mxu0 %v1400
    %v1482 = vpop.f32.mrf.mxu0
    %v1483 = vadd.f32 %v1371, %v1482
    %v1484 = vpop.f32.mrf.mxu0
    %v1485 = vadd.f32 %v1371, %v1484
    %1486 = vmatmul.bf16.gmra.mxu0 %v1403
    %v1487 = vpop.f32.mrf.mxu0
    %v1488 = vadd.f32 %v1371, %v1487
    %v1489 = vpop.f32.mrf.mxu0
    %v1490 = vadd.f32 %v1371, %v1489
    %1491 = vmatmul.bf16.gmra.mxu0 %v1406
    %v1492 = vpop.f32.mrf.mxu0
    %v1493 = vadd.f32 %v1371, %v1492
    %v1494 = vpop.f32.mrf.mxu0
    %v1495 = vadd.f32 %v1371, %v1494
    %1496 = vmatmul.bf16.gmra.mxu0 %v1409
    %v1497 = vpop.f32.mrf.mxu0
    %v1498 = vadd.f32 %v1371, %v1497
    %v1499 = vpop.f32.mrf.mxu0
    %v1500 = vadd.f32 %v1371, %v1499
    %1501 = vmatmul.bf16.gmra.mxu0 %v1412
    %v1502 = vpop.f32.mrf.mxu0
    %v1503 = vadd.f32 %v1371, %v1502
    %v1504 = vpop.f32.mrf.mxu0
    %v1505 = vadd.f32 %v1371, %v1504
    %1506 = vmatmul.bf16.gmra.mxu0 %v1415
    %v1507 = vpop.f32.mrf.mxu0
    %v1508 = vadd.f32 %v1371, %v1507
    %v1509 = vpop.f32.mrf.mxu0
    %v1510 = vadd.f32 %v1371, %v1509
    %1511 = vmatmul.bf16.gmra.mxu0 %v1418
    %v1512 = vpop.f32.mrf.mxu0
    %v1513 = vadd.f32 %v1371, %v1512
    %v1514 = vpop.f32.mrf.mxu0
    %v1515 = vadd.f32 %v1371, %v1514
    %1516 = vmatmul.bf16.gmra.mxu0 %v1421
    %v1517 = vpop.f32.mrf.mxu0
    %v1518 = vadd.f32 %v1371, %v1517
    %v1519 = vpop.f32.mrf.mxu0
    %v1520 = vadd.f32 %v1371, %v1519
    %1521 = vmatmul.bf16.gmra.mxu0 %v1424
    %v1522 = vpop.f32.mrf.mxu0
    %v1523 = vadd.f32 %v1371, %v1522
    %v1524 = vpop.f32.mrf.mxu0
    %v1525 = vadd.f32 %v1371, %v1524
    %1526 = vmatmul.bf16.gmra.mxu0 %v1427
    %v1527 = vpop.f32.mrf.mxu0
    %v1528 = vadd.f32 %v1371, %v1527
    %v1529 = vpop.f32.mrf.mxu0
    %v1530 = vadd.f32 %v1371, %v1529
    %1531 = vmatmul.bf16.gmra.mxu0 %v1430
    %v1532 = vpop.f32.mrf.mxu0
    %v1533 = vadd.f32 %v1371, %v1532
    %v1534 = vpop.f32.mrf.mxu0
    %v1535 = vadd.f32 %v1371, %v1534
    %1536 = vmatmul.bf16.gmra.mxu0 %v1433
    %v1537 = vpop.f32.mrf.mxu0
    %v1538 = vadd.f32 %v1371, %v1537
    %v1539 = vpop.f32.mrf.mxu0
    %v1540 = vadd.f32 %v1371, %v1539
    %1541 = vmatmul.bf16.gmra.mxu0 %v1436
    %v1542 = vpop.f32.mrf.mxu0
    %v1543 = vadd.f32 %v1371, %v1542
    %v1544 = vpop.f32.mrf.mxu0
    %v1545 = vadd.f32 %v1371, %v1544
    %1546 = vmatmul.bf16.gmra.mxu0 %v1439
    %v1547 = vpop.f32.mrf.mxu0
    %v1548 = vadd.f32 %v1371, %v1547
    %v1549 = vpop.f32.mrf.mxu0
    %v1550 = vadd.f32 %v1371, %v1549
    %1551 = vmatmul.bf16.gmra.mxu0 %v1442
    %v1552 = vpop.f32.mrf.mxu0
    %v1553 = vadd.f32 %v1371, %v1552
    %v1554 = vpop.f32.mrf.mxu0
    %v1555 = vadd.f32 %v1371, %v1554
    %1556 = vmatmul.bf16.gmra.mxu0 %v1445
    %v1557 = vpop.f32.mrf.mxu0
    %v1558 = vadd.f32 %v1371, %v1557
    %v1559 = vpop.f32.mrf.mxu0
    %v1560 = vadd.f32 %v1371, %v1559
    %1561 = vmatmul.bf16.gmra.mxu0 %v1448
    %v1562 = vpop.f32.mrf.mxu0
    %v1563 = vadd.f32 %v1371, %v1562
    %v1564 = vpop.f32.mrf.mxu0
    %v1565 = vadd.f32 %v1371, %v1564
    %1566 = vmatmul.bf16.gmra.mxu0 %v1451
    %v1567 = vpop.f32.mrf.mxu0
    %v1568 = vadd.f32 %v1371, %v1567
    %v1569 = vpop.f32.mrf.mxu0
    %v1570 = vadd.f32 %v1371, %v1569
    %1571 = vmatmul.bf16.gmra.mxu0 %v1454
    %v1572 = vpop.f32.mrf.mxu0
    %v1573 = vadd.f32 %v1371, %v1572
    %v1574 = vpop.f32.mrf.mxu0
    %v1575 = vadd.f32 %v1371, %v1574
    %1576 = vmatmul.bf16.gmra.mxu0 %v1457
    %v1577 = vpop.f32.mrf.mxu0
    %v1578 = vadd.f32 %v1371, %v1577
    %v1579 = vpop.f32.mrf.mxu0
    %v1580 = vadd.f32 %v1371, %v1579
    %1581 = vmatmul.bf16.gmra.mxu0 %v1460
    %v1582 = vpop.f32.mrf.mxu0
    %v1583 = vadd.f32 %v1371, %v1582
    %v1584 = vpop.f32.mrf.mxu0
    %v1585 = vadd.f32 %v1371, %v1584
    %1586 = vmatmul.bf16.gmra.mxu0 %v1463
    %v1587 = vpop.f32.mrf.mxu0
    %v1588 = vadd.f32 %v1371, %v1587
    %v1589 = vpop.f32.mrf.mxu0
    %v1590 = vadd.f32 %v1371, %v1589
    %1591 = vmatmul.bf16.gmra.mxu0 %v1466
    %v1592 = vpop.f32.mrf.mxu0
    %v1593 = vadd.f32 %v1371, %v1592
    %v1594 = vpop.f32.mrf.mxu0
    %v1595 = vadd.f32 %v1371, %v1594
    %1596 = vdwg.mxu0
    %v1597 = vmax.f32 %v1478, 0.0
    %v1598 = vmax.f32 %v1480, 0.0
    %v1599 = vmax.f32 %v1483, 0.0
    %v1600 = vmax.f32 %v1485, 0.0
    %v1601 = vmax.f32 %v1488, 0.0
    %v1602 = vmax.f32 %v1490, 0.0
    %v1603 = vmax.f32 %v1493, 0.0
    %v1604 = vmax.f32 %v1495, 0.0
    %v1605 = vmax.f32 %v1498, 0.0
    %v1606 = vmax.f32 %v1500, 0.0
    %v1607 = vmax.f32 %v1503, 0.0
    %v1608 = vmax.f32 %v1505, 0.0
    %v1609 = vmax.f32 %v1508, 0.0
    %v1610 = vmax.f32 %v1510, 0.0
    %v1611 = vmax.f32 %v1513, 0.0
    %v1612 = vmax.f32 %v1515, 0.0
    %v1613 = vmax.f32 %v1518, 0.0
    %v1614 = vmax.f32 %v1520, 0.0
    %v1615 = vmax.f32 %v1523, 0.0
    %v1616 = vmax.f32 %v1525, 0.0
    %v1617 = vmax.f32 %v1528, 0.0
    %v1618 = vmax.f32 %v1530, 0.0
    %v1619 = vmax.f32 %v1533, 0.0
    %v1620 = vmax.f32 %v1535, 0.0
    %v1621 = vmax.f32 %v1538, 0.0
    %v1622 = vmax.f32 %v1540, 0.0
    %v1623 = vmax.f32 %v1543, 0.0
    %v1624 = vmax.f32 %v1545, 0.0
    %v1625 = vmax.f32 %v1548, 0.0
    %v1626 = vmax.f32 %v1550, 0.0
    %v1627 = vmax.f32 %v1553, 0.0
    %v1628 = vmax.f32 %v1555, 0.0
    %v1629 = vmax.f32 %v1558, 0.0
    %v1630 = vmax.f32 %v1560, 0.0
    %v1631 = vmax.f32 %v1563, 0.0
    %v1632 = vmax.f32 %v1565, 0.0
    %v1633 = vmax.f32 %v1568, 0.0
    %v1634 = vmax.f32 %v1570, 0.0
    %v1635 = vmax.f32 %v1573, 0.0
    %v1636 = vmax.f32 %v1575, 0.0
    %v1637 = vmax.f32 %v1578, 0.0
    %v1638 = vmax.f32 %v1580, 0.0
    %v1639 = vmax.f32 %v1583, 0.0
    %v1640 = vmax.f32 %v1585, 0.0
    %v1641 = vmax.f32 %v1588, 0.0
    %v1642 = vmax.f32 %v1590, 0.0
    %v1643 = vmax.f32 %v1593, 0.0
    %v1644 = vmax.f32 %v1595, 0.0
    %vm1645 = vcmp.lt.s32.totalorder %v158, 18
    %vm1646 = vcmp.lt.s32.totalorder %v159, 18
    %vm1647 = vcmp.lt.s32.totalorder %v160, 18
    %vm1648 = vcmp.lt.s32.totalorder %v161, 18
    %vm1649 = vcmp.lt.s32.totalorder %v162, 18
    %vm1650 = vcmp.lt.s32.totalorder %v163, 18
    %v1651 = vsel %vm1645, %v1597, 0.0
    %v1652 = vsel %vm1646, %v1598, 0.0
    %v1653 = vsel %vm1647, %v1599, 0.0
    %v1654 = vsel %vm1648, %v1600, 0.0
    %v1655 = vsel %vm1649, %v1601, 0.0
    %v1656 = vsel %vm1650, %v1602, 0.0
    %v1657 = vsel %vm1645, %v1603, 0.0
    %v1658 = vsel %vm1646, %v1604, 0.0
    %v1659 = vsel %vm1647, %v1605, 0.0
    %v1660 = vsel %vm1648, %v1606, 0.0
    %v1661 = vsel %vm1649, %v1607, 0.0
    %v1662 = vsel %vm1650, %v1608, 0.0
    %v1663 = vsel %vm1645, %v1609, 0.0
    %v1664 = vsel %vm1646, %v1610, 0.0
    %v1665 = vsel %vm1647, %v1611, 0.0
    %v1666 = vsel %vm1648, %v1612, 0.0
    %v1667 = vsel %vm1649, %v1613, 0.0
    %v1668 = vsel %vm1650, %v1614, 0.0
    %v1669 = vsel %vm1645, %v1615, 0.0
    %v1670 = vsel %vm1646, %v1616, 0.0
    %v1671 = vsel %vm1647, %v1617, 0.0
    %v1672 = vsel %vm1648, %v1618, 0.0
    %v1673 = vsel %vm1649, %v1619, 0.0
    %v1674 = vsel %vm1650, %v1620, 0.0
    %v1675 = vsel %vm1645, %v1621, 0.0
    %v1676 = vsel %vm1646, %v1622, 0.0
    %v1677 = vsel %vm1647, %v1623, 0.0
    %v1678 = vsel %vm1648, %v1624, 0.0
    %v1679 = vsel %vm1649, %v1625, 0.0
    %v1680 = vsel %vm1650, %v1626, 0.0
    %v1681 = vsel %vm1645, %v1627, 0.0
    %v1682 = vsel %vm1646, %v1628, 0.0
    %v1683 = vsel %vm1647, %v1629, 0.0
    %v1684 = vsel %vm1648, %v1630, 0.0
    %v1685 = vsel %vm1649, %v1631, 0.0
    %v1686 = vsel %vm1650, %v1632, 0.0
    %v1687 = vsel %vm1645, %v1633, 0.0
    %v1688 = vsel %vm1646, %v1634, 0.0
    %v1689 = vsel %vm1647, %v1635, 0.0
    %v1690 = vsel %vm1648, %v1636, 0.0
    %v1691 = vsel %vm1649, %v1637, 0.0
    %v1692 = vsel %vm1650, %v1638, 0.0
    %v1693 = vsel %vm1645, %v1639, 0.0
    %v1694 = vsel %vm1646, %v1640, 0.0
    %v1695 = vsel %vm1647, %v1641, 0.0
    %v1696 = vsel %vm1648, %v1642, 0.0
    %v1697 = vsel %vm1649, %v1643, 0.0
    %v1698 = vsel %vm1650, %v1644, 0.0
    %v1699 = vpack.c.bf16 %v1651, %v1651
    %v1700 = vpack.c.bf16 %v1652, %v1652
    %v1701 = vpack.c.bf16 %v1653, %v1653
    %v1702 = vpack.c.bf16 %v1654, %v1654
    %v1703 = vpack.c.bf16 %v1655, %v1655
    %v1704 = vpack.c.bf16 %v1656, %v1656
    %v1705 = vpack.c.bf16 %v1657, %v1657
    %v1706 = vpack.c.bf16 %v1658, %v1658
    %v1707 = vpack.c.bf16 %v1659, %v1659
    %v1708 = vpack.c.bf16 %v1660, %v1660
    %v1709 = vpack.c.bf16 %v1661, %v1661
    %v1710 = vpack.c.bf16 %v1662, %v1662
    %v1711 = vpack.c.bf16 %v1663, %v1663
    %v1712 = vpack.c.bf16 %v1664, %v1664
    %v1713 = vpack.c.bf16 %v1665, %v1665
    %v1714 = vpack.c.bf16 %v1666, %v1666
    %v1715 = vpack.c.bf16 %v1667, %v1667
    %v1716 = vpack.c.bf16 %v1668, %v1668
    %v1717 = vpack.c.bf16 %v1669, %v1669
    %v1718 = vpack.c.bf16 %v1670, %v1670
    %v1719 = vpack.c.bf16 %v1671, %v1671
    %v1720 = vpack.c.bf16 %v1672, %v1672
    %v1721 = vpack.c.bf16 %v1673, %v1673
    %v1722 = vpack.c.bf16 %v1674, %v1674
    %v1723 = vpack.c.bf16 %v1675, %v1675
    %v1724 = vpack.c.bf16 %v1676, %v1676
    %v1725 = vpack.c.bf16 %v1677, %v1677
    %v1726 = vpack.c.bf16 %v1678, %v1678
    %v1727 = vpack.c.bf16 %v1679, %v1679
    %v1728 = vpack.c.bf16 %v1680, %v1680
    %v1729 = vpack.c.bf16 %v1681, %v1681
    %v1730 = vpack.c.bf16 %v1682, %v1682
    %v1731 = vpack.c.bf16 %v1683, %v1683
    %v1732 = vpack.c.bf16 %v1684, %v1684
    %v1733 = vpack.c.bf16 %v1685, %v1685
    %v1734 = vpack.c.bf16 %v1686, %v1686
    %v1735 = vpack.c.bf16 %v1687, %v1687
    %v1736 = vpack.c.bf16 %v1688, %v1688
    %v1737 = vpack.c.bf16 %v1689, %v1689
    %v1738 = vpack.c.bf16 %v1690, %v1690
    %v1739 = vpack.c.bf16 %v1691, %v1691
    %v1740 = vpack.c.bf16 %v1692, %v1692
    %v1741 = vpack.c.bf16 %v1693, %v1693
    %v1742 = vpack.c.bf16 %v1694, %v1694
    %v1743 = vpack.c.bf16 %v1695, %v1695
    %v1744 = vpack.c.bf16 %v1696, %v1696
    %v1745 = vpack.c.bf16 %v1697, %v1697
    %v1746 = vpack.c.bf16 %v1698, %v1698
    %1747 = vst.msk [vmem:[#allocation2 + $0x8] sm:$0xf] %vm19, %v1699
    %1748 = vst.msk [vmem:[#allocation2 + $0xc] sm:$0xf] %vm19, %v1700
    %1749 = vst.msk [vmem:[#allocation2 + $0x10] sm:$0xf] %vm19, %v1701
    %1750 = vst.msk [vmem:[#allocation2 + $0x14] sm:$0xf] %vm19, %v1702
    %1751 = vst.msk [vmem:[#allocation2 + $0x18] sm:$0xf] %vm19, %v1703
    %1752 = vst.msk [vmem:[#allocation2 + $0x1c] sm:$0xf] %vm19, %v1704
    %1753 = vst.msk [vmem:[#allocation2 + $0x20] sm:$0xf] %vm19, %v1705
    %1754 = vst.msk [vmem:[#allocation2 + $0x24] sm:$0xf] %vm19, %v1706
    %1755 = vst.msk [vmem:[#allocation2 + $0x28] sm:$0xf] %vm19, %v1707
    %1756 = vst.msk [vmem:[#allocation2 + $0x2c] sm:$0xf] %vm19, %v1708
    %1757 = vst.msk [vmem:[#allocation2 + $0x30] sm:$0xf] %vm19, %v1709
    %1758 = vst.msk [vmem:[#allocation2 + $0x34] sm:$0xf] %vm19, %v1710
    %1759 = vst.msk [vmem:[#allocation2 + $0x38] sm:$0xf] %vm19, %v1711
    %1760 = vst.msk [vmem:[#allocation2 + $0x3c] sm:$0xf] %vm19, %v1712
    %1761 = vst.msk [vmem:[#allocation2 + $0x40] sm:$0xf] %vm19, %v1713
    %1762 = vst.msk [vmem:[#allocation2 + $0x44] sm:$0xf] %vm19, %v1714
    %1763 = vst.msk [vmem:[#allocation2 + $0x48] sm:$0xf] %vm19, %v1715
    %1764 = vst.msk [vmem:[#allocation2 + $0x4c] sm:$0xf] %vm19, %v1716
    %1765 = vst.msk [vmem:[#allocation2 + $0x50] sm:$0xf] %vm19, %v1717
    %1766 = vst.msk [vmem:[#allocation2 + $0x54] sm:$0xf] %vm19, %v1718
    %1767 = vst.msk [vmem:[#allocation2 + $0x58] sm:$0xf] %vm19, %v1719
    %1768 = vst.msk [vmem:[#allocation2 + $0x5c] sm:$0xf] %vm19, %v1720
    %1769 = vst.msk [vmem:[#allocation2 + $0x60] sm:$0xf] %vm19, %v1721
    %1770 = vst.msk [vmem:[#allocation2 + $0x64] sm:$0xf] %vm19, %v1722
    %1771 = vst.msk [vmem:[#allocation2 + $0x68] sm:$0xf] %vm19, %v1723
    %1772 = vst.msk [vmem:[#allocation2 + $0x6c] sm:$0xf] %vm19, %v1724
    %1773 = vst.msk [vmem:[#allocation2 + $0x70] sm:$0xf] %vm19, %v1725
    %1774 = vst.msk [vmem:[#allocation2 + $0x74] sm:$0xf] %vm19, %v1726
    %1775 = vst.msk [vmem:[#allocation2 + $0x78] sm:$0xf] %vm19, %v1727
    %1776 = vst.msk [vmem:[#allocation2 + $0x7c] sm:$0xf] %vm19, %v1728
    %1777 = vst.msk [vmem:[#allocation2 + $0x80] sm:$0xf] %vm19, %v1729
    %1778 = vst.msk [vmem:[#allocation2 + $0x84] sm:$0xf] %vm19, %v1730
    %1779 = vst.msk [vmem:[#allocation2 + $0x88] sm:$0xf] %vm19, %v1731
    %1780 = vst.msk [vmem:[#allocation2 + $0x8c] sm:$0xf] %vm19, %v1732
    %1781 = vst.msk [vmem:[#allocation2 + $0x90] sm:$0xf] %vm19, %v1733
    %1782 = vst.msk [vmem:[#allocation2 + $0x94] sm:$0xf] %vm19, %v1734
    %1783 = vst.msk [vmem:[#allocation2 + $0x98] sm:$0xf] %vm19, %v1735
    %1784 = vst.msk [vmem:[#allocation2 + $0x9c] sm:$0xf] %vm19, %v1736
    %1785 = vst.msk [vmem:[#allocation2 + $0xa0] sm:$0xf] %vm19, %v1737
    %1786 = vst.msk [vmem:[#allocation2 + $0xa4] sm:$0xf] %vm19, %v1738
    %1787 = vst.msk [vmem:[#allocation2 + $0xa8] sm:$0xf] %vm19, %v1739
    %1788 = vst.msk [vmem:[#allocation2 + $0xac] sm:$0xf] %vm19, %v1740
    %1789 = vst.msk [vmem:[#allocation2 + $0xb0] sm:$0xf] %vm19, %v1741
    %1790 = vst.msk [vmem:[#allocation2 + $0xb4] sm:$0xf] %vm19, %v1742
    %1791 = vst.msk [vmem:[#allocation2 + $0xb8] sm:$0xf] %vm19, %v1743
    %1792 = vst.msk [vmem:[#allocation2 + $0xbc] sm:$0xf] %vm19, %v1744
    %1793 = vst.msk [vmem:[#allocation2 + $0xc0] sm:$0xf] %vm19, %v1745
    %1794 = vst.msk [vmem:[#allocation2 + $0xc4] sm:$0xf] %vm19, %v1746
    %v1795 = vld [vmem:[#allocation2 + $0x4] sm:$0xc]
    %v1796 = vld [vmem:[#allocation2 + $0x8] sm:$0xf]
    %v1797 = vld [vmem:[#allocation2 + $0xc] sm:$0xf]
    %v1798 = vld [vmem:[#allocation2 + $0x10] sm:$0xf]
    %v1799 = vld [vmem:[#allocation2 + $0x14] sm:$0xf]
    %v1800 = vld [vmem:[#allocation2 + $0x18] sm:$0xf]
    %v1801 = vld [vmem:[#allocation2 + $0x1c] sm:$0xf]
    %v1802 = vld [vmem:[#allocation2 + $0x20] sm:$0xf]
    %v1803 = vld [vmem:[#allocation2 + $0x24] sm:$0xf]
    %v1804 = vld [vmem:[#allocation2 + $0x28] sm:$0xf]
    %v1805 = vld [vmem:[#allocation2 + $0x2c] sm:$0xf]
    %v1806 = vld [vmem:[#allocation2 + $0x30] sm:$0xf]
    %v1807 = vld [vmem:[#allocation2 + $0x34] sm:$0xf]
    %v1808 = vld [vmem:[#allocation2 + $0x38] sm:$0xf]
    %v1809 = vld [vmem:[#allocation2 + $0x3c] sm:$0xf]
    %v1810 = vld [vmem:[#allocation2 + $0x40] sm:$0xf]
    %v1811 = vld [vmem:[#allocation2 + $0x44] sm:$0xf]
    %v1812 = vld [vmem:[#allocation2 + $0x48] sm:$0xf]
    %v1813 = vld [vmem:[#allocation2 + $0x4c] sm:$0xf]
    %v1814 = vld [vmem:[#allocation2 + $0x50] sm:$0xf]
    %v1815 = vld [vmem:[#allocation2 + $0x54] sm:$0xf]
    %v1816 = vld [vmem:[#allocation2 + $0x58] sm:$0xf]
    %v1817 = vld [vmem:[#allocation2 + $0x5c] sm:$0xf]
    %v1818 = vld [vmem:[#allocation2 + $0x60] sm:$0xf]
    %v1819 = vld [vmem:[#allocation2 + $0x64] sm:$0xf]
    %v1820 = vld [vmem:[#allocation2 + $0x68] sm:$0xf]
    %v1821 = vld [vmem:[#allocation2 + $0x6c] sm:$0xf]
    %v1822 = vld [vmem:[#allocation2 + $0x70] sm:$0xf]
    %v1823 = vld [vmem:[#allocation2 + $0x74] sm:$0xf]
    %v1824 = vld [vmem:[#allocation2 + $0x78] sm:$0xf]
    %v1825 = vld [vmem:[#allocation2 + $0x7c] sm:$0xf]
    %v1826 = vld [vmem:[#allocation2 + $0x80] sm:$0xf]
    %v1827 = vld [vmem:[#allocation2 + $0x84] sm:$0xf]
    %v1828 = vld [vmem:[#allocation2 + $0x88] sm:$0xf]
    %v1829 = vld [vmem:[#allocation2 + $0x8c] sm:$0xf]
    %v1830 = vld [vmem:[#allocation2 + $0x90] sm:$0xf]
    %v1831 = vld [vmem:[#allocation2 + $0x94] sm:$0xf]
    %v1832 = vld [vmem:[#allocation2 + $0x98] sm:$0xf]
    %v1833 = vld [vmem:[#allocation2 + $0x9c] sm:$0xf]
    %v1834 = vld [vmem:[#allocation2 + $0xa0] sm:$0xf]
    %v1835 = vld [vmem:[#allocation2 + $0xa4] sm:$0xf]
    %v1836 = vld [vmem:[#allocation2 + $0xa8] sm:$0xf]
    %v1837 = vld [vmem:[#allocation2 + $0xac] sm:$0xf]
    %v1838 = vld [vmem:[#allocation2 + $0xb0] sm:$0xf]
    %v1839 = vld [vmem:[#allocation2 + $0xb4] sm:$0xf]
    %v1840 = vld [vmem:[#allocation2 + $0xb8] sm:$0xf]
    %v1841 = vld [vmem:[#allocation2 + $0xbc] sm:$0xf]
    %v1842 = vld [vmem:[#allocation2 + $0xc0] sm:$0xf]
    %v1843 = vld [vmem:[#allocation2 + $0xc4] sm:$0x3]
    %v1844 = vld [vmem:[#allocation2 + $0x4] sm:$0x8]
    %v1845 = vld [vmem:[#allocation2 + $0xc4] sm:$0x7]
    %v1846 = vld [vmem:[#allocation2 + $0xc4] sm:$0xf]
    %v1896 = vunpack.c.l.b16 %v1795
    %v1897 = vunpack.c.l.b16 %v1796
    %v1898 = vunpack.c.l.b16 %v1797
    %v1899 = vunpack.c.l.b16 %v1798
    %v1900 = vunpack.c.l.b16 %v1799
    %v1901 = vunpack.c.l.b16 %v1800
    %v1902 = vunpack.c.l.b16 %v1801
    %v1903 = vunpack.c.l.b16 %v1802
    %v1904 = vunpack.c.l.b16 %v1803
    %v1905 = vunpack.c.l.b16 %v1804
    %v1906 = vunpack.c.l.b16 %v1805
    %v1907 = vunpack.c.l.b16 %v1806
    %v1908 = vunpack.c.l.b16 %v1807
    %v1909 = vunpack.c.l.b16 %v1808
    %v1910 = vunpack.c.l.b16 %v1809
    %v1911 = vunpack.c.l.b16 %v1810
    %v1912 = vunpack.c.l.b16 %v1811
    %v1913 = vunpack.c.l.b16 %v1812
    %v1914 = vunpack.c.l.b16 %v1813
    %v1915 = vunpack.c.l.b16 %v1814
    %v1916 = vunpack.c.l.b16 %v1815
    %v1917 = vunpack.c.l.b16 %v1816
    %v1918 = vunpack.c.l.b16 %v1817
    %v1919 = vunpack.c.l.b16 %v1818
    %v1920 = vunpack.c.l.b16 %v1819
    %v1921 = vunpack.c.l.b16 %v1820
    %v1922 = vunpack.c.l.b16 %v1821
    %v1923 = vunpack.c.l.b16 %v1822
    %v1924 = vunpack.c.l.b16 %v1823
    %v1925 = vunpack.c.l.b16 %v1824
    %v1926 = vunpack.c.l.b16 %v1825
    %v1927 = vunpack.c.l.b16 %v1826
    %v1928 = vunpack.c.l.b16 %v1827
    %v1929 = vunpack.c.l.b16 %v1828
    %v1930 = vunpack.c.l.b16 %v1829
    %v1931 = vunpack.c.l.b16 %v1830
    %v1932 = vunpack.c.l.b16 %v1831
    %v1933 = vunpack.c.l.b16 %v1832
    %v1934 = vunpack.c.l.b16 %v1833
    %v1935 = vunpack.c.l.b16 %v1834
    %v1936 = vunpack.c.l.b16 %v1835
    %v1937 = vunpack.c.l.b16 %v1836
    %v1938 = vunpack.c.l.b16 %v1837
    %v1939 = vunpack.c.l.b16 %v1838
    %v1940 = vunpack.c.l.b16 %v1839
    %v1941 = vunpack.c.l.b16 %v1840
    %v1942 = vunpack.c.l.b16 %v1841
    %v1943 = vunpack.c.l.b16 %v1842
    %v1944 = vunpack.c.l.b16 %v1843
    %v1945 = vpack.c.b16 %v1897, %v1896
    %v1946 = vpack.c.b16 %v1899, %v1898
    %v1947 = vpack.c.b16 %v1901, %v1900
    %v1948 = vpack.c.b16 %v1903, %v1902
    %v1949 = vpack.c.b16 %v1905, %v1904
    %v1950 = vpack.c.b16 %v1907, %v1906
    %v1951 = vpack.c.b16 %v1909, %v1908
    %v1952 = vpack.c.b16 %v1911, %v1910
    %v1953 = vpack.c.b16 %v1913, %v1912
    %v1954 = vpack.c.b16 %v1915, %v1914
    %v1955 = vpack.c.b16 %v1917, %v1916
    %v1956 = vpack.c.b16 %v1919, %v1918
    %v1957 = vpack.c.b16 %v1921, %v1920
    %v1958 = vpack.c.b16 %v1923, %v1922
    %v1959 = vpack.c.b16 %v1925, %v1924
    %v1960 = vpack.c.b16 %v1927, %v1926
    %v1961 = vpack.c.b16 %v1929, %v1928
    %v1962 = vpack.c.b16 %v1931, %v1930
    %v1963 = vpack.c.b16 %v1933, %v1932
    %v1964 = vpack.c.b16 %v1935, %v1934
    %v1965 = vpack.c.b16 %v1937, %v1936
    %v1966 = vpack.c.b16 %v1939, %v1938
    %v1967 = vpack.c.b16 %v1941, %v1940
    %v1968 = vpack.c.b16 %v1943, %v1942
    %v1969 = vpack.c.b16 %v1944, %v1944
    %v1972 = vunpack.c.l.b16 %v1844
    %v1973 = vunpack.c.l.b16 %v1845
    %v1974 = vpack.c.b16 %v1897, %v1972
    %v1975 = vpack.c.b16 %v1973, %v1973
    %vm1976 = vcmask 1046528
    %v1977 = vrot.slane %v1974, 1
    %v1978 = vrot.slane %v1946, 1
    %v1979 = vsel %vm1976, %v1977, %v1978
    %v1980 = vrot.slane %v1947, 1
    %v1981 = vsel %vm1976, %v1978, %v1980
    %v1982 = vrot.slane %v1948, 1
    %v1983 = vsel %vm1976, %v1980, %v1982
    %v1984 = vrot.slane %v1949, 1
    %v1985 = vsel %vm1976, %v1982, %v1984
    %v1986 = vrot.slane %v1950, 1
    %v1987 = vsel %vm1976, %v1984, %v1986
    %v1988 = vrot.slane %v1951, 1
    %v1989 = vsel %vm1976, %v1986, %v1988
    %v1990 = vrot.slane %v1952, 1
    %v1991 = vsel %vm1976, %v1988, %v1990
    %v1992 = vrot.slane %v1953, 1
    %v1993 = vsel %vm1976, %v1990, %v1992
    %v1994 = vrot.slane %v1954, 1
    %v1995 = vsel %vm1976, %v1992, %v1994
    %v1996 = vrot.slane %v1955, 1
    %v1997 = vsel %vm1976, %v1994, %v1996
    %v1998 = vrot.slane %v1956, 1
    %v1999 = vsel %vm1976, %v1996, %v1998
    %v2000 = vrot.slane %v1957, 1
    %v2001 = vsel %vm1976, %v1998, %v2000
    %v2002 = vrot.slane %v1958, 1
    %v2003 = vsel %vm1976, %v2000, %v2002
    %v2004 = vrot.slane %v1959, 1
    %v2005 = vsel %vm1976, %v2002, %v2004
    %v2006 = vrot.slane %v1960, 1
    %v2007 = vsel %vm1976, %v2004, %v2006
    %v2008 = vrot.slane %v1961, 1
    %v2009 = vsel %vm1976, %v2006, %v2008
    %v2010 = vrot.slane %v1962, 1
    %v2011 = vsel %vm1976, %v2008, %v2010
    %v2012 = vrot.slane %v1963, 1
    %v2013 = vsel %vm1976, %v2010, %v2012
    %v2014 = vrot.slane %v1964, 1
    %v2015 = vsel %vm1976, %v2012, %v2014
    %v2016 = vrot.slane %v1965, 1
    %v2017 = vsel %vm1976, %v2014, %v2016
    %v2018 = vrot.slane %v1966, 1
    %v2019 = vsel %vm1976, %v2016, %v2018
    %v2020 = vrot.slane %v1967, 1
    %v2021 = vsel %vm1976, %v2018, %v2020
    %v2022 = vrot.slane %v1968, 1
    %v2023 = vsel %vm1976, %v2020, %v2022
    %v2024 = vrot.slane %v1975, 1
    %v2025 = vsel %vm1976, %v2022, %v2024
    %2026 = vrot.lane.b32.xlu0 %v1979, 64
    %v2027 = vpop.permute.xlu0 %2026
    %2028 = vrot.lane.b32.xlu0 %v1981, 64
    %v2029 = vpop.permute.xlu0 %2028
    %2030 = vrot.lane.b32.xlu0 %v1983, 64
    %v2031 = vpop.permute.xlu0 %2030
    %2032 = vrot.lane.b32.xlu0 %v1985, 64
    %v2033 = vpop.permute.xlu0 %2032
    %2034 = vrot.lane.b32.xlu0 %v1987, 64
    %v2035 = vpop.permute.xlu0 %2034
    %2036 = vrot.lane.b32.xlu0 %v1989, 64
    %v2037 = vpop.permute.xlu0 %2036
    %2038 = vrot.lane.b32.xlu0 %v1991, 64
    %v2039 = vpop.permute.xlu0 %2038
    %2040 = vrot.lane.b32.xlu0 %v1993, 64
    %v2041 = vpop.permute.xlu0 %2040
    %2042 = vrot.lane.b32.xlu0 %v1995, 64
    %v2043 = vpop.permute.xlu0 %2042
    %2044 = vrot.lane.b32.xlu0 %v1997, 64
    %v2045 = vpop.permute.xlu0 %2044
    %2046 = vrot.lane.b32.xlu0 %v1999, 64
    %v2047 = vpop.permute.xlu0 %2046
    %2048 = vrot.lane.b32.xlu0 %v2001, 64
    %v2049 = vpop.permute.xlu0 %2048
    %2050 = vrot.lane.b32.xlu0 %v2003, 64
    %v2051 = vpop.permute.xlu0 %2050
    %2052 = vrot.lane.b32.xlu0 %v2005, 64
    %v2053 = vpop.permute.xlu0 %2052
    %2054 = vrot.lane.b32.xlu0 %v2007, 64
    %v2055 = vpop.permute.xlu0 %2054
    %2056 = vrot.lane.b32.xlu0 %v2009, 64
    %v2057 = vpop.permute.xlu0 %2056
    %2058 = vrot.lane.b32.xlu0 %v2011, 64
    %v2059 = vpop.permute.xlu0 %2058
    %2060 = vrot.lane.b32.xlu0 %v2013, 64
    %v2061 = vpop.permute.xlu0 %2060
    %2062 = vrot.lane.b32.xlu0 %v2015, 64
    %v2063 = vpop.permute.xlu0 %2062
    %2064 = vrot.lane.b32.xlu0 %v2017, 64
    %v2065 = vpop.permute.xlu0 %2064
    %2066 = vrot.lane.b32.xlu0 %v2019, 64
    %v2067 = vpop.permute.xlu0 %2066
    %2068 = vrot.lane.b32.xlu0 %v2021, 64
    %v2069 = vpop.permute.xlu0 %2068
    %2070 = vrot.lane.b32.xlu0 %v2023, 64
    %v2071 = vpop.permute.xlu0 %2070
    %2072 = vrot.lane.b32.xlu0 %v2025, 64
    %v2073 = vpop.permute.xlu0 %2072
    %2074 = vrot.lane.b32.xlu0 %v2024, 64
    %v2075 = vpop.permute.xlu0 %2074
    %v2077 = vunpack.c.l.b16 %v1846
    %v2078 = vpack.c.b16 %v1898, %v1897
    %v2079 = vpack.c.b16 %v1900, %v1899
    %v2080 = vpack.c.b16 %v1902, %v1901
    %v2081 = vpack.c.b16 %v1904, %v1903
    %v2082 = vpack.c.b16 %v1906, %v1905
    %v2083 = vpack.c.b16 %v1908, %v1907
    %v2084 = vpack.c.b16 %v1910, %v1909
    %v2085 = vpack.c.b16 %v1912, %v1911
    %v2086 = vpack.c.b16 %v1914, %v1913
    %v2087 = vpack.c.b16 %v1916, %v1915
    %v2088 = vpack.c.b16 %v1918, %v1917
    %v2089 = vpack.c.b16 %v1920, %v1919
    %v2090 = vpack.c.b16 %v1922, %v1921
    %v2091 = vpack.c.b16 %v1924, %v1923
    %v2092 = vpack.c.b16 %v1926, %v1925
    %v2093 = vpack.c.b16 %v1928, %v1927
    %v2094 = vpack.c.b16 %v1930, %v1929
    %v2095 = vpack.c.b16 %v1932, %v1931
    %v2096 = vpack.c.b16 %v1934, %v1933
    %v2097 = vpack.c.b16 %v1936, %v1935
    %v2098 = vpack.c.b16 %v1938, %v1937
    %v2099 = vpack.c.b16 %v1940, %v1939
    %v2100 = vpack.c.b16 %v1942, %v1941
    %v2101 = vpack.c.b16 %v2077, %v1943
    %vm2102 = vcmask 1041408
    %v2103 = vrot.slane %v2078, 6
    %v2104 = vrot.slane %v2079, 6
    %v2105 = vsel %vm2102, %v2103, %v2104
    %v2106 = vrot.slane %v2080, 6
    %v2107 = vsel %vm2102, %v2104, %v2106
    %v2108 = vrot.slane %v2081, 6
    %v2109 = vsel %vm2102, %v2106, %v2108
    %v2110 = vrot.slane %v2082, 6
    %v2111 = vsel %vm2102, %v2108, %v2110
    %v2112 = vrot.slane %v2083, 6
    %v2113 = vsel %vm2102, %v2110, %v2112
    %v2114 = vrot.slane %v2084, 6
    %v2115 = vsel %vm2102, %v2112, %v2114
    %v2116 = vrot.slane %v2085, 6
    %v2117 = vsel %vm2102, %v2114, %v2116
    %v2118 = vrot.slane %v2086, 6
    %v2119 = vsel %vm2102, %v2116, %v2118
    %v2120 = vrot.slane %v2087, 6
    %v2121 = vsel %vm2102, %v2118, %v2120
    %v2122 = vrot.slane %v2088, 6
    %v2123 = vsel %vm2102, %v2120, %v2122
    %v2124 = vrot.slane %v2089, 6
    %v2125 = vsel %vm2102, %v2122, %v2124
    %v2126 = vrot.slane %v2090, 6
    %v2127 = vsel %vm2102, %v2124, %v2126
    %v2128 = vrot.slane %v2091, 6
    %v2129 = vsel %vm2102, %v2126, %v2128
    %v2130 = vrot.slane %v2092, 6
    %v2131 = vsel %vm2102, %v2128, %v2130
    %v2132 = vrot.slane %v2093, 6
    %v2133 = vsel %vm2102, %v2130, %v2132
    %v2134 = vrot.slane %v2094, 6
    %v2135 = vsel %vm2102, %v2132, %v2134
    %v2136 = vrot.slane %v2095, 6
    %v2137 = vsel %vm2102, %v2134, %v2136
    %v2138 = vrot.slane %v2096, 6
    %v2139 = vsel %vm2102, %v2136, %v2138
    %v2140 = vrot.slane %v2097, 6
    %v2141 = vsel %vm2102, %v2138, %v2140
    %v2142 = vrot.slane %v2098, 6
    %v2143 = vsel %vm2102, %v2140, %v2142
    %v2144 = vrot.slane %v2099, 6
    %v2145 = vsel %vm2102, %v2142, %v2144
    %v2146 = vrot.slane %v2100, 6
    %v2147 = vsel %vm2102, %v2144, %v2146
    %v2148 = vrot.slane %v2101, 6
    %v2149 = vsel %vm2102, %v2146, %v2148
    %v2152 = vsel %vm662, %v1945, %v2027
    %v2155 = vsel %vm662, %v1946, %v2029
    %v2158 = vsel %vm662, %v1947, %v2031
    %v2161 = vsel %vm662, %v1948, %v2033
    %v2164 = vsel %vm662, %v1949, %v2035
    %v2167 = vsel %vm662, %v1950, %v2037
    %v2170 = vsel %vm662, %v1951, %v2039
    %v2173 = vsel %vm662, %v1952, %v2041
    %v2176 = vsel %vm662, %v1953, %v2043
    %v2179 = vsel %vm662, %v1954, %v2045
    %v2182 = vsel %vm662, %v1955, %v2047
    %v2185 = vsel %vm662, %v1956, %v2049
    %v2188 = vsel %vm662, %v1957, %v2051
    %v2191 = vsel %vm662, %v1958, %v2053
    %v2194 = vsel %vm662, %v1959, %v2055
    %v2197 = vsel %vm662, %v1960, %v2057
    %v2200 = vsel %vm662, %v1961, %v2059
    %v2203 = vsel %vm662, %v1962, %v2061
    %v2206 = vsel %vm662, %v1963, %v2063
    %v2209 = vsel %vm662, %v1964, %v2065
    %v2212 = vsel %vm662, %v1965, %v2067
    %v2215 = vsel %vm662, %v1966, %v2069
    %v2218 = vsel %vm662, %v1967, %v2071
    %v2221 = vsel %vm662, %v1968, %v2073
    %v2224 = vsel %vm662, %v1969, %v2075
    %v2225 = vld [vmem:[%s2 + $0x80] sm:$0xf]
    %v2226 = vld [vmem:[%s2 + $0x84] sm:$0xf]
    %v2227 = vld [vmem:[%s2 + $0x88] sm:$0xf]
    %v2228 = vld [vmem:[%s2 + $0x8c] sm:$0xf]
    %v2229 = vld [vmem:[%s2 + $0x90] sm:$0xf]
    %v2230 = vld [vmem:[%s2 + $0x94] sm:$0xf]
    %v2231 = vld [vmem:[%s2 + $0x98] sm:$0xf]
    %v2232 = vld [vmem:[%s2 + $0x9c] sm:$0xf]
    %v2233 = vld [vmem:[%s2 + $0xa0] sm:$0xf]
    %v2234 = vld [vmem:[%s2 + $0xa4] sm:$0xf]
    %v2235 = vld [vmem:[%s2 + $0xa8] sm:$0xf]
    %v2236 = vld [vmem:[%s2 + $0xac] sm:$0xf]
    %v2237 = vld [vmem:[%s2 + $0xb0] sm:$0xf]
    %v2238 = vld [vmem:[%s2 + $0xb4] sm:$0xf]
    %v2239 = vld [vmem:[%s2 + $0xb8] sm:$0xf]
    %v2240 = vld [vmem:[%s2 + $0xbc] sm:$0xf]
    %v2241 = vld [vmem:[%s2 + $0xc0] sm:$0xf]
    %v2242 = vld [vmem:[%s2 + $0xc4] sm:$0xf]
    %v2243 = vld [vmem:[%s2 + $0xc8] sm:$0xf]
    %v2244 = vld [vmem:[%s2 + $0xcc] sm:$0xf]
    %v2245 = vld [vmem:[%s2 + $0xd0] sm:$0xf]
    %v2246 = vld [vmem:[%s2 + $0xd4] sm:$0xf]
    %v2247 = vld [vmem:[%s2 + $0xd8] sm:$0xf]
    %v2248 = vld [vmem:[%s2 + $0xdc] sm:$0xf]
    %v2249 = vld [vmem:[%s3 + $0x10] sm:$0x1]
    %v2250 = vperm.slane %v2249, 0
    %vm2276 = vcmask 1045504
    %v2277 = vrot.slane %v2152, 2
    %v2278 = vrot.slane %v2155, 2
    %v2279 = vsel %vm2276, %v2277, %v2278
    %v2280 = vrot.slane %v2103, 2
    %v2281 = vrot.slane %v2105, 2
    %v2282 = vsel %vm2276, %v2280, %v2281
    %v2283 = vrot.slane %v2158, 2
    %v2284 = vsel %vm2276, %v2278, %v2283
    %v2285 = vrot.slane %v2107, 2
    %v2286 = vsel %vm2276, %v2281, %v2285
    %v2287 = vrot.slane %v2161, 2
    %v2288 = vsel %vm2276, %v2283, %v2287
    %v2289 = vrot.slane %v2109, 2
    %v2290 = vsel %vm2276, %v2285, %v2289
    %v2291 = vrot.slane %v2164, 2
    %v2292 = vsel %vm2276, %v2287, %v2291
    %v2293 = vrot.slane %v2111, 2
    %v2294 = vsel %vm2276, %v2289, %v2293
    %v2295 = vrot.slane %v2167, 2
    %v2296 = vsel %vm2276, %v2291, %v2295
    %v2297 = vrot.slane %v2113, 2
    %v2298 = vsel %vm2276, %v2293, %v2297
    %v2299 = vrot.slane %v2170, 2
    %v2300 = vsel %vm2276, %v2295, %v2299
    %v2301 = vrot.slane %v2115, 2
    %v2302 = vsel %vm2276, %v2297, %v2301
    %v2303 = vrot.slane %v2173, 2
    %v2304 = vsel %vm2276, %v2299, %v2303
    %v2305 = vrot.slane %v2117, 2
    %v2306 = vsel %vm2276, %v2301, %v2305
    %v2307 = vrot.slane %v2176, 2
    %v2308 = vsel %vm2276, %v2303, %v2307
    %v2309 = vrot.slane %v2119, 2
    %v2310 = vsel %vm2276, %v2305, %v2309
    %v2311 = vrot.slane %v2179, 2
    %v2312 = vsel %vm2276, %v2307, %v2311
    %v2313 = vrot.slane %v2121, 2
    %v2314 = vsel %vm2276, %v2309, %v2313
    %v2315 = vrot.slane %v2182, 2
    %v2316 = vsel %vm2276, %v2311, %v2315
    %v2317 = vrot.slane %v2123, 2
    %v2318 = vsel %vm2276, %v2313, %v2317
    %v2319 = vrot.slane %v2185, 2
    %v2320 = vsel %vm2276, %v2315, %v2319
    %v2321 = vrot.slane %v2125, 2
    %v2322 = vsel %vm2276, %v2317, %v2321
    %v2323 = vrot.slane %v2188, 2
    %v2324 = vsel %vm2276, %v2319, %v2323
    %v2325 = vrot.slane %v2127, 2
    %v2326 = vsel %vm2276, %v2321, %v2325
    %v2327 = vrot.slane %v2191, 2
    %v2328 = vsel %vm2276, %v2323, %v2327
    %v2329 = vrot.slane %v2129, 2
    %v2330 = vsel %vm2276, %v2325, %v2329
    %v2331 = vrot.slane %v2194, 2
    %v2332 = vsel %vm2276, %v2327, %v2331
    %v2333 = vrot.slane %v2131, 2
    %v2334 = vsel %vm2276, %v2329, %v2333
    %v2335 = vrot.slane %v2197, 2
    %v2336 = vsel %vm2276, %v2331, %v2335
    %v2337 = vrot.slane %v2133, 2
    %v2338 = vsel %vm2276, %v2333, %v2337
    %v2339 = vrot.slane %v2200, 2
    %v2340 = vsel %vm2276, %v2335, %v2339
    %v2341 = vrot.slane %v2135, 2
    %v2342 = vsel %vm2276, %v2337, %v2341
    %v2343 = vrot.slane %v2203, 2
    %v2344 = vsel %vm2276, %v2339, %v2343
    %v2345 = vrot.slane %v2137, 2
    %v2346 = vsel %vm2276, %v2341, %v2345
    %v2347 = vrot.slane %v2206, 2
    %v2348 = vsel %vm2276, %v2343, %v2347
    %v2349 = vrot.slane %v2139, 2
    %v2350 = vsel %vm2276, %v2345, %v2349
    %v2351 = vrot.slane %v2209, 2
    %v2352 = vsel %vm2276, %v2347, %v2351
    %v2353 = vrot.slane %v2141, 2
    %v2354 = vsel %vm2276, %v2349, %v2353
    %v2355 = vrot.slane %v2212, 2
    %v2356 = vsel %vm2276, %v2351, %v2355
    %v2357 = vrot.slane %v2143, 2
    %v2358 = vsel %vm2276, %v2353, %v2357
    %v2359 = vrot.slane %v2215, 2
    %v2360 = vsel %vm2276, %v2355, %v2359
    %v2361 = vrot.slane %v2145, 2
    %v2362 = vsel %vm2276, %v2357, %v2361
    %v2363 = vrot.slane %v2218, 2
    %v2364 = vsel %vm2276, %v2359, %v2363
    %v2365 = vrot.slane %v2147, 2
    %v2366 = vsel %vm2276, %v2361, %v2365
    %v2367 = vrot.slane %v2221, 2
    %v2368 = vsel %vm2276, %v2363, %v2367
    %v2369 = vrot.slane %v2149, 2
    %v2370 = vsel %vm2276, %v2365, %v2369
    %v2371 = vrot.slane %v2224, 2
    %v2372 = vsel %vm2276, %v2367, %v2371
    %v2373 = vrot.slane %v2148, 2
    %v2374 = vsel %vm2276, %v2369, %v2373
    %v2423 = vunpack.c.l.b16 %v2225
    %v2424 = vunpack.c.l.b16 %v2226
    %v2425 = vunpack.c.l.b16 %v2227
    %v2426 = vunpack.c.l.b16 %v2228
    %v2427 = vunpack.c.l.b16 %v2229
    %v2428 = vunpack.c.l.b16 %v2230
    %v2429 = vunpack.c.l.b16 %v2231
    %v2430 = vunpack.c.l.b16 %v2232
    %v2431 = vunpack.c.l.b16 %v2233
    %v2432 = vunpack.c.l.b16 %v2234
    %v2433 = vunpack.c.l.b16 %v2235
    %v2434 = vunpack.c.l.b16 %v2236
    %v2435 = vunpack.c.l.b16 %v2237
    %v2436 = vunpack.c.l.b16 %v2238
    %v2437 = vunpack.c.l.b16 %v2239
    %v2438 = vunpack.c.l.b16 %v2240
    %v2439 = vunpack.c.l.b16 %v2241
    %v2440 = vunpack.c.l.b16 %v2242
    %v2441 = vunpack.c.l.b16 %v2243
    %v2442 = vunpack.c.l.b16 %v2244
    %v2443 = vunpack.c.l.b16 %v2245
    %v2444 = vunpack.c.l.b16 %v2246
    %v2445 = vunpack.c.l.b16 %v2247
    %v2446 = vunpack.c.l.b16 %v2248
    %v2447 = vpack.c.b16 %v2424, %v2423
    %v2448 = vpack.c.b16 %v2426, %v2425
    %v2449 = vpack.c.b16 %v2428, %v2427
    %v2450 = vpack.c.b16 %v2430, %v2429
    %v2451 = vpack.c.b16 %v2432, %v2431
    %v2452 = vpack.c.b16 %v2434, %v2433
    %v2453 = vpack.c.b16 %v2436, %v2435
    %v2454 = vpack.c.b16 %v2438, %v2437
    %v2455 = vpack.c.b16 %v2440, %v2439
    %v2456 = vpack.c.b16 %v2442, %v2441
    %v2457 = vpack.c.b16 %v2444, %v2443
    %v2458 = vpack.c.b16 %v2446, %v2445
    %v2472 = vsel %vm662, %v2282, 0
    %v2475 = vsel %vm662, %v2286, 0
    %v2478 = vsel %vm662, %v2290, 0
    %v2481 = vsel %vm662, %v2294, 0
    %v2484 = vsel %vm662, %v2298, 0
    %v2487 = vsel %vm662, %v2302, 0
    %v2490 = vsel %vm662, %v2306, 0
    %v2493 = vsel %vm662, %v2310, 0
    %v2496 = vsel %vm662, %v2314, 0
    %v2499 = vsel %vm662, %v2318, 0
    %v2502 = vsel %vm662, %v2322, 0
    %v2505 = vsel %vm662, %v2326, 0
    %v2508 = vsel %vm662, %v2330, 0
    %v2511 = vsel %vm662, %v2334, 0
    %v2514 = vsel %vm662, %v2338, 0
    %v2517 = vsel %vm662, %v2342, 0
    %v2520 = vsel %vm662, %v2346, 0
    %v2523 = vsel %vm662, %v2350, 0
    %v2526 = vsel %vm662, %v2354, 0
    %v2529 = vsel %vm662, %v2358, 0
    %v2532 = vsel %vm662, %v2362, 0
    %v2535 = vsel %vm662, %v2366, 0
    %v2538 = vsel %vm662, %v2370, 0
    %v2541 = vsel %vm662, %v2374, 0
    %2543 = vmatpush.bf16.msra.mxu0 %v2454
    %2544 = vmatpush.bf16.msra.mxu0 %v2453
    %2545 = vmatpush.bf16.msra.mxu0 %v2452
    %2546 = vmatpush.bf16.msra.mxu0 %v2451
    %2547 = vmatpush.bf16.msra.mxu0 %v2450
    %2548 = vmatpush.bf16.msra.mxu0 %v2449
    %2549 = vmatpush.bf16.msra.mxu0 %v2448
    %2550 = vmatpush.bf16.msra.mxu0 %v2447
    %2551 = vmatmul.bf16.gmra.mxu0 %v2279
    %v2552 = vpop.f32.mrf.mxu0
    %v2553 = vadd.f32 %v2250, %v2552
    %v2554 = vpop.f32.mrf.mxu0
    %v2555 = vadd.f32 %v2250, %v2554
    %2556 = vmatmul.bf16.gmra.mxu0 %v2284
    %v2557 = vpop.f32.mrf.mxu0
    %v2558 = vadd.f32 %v2250, %v2557
    %v2559 = vpop.f32.mrf.mxu0
    %v2560 = vadd.f32 %v2250, %v2559
    %2561 = vmatmul.bf16.gmra.mxu0 %v2288
    %v2562 = vpop.f32.mrf.mxu0
    %v2563 = vadd.f32 %v2250, %v2562
    %v2564 = vpop.f32.mrf.mxu0
    %v2565 = vadd.f32 %v2250, %v2564
    %2566 = vmatmul.bf16.gmra.mxu0 %v2292
    %v2567 = vpop.f32.mrf.mxu0
    %v2568 = vadd.f32 %v2250, %v2567
    %v2569 = vpop.f32.mrf.mxu0
    %v2570 = vadd.f32 %v2250, %v2569
    %2571 = vmatmul.bf16.gmra.mxu0 %v2296
    %v2572 = vpop.f32.mrf.mxu0
    %v2573 = vadd.f32 %v2250, %v2572
    %v2574 = vpop.f32.mrf.mxu0
    %v2575 = vadd.f32 %v2250, %v2574
    %2576 = vmatmul.bf16.gmra.mxu0 %v2300
    %v2577 = vpop.f32.mrf.mxu0
    %v2578 = vadd.f32 %v2250, %v2577
    %v2579 = vpop.f32.mrf.mxu0
    %v2580 = vadd.f32 %v2250, %v2579
    %2581 = vmatmul.bf16.gmra.mxu0 %v2304
    %v2582 = vpop.f32.mrf.mxu0
    %v2583 = vadd.f32 %v2250, %v2582
    %v2584 = vpop.f32.mrf.mxu0
    %v2585 = vadd.f32 %v2250, %v2584
    %2586 = vmatmul.bf16.gmra.mxu0 %v2308
    %v2587 = vpop.f32.mrf.mxu0
    %v2588 = vadd.f32 %v2250, %v2587
    %v2589 = vpop.f32.mrf.mxu0
    %v2590 = vadd.f32 %v2250, %v2589
    %2591 = vmatmul.bf16.gmra.mxu0 %v2312
    %v2592 = vpop.f32.mrf.mxu0
    %v2593 = vadd.f32 %v2250, %v2592
    %v2594 = vpop.f32.mrf.mxu0
    %v2595 = vadd.f32 %v2250, %v2594
    %2596 = vmatmul.bf16.gmra.mxu0 %v2316
    %v2597 = vpop.f32.mrf.mxu0
    %v2598 = vadd.f32 %v2250, %v2597
    %v2599 = vpop.f32.mrf.mxu0
    %v2600 = vadd.f32 %v2250, %v2599
    %2601 = vmatmul.bf16.gmra.mxu0 %v2320
    %v2602 = vpop.f32.mrf.mxu0
    %v2603 = vadd.f32 %v2250, %v2602
    %v2604 = vpop.f32.mrf.mxu0
    %v2605 = vadd.f32 %v2250, %v2604
    %2606 = vmatmul.bf16.gmra.mxu0 %v2324
    %v2607 = vpop.f32.mrf.mxu0
    %v2608 = vadd.f32 %v2250, %v2607
    %v2609 = vpop.f32.mrf.mxu0
    %v2610 = vadd.f32 %v2250, %v2609
    %2611 = vmatmul.bf16.gmra.mxu0 %v2328
    %v2612 = vpop.f32.mrf.mxu0
    %v2613 = vadd.f32 %v2250, %v2612
    %v2614 = vpop.f32.mrf.mxu0
    %v2615 = vadd.f32 %v2250, %v2614
    %2616 = vmatmul.bf16.gmra.mxu0 %v2332
    %v2617 = vpop.f32.mrf.mxu0
    %v2618 = vadd.f32 %v2250, %v2617
    %v2619 = vpop.f32.mrf.mxu0
    %v2620 = vadd.f32 %v2250, %v2619
    %2621 = vmatmul.bf16.gmra.mxu0 %v2336
    %v2622 = vpop.f32.mrf.mxu0
    %v2623 = vadd.f32 %v2250, %v2622
    %v2624 = vpop.f32.mrf.mxu0
    %v2625 = vadd.f32 %v2250, %v2624
    %2626 = vmatmul.bf16.gmra.mxu0 %v2340
    %v2627 = vpop.f32.mrf.mxu0
    %v2628 = vadd.f32 %v2250, %v2627
    %v2629 = vpop.f32.mrf.mxu0
    %v2630 = vadd.f32 %v2250, %v2629
    %2631 = vmatmul.bf16.gmra.mxu0 %v2344
    %v2632 = vpop.f32.mrf.mxu0
    %v2633 = vadd.f32 %v2250, %v2632
    %v2634 = vpop.f32.mrf.mxu0
    %v2635 = vadd.f32 %v2250, %v2634
    %2636 = vmatmul.bf16.gmra.mxu0 %v2348
    %v2637 = vpop.f32.mrf.mxu0
    %v2638 = vadd.f32 %v2250, %v2637
    %v2639 = vpop.f32.mrf.mxu0
    %v2640 = vadd.f32 %v2250, %v2639
    %2641 = vmatmul.bf16.gmra.mxu0 %v2352
    %v2642 = vpop.f32.mrf.mxu0
    %v2643 = vadd.f32 %v2250, %v2642
    %v2644 = vpop.f32.mrf.mxu0
    %v2645 = vadd.f32 %v2250, %v2644
    %2646 = vmatmul.bf16.gmra.mxu0 %v2356
    %v2647 = vpop.f32.mrf.mxu0
    %v2648 = vadd.f32 %v2250, %v2647
    %v2649 = vpop.f32.mrf.mxu0
    %v2650 = vadd.f32 %v2250, %v2649
    %2651 = vmatmul.bf16.gmra.mxu0 %v2360
    %v2652 = vpop.f32.mrf.mxu0
    %v2653 = vadd.f32 %v2250, %v2652
    %v2654 = vpop.f32.mrf.mxu0
    %v2655 = vadd.f32 %v2250, %v2654
    %2656 = vmatmul.bf16.gmra.mxu0 %v2364
    %v2657 = vpop.f32.mrf.mxu0
    %v2658 = vadd.f32 %v2250, %v2657
    %v2659 = vpop.f32.mrf.mxu0
    %v2660 = vadd.f32 %v2250, %v2659
    %2661 = vmatmul.bf16.gmra.mxu0 %v2368
    %v2662 = vpop.f32.mrf.mxu0
    %v2663 = vadd.f32 %v2250, %v2662
    %v2664 = vpop.f32.mrf.mxu0
    %v2665 = vadd.f32 %v2250, %v2664
    %2666 = vmatmul.bf16.gmra.mxu0 %v2372
    %v2667 = vpop.f32.mrf.mxu0
    %v2668 = vadd.f32 %v2250, %v2667
    %v2669 = vpop.f32.mrf.mxu0
    %v2670 = vadd.f32 %v2250, %v2669
    %2671 = vdwg.mxu0
    %2672 = vmatpush.bf16.msra.mxu0 0
    %2673 = vmatpush.bf16.msra.mxu0 0
    %2674 = vmatpush.bf16.msra.mxu0 0
    %2675 = vmatpush.bf16.msra.mxu0 0
    %2676 = vmatpush.bf16.msra.mxu0 %v2458
    %2677 = vmatpush.bf16.msra.mxu0 %v2457
    %2678 = vmatpush.bf16.msra.mxu0 %v2456
    %2679 = vmatpush.bf16.msra.mxu0 %v2455
    %2680 = vmatmul.bf16.gmra.mxu0 %v2472
    %v2681 = vpop.f32.mrf.mxu0
    %v2682 = vadd.f32 %v2553, %v2681
    %v2683 = vpop.f32.mrf.mxu0
    %v2684 = vadd.f32 %v2555, %v2683
    %2685 = vmatmul.bf16.gmra.mxu0 %v2475
    %v2686 = vpop.f32.mrf.mxu0
    %v2687 = vadd.f32 %v2558, %v2686
    %v2688 = vpop.f32.mrf.mxu0
    %v2689 = vadd.f32 %v2560, %v2688
    %2690 = vmatmul.bf16.gmra.mxu0 %v2478
    %v2691 = vpop.f32.mrf.mxu0
    %v2692 = vadd.f32 %v2563, %v2691
    %v2693 = vpop.f32.mrf.mxu0
    %v2694 = vadd.f32 %v2565, %v2693
    %2695 = vmatmul.bf16.gmra.mxu0 %v2481
    %v2696 = vpop.f32.mrf.mxu0
    %v2697 = vadd.f32 %v2568, %v2696
    %v2698 = vpop.f32.mrf.mxu0
    %v2699 = vadd.f32 %v2570, %v2698
    %2700 = vmatmul.bf16.gmra.mxu0 %v2484
    %v2701 = vpop.f32.mrf.mxu0
    %v2702 = vadd.f32 %v2573, %v2701
    %v2703 = vpop.f32.mrf.mxu0
    %v2704 = vadd.f32 %v2575, %v2703
    %2705 = vmatmul.bf16.gmra.mxu0 %v2487
    %v2706 = vpop.f32.mrf.mxu0
    %v2707 = vadd.f32 %v2578, %v2706
    %v2708 = vpop.f32.mrf.mxu0
    %v2709 = vadd.f32 %v2580, %v2708
    %2710 = vmatmul.bf16.gmra.mxu0 %v2490
    %v2711 = vpop.f32.mrf.mxu0
    %v2712 = vadd.f32 %v2583, %v2711
    %v2713 = vpop.f32.mrf.mxu0
    %v2714 = vadd.f32 %v2585, %v2713
    %2715 = vmatmul.bf16.gmra.mxu0 %v2493
    %v2716 = vpop.f32.mrf.mxu0
    %v2717 = vadd.f32 %v2588, %v2716
    %v2718 = vpop.f32.mrf.mxu0
    %v2719 = vadd.f32 %v2590, %v2718
    %2720 = vmatmul.bf16.gmra.mxu0 %v2496
    %v2721 = vpop.f32.mrf.mxu0
    %v2722 = vadd.f32 %v2593, %v2721
    %v2723 = vpop.f32.mrf.mxu0
    %v2724 = vadd.f32 %v2595, %v2723
    %2725 = vmatmul.bf16.gmra.mxu0 %v2499
    %v2726 = vpop.f32.mrf.mxu0
    %v2727 = vadd.f32 %v2598, %v2726
    %v2728 = vpop.f32.mrf.mxu0
    %v2729 = vadd.f32 %v2600, %v2728
    %2730 = vmatmul.bf16.gmra.mxu0 %v2502
    %v2731 = vpop.f32.mrf.mxu0
    %v2732 = vadd.f32 %v2603, %v2731
    %v2733 = vpop.f32.mrf.mxu0
    %v2734 = vadd.f32 %v2605, %v2733
    %2735 = vmatmul.bf16.gmra.mxu0 %v2505
    %v2736 = vpop.f32.mrf.mxu0
    %v2737 = vadd.f32 %v2608, %v2736
    %v2738 = vpop.f32.mrf.mxu0
    %v2739 = vadd.f32 %v2610, %v2738
    %2740 = vmatmul.bf16.gmra.mxu0 %v2508
    %v2741 = vpop.f32.mrf.mxu0
    %v2742 = vadd.f32 %v2613, %v2741
    %v2743 = vpop.f32.mrf.mxu0
    %v2744 = vadd.f32 %v2615, %v2743
    %2745 = vmatmul.bf16.gmra.mxu0 %v2511
    %v2746 = vpop.f32.mrf.mxu0
    %v2747 = vadd.f32 %v2618, %v2746
    %v2748 = vpop.f32.mrf.mxu0
    %v2749 = vadd.f32 %v2620, %v2748
    %2750 = vmatmul.bf16.gmra.mxu0 %v2514
    %v2751 = vpop.f32.mrf.mxu0
    %v2752 = vadd.f32 %v2623, %v2751
    %v2753 = vpop.f32.mrf.mxu0
    %v2754 = vadd.f32 %v2625, %v2753
    %2755 = vmatmul.bf16.gmra.mxu0 %v2517
    %v2756 = vpop.f32.mrf.mxu0
    %v2757 = vadd.f32 %v2628, %v2756
    %v2758 = vpop.f32.mrf.mxu0
    %v2759 = vadd.f32 %v2630, %v2758
    %2760 = vmatmul.bf16.gmra.mxu0 %v2520
    %v2761 = vpop.f32.mrf.mxu0
    %v2762 = vadd.f32 %v2633, %v2761
    %v2763 = vpop.f32.mrf.mxu0
    %v2764 = vadd.f32 %v2635, %v2763
    %2765 = vmatmul.bf16.gmra.mxu0 %v2523
    %v2766 = vpop.f32.mrf.mxu0
    %v2767 = vadd.f32 %v2638, %v2766
    %v2768 = vpop.f32.mrf.mxu0
    %v2769 = vadd.f32 %v2640, %v2768
    %2770 = vmatmul.bf16.gmra.mxu0 %v2526
    %v2771 = vpop.f32.mrf.mxu0
    %v2772 = vadd.f32 %v2643, %v2771
    %v2773 = vpop.f32.mrf.mxu0
    %v2774 = vadd.f32 %v2645, %v2773
    %2775 = vmatmul.bf16.gmra.mxu0 %v2529
    %v2776 = vpop.f32.mrf.mxu0
    %v2777 = vadd.f32 %v2648, %v2776
    %v2778 = vpop.f32.mrf.mxu0
    %v2779 = vadd.f32 %v2650, %v2778
    %2780 = vmatmul.bf16.gmra.mxu0 %v2532
    %v2781 = vpop.f32.mrf.mxu0
    %v2782 = vadd.f32 %v2653, %v2781
    %v2783 = vpop.f32.mrf.mxu0
    %v2784 = vadd.f32 %v2655, %v2783
    %2785 = vmatmul.bf16.gmra.mxu0 %v2535
    %v2786 = vpop.f32.mrf.mxu0
    %v2787 = vadd.f32 %v2658, %v2786
    %v2788 = vpop.f32.mrf.mxu0
    %v2789 = vadd.f32 %v2660, %v2788
    %2790 = vmatmul.bf16.gmra.mxu0 %v2538
    %v2791 = vpop.f32.mrf.mxu0
    %v2792 = vadd.f32 %v2663, %v2791
    %v2793 = vpop.f32.mrf.mxu0
    %v2794 = vadd.f32 %v2665, %v2793
    %2795 = vmatmul.bf16.gmra.mxu0 %v2541
    %v2796 = vpop.f32.mrf.mxu0
    %v2797 = vadd.f32 %v2668, %v2796
    %v2798 = vpop.f32.mrf.mxu0
    %v2799 = vadd.f32 %v2670, %v2798
    %2800 = vdwg.mxu0
    %v2801 = vmax.f32 %v2682, 0.0
    %v2802 = vmax.f32 %v2684, 0.0
    %v2803 = vmax.f32 %v2687, 0.0
    %v2804 = vmax.f32 %v2689, 0.0
    %v2805 = vmax.f32 %v2692, 0.0
    %v2806 = vmax.f32 %v2694, 0.0
    %v2807 = vmax.f32 %v2697, 0.0
    %v2808 = vmax.f32 %v2699, 0.0
    %v2809 = vmax.f32 %v2702, 0.0
    %v2810 = vmax.f32 %v2704, 0.0
    %v2811 = vmax.f32 %v2707, 0.0
    %v2812 = vmax.f32 %v2709, 0.0
    %v2813 = vmax.f32 %v2712, 0.0
    %v2814 = vmax.f32 %v2714, 0.0
    %v2815 = vmax.f32 %v2717, 0.0
    %v2816 = vmax.f32 %v2719, 0.0
    %v2817 = vmax.f32 %v2722, 0.0
    %v2818 = vmax.f32 %v2724, 0.0
    %v2819 = vmax.f32 %v2727, 0.0
    %v2820 = vmax.f32 %v2729, 0.0
    %v2821 = vmax.f32 %v2732, 0.0
    %v2822 = vmax.f32 %v2734, 0.0
    %v2823 = vmax.f32 %v2737, 0.0
    %v2824 = vmax.f32 %v2739, 0.0
    %v2825 = vmax.f32 %v2742, 0.0
    %v2826 = vmax.f32 %v2744, 0.0
    %v2827 = vmax.f32 %v2747, 0.0
    %v2828 = vmax.f32 %v2749, 0.0
    %v2829 = vmax.f32 %v2752, 0.0
    %v2830 = vmax.f32 %v2754, 0.0
    %v2831 = vmax.f32 %v2757, 0.0
    %v2832 = vmax.f32 %v2759, 0.0
    %v2833 = vmax.f32 %v2762, 0.0
    %v2834 = vmax.f32 %v2764, 0.0
    %v2835 = vmax.f32 %v2767, 0.0
    %v2836 = vmax.f32 %v2769, 0.0
    %v2837 = vmax.f32 %v2772, 0.0
    %v2838 = vmax.f32 %v2774, 0.0
    %v2839 = vmax.f32 %v2777, 0.0
    %v2840 = vmax.f32 %v2779, 0.0
    %v2841 = vmax.f32 %v2782, 0.0
    %v2842 = vmax.f32 %v2784, 0.0
    %v2843 = vmax.f32 %v2787, 0.0
    %v2844 = vmax.f32 %v2789, 0.0
    %v2845 = vmax.f32 %v2792, 0.0
    %v2846 = vmax.f32 %v2794, 0.0
    %v2847 = vmax.f32 %v2797, 0.0
    %v2848 = vmax.f32 %v2799, 0.0
    %v2849 = vpack.c.bf16 %v2802, %v2801
    %v2850 = vpack.c.bf16 %v2804, %v2803
    %v2851 = vpack.c.bf16 %v2806, %v2805
    %v2852 = vpack.c.bf16 %v2808, %v2807
    %v2853 = vpack.c.bf16 %v2810, %v2809
    %v2854 = vpack.c.bf16 %v2812, %v2811
    %v2855 = vpack.c.bf16 %v2814, %v2813
    %v2856 = vpack.c.bf16 %v2816, %v2815
    %v2857 = vpack.c.bf16 %v2818, %v2817
    %v2858 = vpack.c.bf16 %v2820, %v2819
    %v2859 = vpack.c.bf16 %v2822, %v2821
    %v2860 = vpack.c.bf16 %v2824, %v2823
    %v2861 = vpack.c.bf16 %v2826, %v2825
    %v2862 = vpack.c.bf16 %v2828, %v2827
    %v2863 = vpack.c.bf16 %v2830, %v2829
    %v2864 = vpack.c.bf16 %v2832, %v2831
    %v2865 = vpack.c.bf16 %v2834, %v2833
    %v2866 = vpack.c.bf16 %v2836, %v2835
    %v2867 = vpack.c.bf16 %v2838, %v2837
    %v2868 = vpack.c.bf16 %v2840, %v2839
    %v2869 = vpack.c.bf16 %v2842, %v2841
    %v2870 = vpack.c.bf16 %v2844, %v2843
    %v2871 = vpack.c.bf16 %v2846, %v2845
    %v2872 = vpack.c.bf16 %v2848, %v2847
    %v2873 = vld [vmem:[%s2 + $0xe0] sm:$0xf]
    %v2874 = vld [vmem:[%s2 + $0xe4] sm:$0xf]
    %v2875 = vld [vmem:[%s2 + $0xe8] sm:$0xf]
    %v2876 = vld [vmem:[%s2 + $0xec] sm:$0xf]
    %v2877 = vld [vmem:[%s2 + $0xf0] sm:$0xf]
    %v2878 = vld [vmem:[%s2 + $0xf4] sm:$0xf]
    %v2879 = vld [vmem:[%s2 + $0xf8] sm:$0xf]
    %v2880 = vld [vmem:[%s2 + $0xfc] sm:$0xf]
    %v2881 = vld [vmem:[%s3 + $0x18] sm:$0x1]
    %v2882 = vperm.slane %v2881, 0
    %v2891 = vunpack.c.l.b16 %v2873
    %v2892 = vunpack.c.l.b16 %v2874
    %v2893 = vunpack.c.l.b16 %v2875
    %v2894 = vunpack.c.l.b16 %v2876
    %v2895 = vunpack.c.l.b16 %v2877
    %v2896 = vunpack.c.l.b16 %v2878
    %v2897 = vunpack.c.l.b16 %v2879
    %v2898 = vunpack.c.l.b16 %v2880
    %v2899 = vpack.c.b16 %v2892, %v2891
    %v2900 = vpack.c.b16 %v2894, %v2893
    %v2901 = vpack.c.b16 %v2896, %v2895
    %v2902 = vpack.c.b16 %v2898, %v2897
    %v2908 = vsel %vm662, %v2849, 0
    %v2911 = vsel %vm662, %v2850, 0
    %v2914 = vsel %vm662, %v2851, 0
    %v2917 = vsel %vm662, %v2852, 0
    %v2920 = vsel %vm662, %v2853, 0
    %v2923 = vsel %vm662, %v2854, 0
    %v2926 = vsel %vm662, %v2855, 0
    %v2929 = vsel %vm662, %v2856, 0
    %v2932 = vsel %vm662, %v2857, 0
    %v2935 = vsel %vm662, %v2858, 0
    %v2938 = vsel %vm662, %v2859, 0
    %v2941 = vsel %vm662, %v2860, 0
    %v2944 = vsel %vm662, %v2861, 0
    %v2947 = vsel %vm662, %v2862, 0
    %v2950 = vsel %vm662, %v2863, 0
    %v2953 = vsel %vm662, %v2864, 0
    %v2956 = vsel %vm662, %v2865, 0
    %v2959 = vsel %vm662, %v2866, 0
    %v2962 = vsel %vm662, %v2867, 0
    %v2965 = vsel %vm662, %v2868, 0
    %v2968 = vsel %vm662, %v2869, 0
    %v2971 = vsel %vm662, %v2870, 0
    %v2974 = vsel %vm662, %v2871, 0
    %v2977 = vsel %vm662, %v2872, 0
    %2979 = vmatpush.bf16.msra.mxu0 0
    %2980 = vmatpush.bf16.msra.mxu0 0
    %2981 = vmatpush.bf16.msra.mxu0 0
    %2982 = vmatpush.bf16.msra.mxu0 0
    %2983 = vmatpush.bf16.msra.mxu0 %v2902
    %2984 = vmatpush.bf16.msra.mxu0 %v2901
    %2985 = vmatpush.bf16.msra.mxu0 %v2900
    %2986 = vmatpush.bf16.msra.mxu0 %v2899
    %2987 = vmatmul.bf16.gmra.mxu0 %v2908
    %v2988 = vpop.f32.mrf.mxu0
    %v2989 = vadd.f32 %v2882, %v2988
    %v2990 = vpop.f32.mrf.mxu0
    %v2991 = vadd.f32 %v2882, %v2990
    %2992 = vmatmul.bf16.gmra.mxu0 %v2911
    %v2993 = vpop.f32.mrf.mxu0
    %v2994 = vadd.f32 %v2882, %v2993
    %v2995 = vpop.f32.mrf.mxu0
    %v2996 = vadd.f32 %v2882, %v2995
    %2997 = vmatmul.bf16.gmra.mxu0 %v2914
    %v2998 = vpop.f32.mrf.mxu0
    %v2999 = vadd.f32 %v2882, %v2998
    %v3000 = vpop.f32.mrf.mxu0
    %v3001 = vadd.f32 %v2882, %v3000
    %3002 = vmatmul.bf16.gmra.mxu0 %v2917
    %v3003 = vpop.f32.mrf.mxu0
    %v3004 = vadd.f32 %v2882, %v3003
    %v3005 = vpop.f32.mrf.mxu0
    %v3006 = vadd.f32 %v2882, %v3005
    %3007 = vmatmul.bf16.gmra.mxu0 %v2920
    %v3008 = vpop.f32.mrf.mxu0
    %v3009 = vadd.f32 %v2882, %v3008
    %v3010 = vpop.f32.mrf.mxu0
    %v3011 = vadd.f32 %v2882, %v3010
    %3012 = vmatmul.bf16.gmra.mxu0 %v2923
    %v3013 = vpop.f32.mrf.mxu0
    %v3014 = vadd.f32 %v2882, %v3013
    %v3015 = vpop.f32.mrf.mxu0
    %v3016 = vadd.f32 %v2882, %v3015
    %3017 = vmatmul.bf16.gmra.mxu0 %v2926
    %v3018 = vpop.f32.mrf.mxu0
    %v3019 = vadd.f32 %v2882, %v3018
    %v3020 = vpop.f32.mrf.mxu0
    %v3021 = vadd.f32 %v2882, %v3020
    %3022 = vmatmul.bf16.gmra.mxu0 %v2929
    %v3023 = vpop.f32.mrf.mxu0
    %v3024 = vadd.f32 %v2882, %v3023
    %v3025 = vpop.f32.mrf.mxu0
    %v3026 = vadd.f32 %v2882, %v3025
    %3027 = vmatmul.bf16.gmra.mxu0 %v2932
    %v3028 = vpop.f32.mrf.mxu0
    %v3029 = vadd.f32 %v2882, %v3028
    %v3030 = vpop.f32.mrf.mxu0
    %v3031 = vadd.f32 %v2882, %v3030
    %3032 = vmatmul.bf16.gmra.mxu0 %v2935
    %v3033 = vpop.f32.mrf.mxu0
    %v3034 = vadd.f32 %v2882, %v3033
    %v3035 = vpop.f32.mrf.mxu0
    %v3036 = vadd.f32 %v2882, %v3035
    %3037 = vmatmul.bf16.gmra.mxu0 %v2938
    %v3038 = vpop.f32.mrf.mxu0
    %v3039 = vadd.f32 %v2882, %v3038
    %v3040 = vpop.f32.mrf.mxu0
    %v3041 = vadd.f32 %v2882, %v3040
    %3042 = vmatmul.bf16.gmra.mxu0 %v2941
    %v3043 = vpop.f32.mrf.mxu0
    %v3044 = vadd.f32 %v2882, %v3043
    %v3045 = vpop.f32.mrf.mxu0
    %v3046 = vadd.f32 %v2882, %v3045
    %3047 = vmatmul.bf16.gmra.mxu0 %v2944
    %v3048 = vpop.f32.mrf.mxu0
    %v3049 = vadd.f32 %v2882, %v3048
    %v3050 = vpop.f32.mrf.mxu0
    %v3051 = vadd.f32 %v2882, %v3050
    %3052 = vmatmul.bf16.gmra.mxu0 %v2947
    %v3053 = vpop.f32.mrf.mxu0
    %v3054 = vadd.f32 %v2882, %v3053
    %v3055 = vpop.f32.mrf.mxu0
    %v3056 = vadd.f32 %v2882, %v3055
    %3057 = vmatmul.bf16.gmra.mxu0 %v2950
    %v3058 = vpop.f32.mrf.mxu0
    %v3059 = vadd.f32 %v2882, %v3058
    %v3060 = vpop.f32.mrf.mxu0
    %v3061 = vadd.f32 %v2882, %v3060
    %3062 = vmatmul.bf16.gmra.mxu0 %v2953
    %v3063 = vpop.f32.mrf.mxu0
    %v3064 = vadd.f32 %v2882, %v3063
    %v3065 = vpop.f32.mrf.mxu0
    %v3066 = vadd.f32 %v2882, %v3065
    %3067 = vmatmul.bf16.gmra.mxu0 %v2956
    %v3068 = vpop.f32.mrf.mxu0
    %v3069 = vadd.f32 %v2882, %v3068
    %v3070 = vpop.f32.mrf.mxu0
    %v3071 = vadd.f32 %v2882, %v3070
    %3072 = vmatmul.bf16.gmra.mxu0 %v2959
    %v3073 = vpop.f32.mrf.mxu0
    %v3074 = vadd.f32 %v2882, %v3073
    %v3075 = vpop.f32.mrf.mxu0
    %v3076 = vadd.f32 %v2882, %v3075
    %3077 = vmatmul.bf16.gmra.mxu0 %v2962
    %v3078 = vpop.f32.mrf.mxu0
    %v3079 = vadd.f32 %v2882, %v3078
    %v3080 = vpop.f32.mrf.mxu0
    %v3081 = vadd.f32 %v2882, %v3080
    %3082 = vmatmul.bf16.gmra.mxu0 %v2965
    %v3083 = vpop.f32.mrf.mxu0
    %v3084 = vadd.f32 %v2882, %v3083
    %v3085 = vpop.f32.mrf.mxu0
    %v3086 = vadd.f32 %v2882, %v3085
    %3087 = vmatmul.bf16.gmra.mxu0 %v2968
    %v3088 = vpop.f32.mrf.mxu0
    %v3089 = vadd.f32 %v2882, %v3088
    %v3090 = vpop.f32.mrf.mxu0
    %v3091 = vadd.f32 %v2882, %v3090
    %3092 = vmatmul.bf16.gmra.mxu0 %v2971
    %v3093 = vpop.f32.mrf.mxu0
    %v3094 = vadd.f32 %v2882, %v3093
    %v3095 = vpop.f32.mrf.mxu0
    %v3096 = vadd.f32 %v2882, %v3095
    %3097 = vmatmul.bf16.gmra.mxu0 %v2974
    %v3098 = vpop.f32.mrf.mxu0
    %v3099 = vadd.f32 %v2882, %v3098
    %v3100 = vpop.f32.mrf.mxu0
    %v3101 = vadd.f32 %v2882, %v3100
    %3102 = vmatmul.bf16.gmra.mxu0 %v2977
    %v3103 = vpop.f32.mrf.mxu0
    %v3104 = vadd.f32 %v2882, %v3103
    %v3105 = vpop.f32.mrf.mxu0
    %v3106 = vadd.f32 %v2882, %v3105
    %3107 = vdwg.mxu0
    %v3108 = vmax.f32 %v2989, 0.0
    %v3109 = vmax.f32 %v2991, 0.0
    %v3110 = vmax.f32 %v2994, 0.0
    %v3111 = vmax.f32 %v2996, 0.0
    %v3112 = vmax.f32 %v2999, 0.0
    %v3113 = vmax.f32 %v3001, 0.0
    %v3114 = vmax.f32 %v3004, 0.0
    %v3115 = vmax.f32 %v3006, 0.0
    %v3116 = vmax.f32 %v3009, 0.0
    %v3117 = vmax.f32 %v3011, 0.0
    %v3118 = vmax.f32 %v3014, 0.0
    %v3119 = vmax.f32 %v3016, 0.0
    %v3120 = vmax.f32 %v3019, 0.0
    %v3121 = vmax.f32 %v3021, 0.0
    %v3122 = vmax.f32 %v3024, 0.0
    %v3123 = vmax.f32 %v3026, 0.0
    %v3124 = vmax.f32 %v3029, 0.0
    %v3125 = vmax.f32 %v3031, 0.0
    %v3126 = vmax.f32 %v3034, 0.0
    %v3127 = vmax.f32 %v3036, 0.0
    %v3128 = vmax.f32 %v3039, 0.0
    %v3129 = vmax.f32 %v3041, 0.0
    %v3130 = vmax.f32 %v3044, 0.0
    %v3131 = vmax.f32 %v3046, 0.0
    %v3132 = vmax.f32 %v3049, 0.0
    %v3133 = vmax.f32 %v3051, 0.0
    %v3134 = vmax.f32 %v3054, 0.0
    %v3135 = vmax.f32 %v3056, 0.0
    %v3136 = vmax.f32 %v3059, 0.0
    %v3137 = vmax.f32 %v3061, 0.0
    %v3138 = vmax.f32 %v3064, 0.0
    %v3139 = vmax.f32 %v3066, 0.0
    %v3140 = vmax.f32 %v3069, 0.0
    %v3141 = vmax.f32 %v3071, 0.0
    %v3142 = vmax.f32 %v3074, 0.0
    %v3143 = vmax.f32 %v3076, 0.0
    %v3144 = vmax.f32 %v3079, 0.0
    %v3145 = vmax.f32 %v3081, 0.0
    %v3146 = vmax.f32 %v3084, 0.0
    %v3147 = vmax.f32 %v3086, 0.0
    %v3148 = vmax.f32 %v3089, 0.0
    %v3149 = vmax.f32 %v3091, 0.0
    %v3150 = vmax.f32 %v3094, 0.0
    %v3151 = vmax.f32 %v3096, 0.0
    %v3152 = vmax.f32 %v3099, 0.0
    %v3153 = vmax.f32 %v3101, 0.0
    %v3154 = vmax.f32 %v3104, 0.0
    %v3155 = vmax.f32 %v3106, 0.0
    %vm3156 = vcmp.lt.s32.totalorder %v158, 22
    %vm3157 = vcmp.lt.s32.totalorder %v159, 22
    %vm3158 = vcmp.lt.s32.totalorder %v160, 22
    %vm3159 = vcmp.lt.s32.totalorder %v161, 22
    %vm3160 = vcmp.lt.s32.totalorder %v162, 22
    %vm3161 = vcmp.lt.s32.totalorder %v163, 22
    %v3162 = vsel %vm3156, %v3108, 0.0
    %v3163 = vsel %vm3157, %v3109, 0.0
    %v3164 = vsel %vm3158, %v3110, 0.0
    %v3165 = vsel %vm3159, %v3111, 0.0
    %v3166 = vsel %vm3160, %v3112, 0.0
    %v3167 = vsel %vm3161, %v3113, 0.0
    %v3168 = vsel %vm3156, %v3114, 0.0
    %v3169 = vsel %vm3157, %v3115, 0.0
    %v3170 = vsel %vm3158, %v3116, 0.0
    %v3171 = vsel %vm3159, %v3117, 0.0
    %v3172 = vsel %vm3160, %v3118, 0.0
    %v3173 = vsel %vm3161, %v3119, 0.0
    %v3174 = vsel %vm3156, %v3120, 0.0
    %v3175 = vsel %vm3157, %v3121, 0.0
    %v3176 = vsel %vm3158, %v3122, 0.0
    %v3177 = vsel %vm3159, %v3123, 0.0
    %v3178 = vsel %vm3160, %v3124, 0.0
    %v3179 = vsel %vm3161, %v3125, 0.0
    %v3180 = vsel %vm3156, %v3126, 0.0
    %v3181 = vsel %vm3157, %v3127, 0.0
    %v3182 = vsel %vm3158, %v3128, 0.0
    %v3183 = vsel %vm3159, %v3129, 0.0
    %v3184 = vsel %vm3160, %v3130, 0.0
    %v3185 = vsel %vm3161, %v3131, 0.0
    %v3186 = vsel %vm3156, %v3132, 0.0
    %v3187 = vsel %vm3157, %v3133, 0.0
    %v3188 = vsel %vm3158, %v3134, 0.0
    %v3189 = vsel %vm3159, %v3135, 0.0
    %v3190 = vsel %vm3160, %v3136, 0.0
    %v3191 = vsel %vm3161, %v3137, 0.0
    %v3192 = vsel %vm3156, %v3138, 0.0
    %v3193 = vsel %vm3157, %v3139, 0.0
    %v3194 = vsel %vm3158, %v3140, 0.0
    %v3195 = vsel %vm3159, %v3141, 0.0
    %v3196 = vsel %vm3160, %v3142, 0.0
    %v3197 = vsel %vm3161, %v3143, 0.0
    %v3198 = vsel %vm3156, %v3144, 0.0
    %v3199 = vsel %vm3157, %v3145, 0.0
    %v3200 = vsel %vm3158, %v3146, 0.0
    %v3201 = vsel %vm3159, %v3147, 0.0
    %v3202 = vsel %vm3160, %v3148, 0.0
    %v3203 = vsel %vm3161, %v3149, 0.0
    %v3204 = vsel %vm3156, %v3150, 0.0
    %v3205 = vsel %vm3157, %v3151, 0.0
    %v3206 = vsel %vm3158, %v3152, 0.0
    %v3207 = vsel %vm3159, %v3153, 0.0
    %v3208 = vsel %vm3160, %v3154, 0.0
    %v3209 = vsel %vm3161, %v3155, 0.0
    %v3210 = vpack.c.bf16 %v3162, %v3162
    %v3211 = vpack.c.bf16 %v3163, %v3163
    %v3212 = vpack.c.bf16 %v3164, %v3164
    %v3213 = vpack.c.bf16 %v3165, %v3165
    %v3214 = vpack.c.bf16 %v3166, %v3166
    %v3215 = vpack.c.bf16 %v3167, %v3167
    %v3216 = vpack.c.bf16 %v3168, %v3168
    %v3217 = vpack.c.bf16 %v3169, %v3169
    %v3218 = vpack.c.bf16 %v3170, %v3170
    %v3219 = vpack.c.bf16 %v3171, %v3171
    %v3220 = vpack.c.bf16 %v3172, %v3172
    %v3221 = vpack.c.bf16 %v3173, %v3173
    %v3222 = vpack.c.bf16 %v3174, %v3174
    %v3223 = vpack.c.bf16 %v3175, %v3175
    %v3224 = vpack.c.bf16 %v3176, %v3176
    %v3225 = vpack.c.bf16 %v3177, %v3177
    %v3226 = vpack.c.bf16 %v3178, %v3178
    %v3227 = vpack.c.bf16 %v3179, %v3179
    %v3228 = vpack.c.bf16 %v3180, %v3180
    %v3229 = vpack.c.bf16 %v3181, %v3181
    %v3230 = vpack.c.bf16 %v3182, %v3182
    %v3231 = vpack.c.bf16 %v3183, %v3183
    %v3232 = vpack.c.bf16 %v3184, %v3184
    %v3233 = vpack.c.bf16 %v3185, %v3185
    %v3234 = vpack.c.bf16 %v3186, %v3186
    %v3235 = vpack.c.bf16 %v3187, %v3187
    %v3236 = vpack.c.bf16 %v3188, %v3188
    %v3237 = vpack.c.bf16 %v3189, %v3189
    %v3238 = vpack.c.bf16 %v3190, %v3190
    %v3239 = vpack.c.bf16 %v3191, %v3191
    %v3240 = vpack.c.bf16 %v3192, %v3192
    %v3241 = vpack.c.bf16 %v3193, %v3193
    %v3242 = vpack.c.bf16 %v3194, %v3194
    %v3243 = vpack.c.bf16 %v3195, %v3195
    %v3244 = vpack.c.bf16 %v3196, %v3196
    %v3245 = vpack.c.bf16 %v3197, %v3197
    %v3246 = vpack.c.bf16 %v3198, %v3198
    %v3247 = vpack.c.bf16 %v3199, %v3199
    %v3248 = vpack.c.bf16 %v3200, %v3200
    %v3249 = vpack.c.bf16 %v3201, %v3201
    %v3250 = vpack.c.bf16 %v3202, %v3202
    %v3251 = vpack.c.bf16 %v3203, %v3203
    %v3252 = vpack.c.bf16 %v3204, %v3204
    %v3253 = vpack.c.bf16 %v3205, %v3205
    %v3254 = vpack.c.bf16 %v3206, %v3206
    %v3255 = vpack.c.bf16 %v3207, %v3207
    %v3256 = vpack.c.bf16 %v3208, %v3208
    %v3257 = vpack.c.bf16 %v3209, %v3209
    %3258 = vst.msk [vmem:[#allocation2 + $0x8] sm:$0xf] %vm19, %v3210
    %3259 = vst.msk [vmem:[#allocation2 + $0xc] sm:$0xf] %vm19, %v3211
    %3260 = vst.msk [vmem:[#allocation2 + $0x10] sm:$0xf] %vm19, %v3212
    %3261 = vst.msk [vmem:[#allocation2 + $0x14] sm:$0xf] %vm19, %v3213
    %3262 = vst.msk [vmem:[#allocation2 + $0x18] sm:$0xf] %vm19, %v3214
    %3263 = vst.msk [vmem:[#allocation2 + $0x1c] sm:$0xf] %vm19, %v3215
    %3264 = vst.msk [vmem:[#allocation2 + $0x20] sm:$0xf] %vm19, %v3216
    %3265 = vst.msk [vmem:[#allocation2 + $0x24] sm:$0xf] %vm19, %v3217
    %3266 = vst.msk [vmem:[#allocation2 + $0x28] sm:$0xf] %vm19, %v3218
    %3267 = vst.msk [vmem:[#allocation2 + $0x2c] sm:$0xf] %vm19, %v3219
    %3268 = vst.msk [vmem:[#allocation2 + $0x30] sm:$0xf] %vm19, %v3220
    %3269 = vst.msk [vmem:[#allocation2 + $0x34] sm:$0xf] %vm19, %v3221
    %3270 = vst.msk [vmem:[#allocation2 + $0x38] sm:$0xf] %vm19, %v3222
    %3271 = vst.msk [vmem:[#allocation2 + $0x3c] sm:$0xf] %vm19, %v3223
    %3272 = vst.msk [vmem:[#allocation2 + $0x40] sm:$0xf] %vm19, %v3224
    %3273 = vst.msk [vmem:[#allocation2 + $0x44] sm:$0xf] %vm19, %v3225
    %3274 = vst.msk [vmem:[#allocation2 + $0x48] sm:$0xf] %vm19, %v3226
    %3275 = vst.msk [vmem:[#allocation2 + $0x4c] sm:$0xf] %vm19, %v3227
    %3276 = vst.msk [vmem:[#allocation2 + $0x50] sm:$0xf] %vm19, %v3228
    %3277 = vst.msk [vmem:[#allocation2 + $0x54] sm:$0xf] %vm19, %v3229
    %3278 = vst.msk [vmem:[#allocation2 + $0x58] sm:$0xf] %vm19, %v3230
    %3279 = vst.msk [vmem:[#allocation2 + $0x5c] sm:$0xf] %vm19, %v3231
    %3280 = vst.msk [vmem:[#allocation2 + $0x60] sm:$0xf] %vm19, %v3232
    %3281 = vst.msk [vmem:[#allocation2 + $0x64] sm:$0xf] %vm19, %v3233
    %3282 = vst.msk [vmem:[#allocation2 + $0x68] sm:$0xf] %vm19, %v3234
    %3283 = vst.msk [vmem:[#allocation2 + $0x6c] sm:$0xf] %vm19, %v3235
    %3284 = vst.msk [vmem:[#allocation2 + $0x70] sm:$0xf] %vm19, %v3236
    %3285 = vst.msk [vmem:[#allocation2 + $0x74] sm:$0xf] %vm19, %v3237
    %3286 = vst.msk [vmem:[#allocation2 + $0x78] sm:$0xf] %vm19, %v3238
    %3287 = vst.msk [vmem:[#allocation2 + $0x7c] sm:$0xf] %vm19, %v3239
    %3288 = vst.msk [vmem:[#allocation2 + $0x80] sm:$0xf] %vm19, %v3240
    %3289 = vst.msk [vmem:[#allocation2 + $0x84] sm:$0xf] %vm19, %v3241
    %3290 = vst.msk [vmem:[#allocation2 + $0x88] sm:$0xf] %vm19, %v3242
    %3291 = vst.msk [vmem:[#allocation2 + $0x8c] sm:$0xf] %vm19, %v3243
    %3292 = vst.msk [vmem:[#allocation2 + $0x90] sm:$0xf] %vm19, %v3244
    %3293 = vst.msk [vmem:[#allocation2 + $0x94] sm:$0xf] %vm19, %v3245
    %3294 = vst.msk [vmem:[#allocation2 + $0x98] sm:$0xf] %vm19, %v3246
    %3295 = vst.msk [vmem:[#allocation2 + $0x9c] sm:$0xf] %vm19, %v3247
    %3296 = vst.msk [vmem:[#allocation2 + $0xa0] sm:$0xf] %vm19, %v3248
    %3297 = vst.msk [vmem:[#allocation2 + $0xa4] sm:$0xf] %vm19, %v3249
    %3298 = vst.msk [vmem:[#allocation2 + $0xa8] sm:$0xf] %vm19, %v3250
    %3299 = vst.msk [vmem:[#allocation2 + $0xac] sm:$0xf] %vm19, %v3251
    %3300 = vst.msk [vmem:[#allocation2 + $0xb0] sm:$0xf] %vm19, %v3252
    %3301 = vst.msk [vmem:[#allocation2 + $0xb4] sm:$0xf] %vm19, %v3253
    %3302 = vst.msk [vmem:[#allocation2 + $0xb8] sm:$0xf] %vm19, %v3254
    %3303 = vst.msk [vmem:[#allocation2 + $0xbc] sm:$0xf] %vm19, %v3255
    %3304 = vst.msk [vmem:[#allocation2 + $0xc0] sm:$0xf] %vm19, %v3256
    %3305 = vst.msk [vmem:[#allocation2 + $0xc4] sm:$0xf] %vm19, %v3257
    %v3306 = vld [vmem:[#allocation2 + $0x4] sm:$0xf]
    %v3307 = vld [vmem:[#allocation2 + $0x8] sm:$0xf]
    %v3308 = vld [vmem:[#allocation2 + $0xc] sm:$0xf]
    %v3309 = vld [vmem:[#allocation2 + $0x10] sm:$0xf]
    %v3310 = vld [vmem:[#allocation2 + $0x14] sm:$0xf]
    %v3311 = vld [vmem:[#allocation2 + $0x18] sm:$0xf]
    %v3312 = vld [vmem:[#allocation2 + $0x1c] sm:$0xf]
    %v3313 = vld [vmem:[#allocation2 + $0x20] sm:$0xf]
    %v3314 = vld [vmem:[#allocation2 + $0x24] sm:$0xf]
    %v3315 = vld [vmem:[#allocation2 + $0x28] sm:$0xf]
    %v3316 = vld [vmem:[#allocation2 + $0x2c] sm:$0xf]
    %v3317 = vld [vmem:[#allocation2 + $0x30] sm:$0xf]
    %v3318 = vld [vmem:[#allocation2 + $0x34] sm:$0xf]
    %v3319 = vld [vmem:[#allocation2 + $0x38] sm:$0xf]
    %v3320 = vld [vmem:[#allocation2 + $0x3c] sm:$0xf]
    %v3321 = vld [vmem:[#allocation2 + $0x40] sm:$0xf]
    %v3322 = vld [vmem:[#allocation2 + $0x44] sm:$0xf]
    %v3323 = vld [vmem:[#allocation2 + $0x48] sm:$0xf]
    %v3324 = vld [vmem:[#allocation2 + $0x4c] sm:$0xf]
    %v3325 = vld [vmem:[#allocation2 + $0x50] sm:$0xf]
    %v3326 = vld [vmem:[#allocation2 + $0x54] sm:$0xf]
    %v3327 = vld [vmem:[#allocation2 + $0x58] sm:$0xf]
    %v3328 = vld [vmem:[#allocation2 + $0x5c] sm:$0xf]
    %v3329 = vld [vmem:[#allocation2 + $0x60] sm:$0xf]
    %v3330 = vld [vmem:[#allocation2 + $0x64] sm:$0xf]
    %v3331 = vld [vmem:[#allocation2 + $0x68] sm:$0xf]
    %v3332 = vld [vmem:[#allocation2 + $0x6c] sm:$0xf]
    %v3333 = vld [vmem:[#allocation2 + $0x70] sm:$0xf]
    %v3334 = vld [vmem:[#allocation2 + $0x74] sm:$0xf]
    %v3335 = vld [vmem:[#allocation2 + $0x78] sm:$0xf]
    %v3336 = vld [vmem:[#allocation2 + $0x7c] sm:$0xf]
    %v3337 = vld [vmem:[#allocation2 + $0x80] sm:$0xf]
    %v3338 = vld [vmem:[#allocation2 + $0x84] sm:$0xf]
    %v3339 = vld [vmem:[#allocation2 + $0x88] sm:$0xf]
    %v3340 = vld [vmem:[#allocation2 + $0x8c] sm:$0xf]
    %v3341 = vld [vmem:[#allocation2 + $0x90] sm:$0xf]
    %v3342 = vld [vmem:[#allocation2 + $0x94] sm:$0xf]
    %v3343 = vld [vmem:[#allocation2 + $0x98] sm:$0xf]
    %v3344 = vld [vmem:[#allocation2 + $0x9c] sm:$0xf]
    %v3345 = vld [vmem:[#allocation2 + $0xa0] sm:$0xf]
    %v3346 = vld [vmem:[#allocation2 + $0xa4] sm:$0xf]
    %v3347 = vld [vmem:[#allocation2 + $0xa8] sm:$0xf]
    %v3348 = vld [vmem:[#allocation2 + $0xac] sm:$0xf]
    %v3349 = vld [vmem:[#allocation2 + $0xb0] sm:$0xf]
    %v3350 = vld [vmem:[#allocation2 + $0xb4] sm:$0xf]
    %v3351 = vld [vmem:[#allocation2 + $0xb8] sm:$0xf]
    %v3352 = vld [vmem:[#allocation2 + $0xbc] sm:$0xf]
    %v3353 = vld [vmem:[#allocation2 + $0xc0] sm:$0xf]
    %v3354 = vld [vmem:[#allocation2 + $0x4] sm:$0xc]
    %v3355 = vld [vmem:[#allocation2 + $0xc4] sm:$0x3]
    %v3356 = vld [vmem:[#allocation2 + $0xc4] sm:$0xf]
    %v3405 = vunpack.c.l.b16 %v3306
    %v3406 = vunpack.c.l.b16 %v3307
    %v3407 = vunpack.c.l.b16 %v3308
    %v3408 = vunpack.c.l.b16 %v3309
    %v3409 = vunpack.c.l.b16 %v3310
    %v3410 = vunpack.c.l.b16 %v3311
    %v3411 = vunpack.c.l.b16 %v3312
    %v3412 = vunpack.c.l.b16 %v3313
    %v3413 = vunpack.c.l.b16 %v3314
    %v3414 = vunpack.c.l.b16 %v3315
    %v3415 = vunpack.c.l.b16 %v3316
    %v3416 = vunpack.c.l.b16 %v3317
    %v3417 = vunpack.c.l.b16 %v3318
    %v3418 = vunpack.c.l.b16 %v3319
    %v3419 = vunpack.c.l.b16 %v3320
    %v3420 = vunpack.c.l.b16 %v3321
    %v3421 = vunpack.c.l.b16 %v3322
    %v3422 = vunpack.c.l.b16 %v3323
    %v3423 = vunpack.c.l.b16 %v3324
    %v3424 = vunpack.c.l.b16 %v3325
    %v3425 = vunpack.c.l.b16 %v3326
    %v3426 = vunpack.c.l.b16 %v3327
    %v3427 = vunpack.c.l.b16 %v3328
    %v3428 = vunpack.c.l.b16 %v3329
    %v3429 = vunpack.c.l.b16 %v3330
    %v3430 = vunpack.c.l.b16 %v3331
    %v3431 = vunpack.c.l.b16 %v3332
    %v3432 = vunpack.c.l.b16 %v3333
    %v3433 = vunpack.c.l.b16 %v3334
    %v3434 = vunpack.c.l.b16 %v3335
    %v3435 = vunpack.c.l.b16 %v3336
    %v3436 = vunpack.c.l.b16 %v3337
    %v3437 = vunpack.c.l.b16 %v3338
    %v3438 = vunpack.c.l.b16 %v3339
    %v3439 = vunpack.c.l.b16 %v3340
    %v3440 = vunpack.c.l.b16 %v3341
    %v3441 = vunpack.c.l.b16 %v3342
    %v3442 = vunpack.c.l.b16 %v3343
    %v3443 = vunpack.c.l.b16 %v3344
    %v3444 = vunpack.c.l.b16 %v3345
    %v3445 = vunpack.c.l.b16 %v3346
    %v3446 = vunpack.c.l.b16 %v3347
    %v3447 = vunpack.c.l.b16 %v3348
    %v3448 = vunpack.c.l.b16 %v3349
    %v3449 = vunpack.c.l.b16 %v3350
    %v3450 = vunpack.c.l.b16 %v3351
    %v3451 = vunpack.c.l.b16 %v3352
    %v3452 = vunpack.c.l.b16 %v3353
    %v3453 = vpack.c.b16 %v3406, %v3405
    %v3454 = vpack.c.b16 %v3408, %v3407
    %v3455 = vpack.c.b16 %v3410, %v3409
    %v3456 = vpack.c.b16 %v3412, %v3411
    %v3457 = vpack.c.b16 %v3414, %v3413
    %v3458 = vpack.c.b16 %v3416, %v3415
    %v3459 = vpack.c.b16 %v3418, %v3417
    %v3460 = vpack.c.b16 %v3420, %v3419
    %v3461 = vpack.c.b16 %v3422, %v3421
    %v3462 = vpack.c.b16 %v3424, %v3423
    %v3463 = vpack.c.b16 %v3426, %v3425
    %v3464 = vpack.c.b16 %v3428, %v3427
    %v3465 = vpack.c.b16 %v3430, %v3429
    %v3466 = vpack.c.b16 %v3432, %v3431
    %v3467 = vpack.c.b16 %v3434, %v3433
    %v3468 = vpack.c.b16 %v3436, %v3435
    %v3469 = vpack.c.b16 %v3438, %v3437
    %v3470 = vpack.c.b16 %v3440, %v3439
    %v3471 = vpack.c.b16 %v3442, %v3441
    %v3472 = vpack.c.b16 %v3444, %v3443
    %v3473 = vpack.c.b16 %v3446, %v3445
    %v3474 = vpack.c.b16 %v3448, %v3447
    %v3475 = vpack.c.b16 %v3450, %v3449
    %v3476 = vpack.c.b16 %v3452, %v3451
    %v3479 = vunpack.c.l.b16 %v3354
    %v3480 = vunpack.c.l.b16 %v3355
    %v3481 = vpack.c.b16 %v3406, %v3479
    %v3482 = vpack.c.b16 %v3480, %v3480
    %v3483 = vrot.slane %v3481, 2
    %v3484 = vrot.slane %v3454, 2
    %v3485 = vsel %vm2276, %v3483, %v3484
    %v3486 = vrot.slane %v3455, 2
    %v3487 = vsel %vm2276, %v3484, %v3486
    %v3488 = vrot.slane %v3456, 2
    %v3489 = vsel %vm2276, %v3486, %v3488
    %v3490 = vrot.slane %v3457, 2
    %v3491 = vsel %vm2276, %v3488, %v3490
    %v3492 = vrot.slane %v3458, 2
    %v3493 = vsel %vm2276, %v3490, %v3492
    %v3494 = vrot.slane %v3459, 2
    %v3495 = vsel %vm2276, %v3492, %v3494
    %v3496 = vrot.slane %v3460, 2
    %v3497 = vsel %vm2276, %v3494, %v3496
    %v3498 = vrot.slane %v3461, 2
    %v3499 = vsel %vm2276, %v3496, %v3498
    %v3500 = vrot.slane %v3462, 2
    %v3501 = vsel %vm2276, %v3498, %v3500
    %v3502 = vrot.slane %v3463, 2
    %v3503 = vsel %vm2276, %v3500, %v3502
    %v3504 = vrot.slane %v3464, 2
    %v3505 = vsel %vm2276, %v3502, %v3504
    %v3506 = vrot.slane %v3465, 2
    %v3507 = vsel %vm2276, %v3504, %v3506
    %v3508 = vrot.slane %v3466, 2
    %v3509 = vsel %vm2276, %v3506, %v3508
    %v3510 = vrot.slane %v3467, 2
    %v3511 = vsel %vm2276, %v3508, %v3510
    %v3512 = vrot.slane %v3468, 2
    %v3513 = vsel %vm2276, %v3510, %v3512
    %v3514 = vrot.slane %v3469, 2
    %v3515 = vsel %vm2276, %v3512, %v3514
    %v3516 = vrot.slane %v3470, 2
    %v3517 = vsel %vm2276, %v3514, %v3516
    %v3518 = vrot.slane %v3471, 2
    %v3519 = vsel %vm2276, %v3516, %v3518
    %v3520 = vrot.slane %v3472, 2
    %v3521 = vsel %vm2276, %v3518, %v3520
    %v3522 = vrot.slane %v3473, 2
    %v3523 = vsel %vm2276, %v3520, %v3522
    %v3524 = vrot.slane %v3474, 2
    %v3525 = vsel %vm2276, %v3522, %v3524
    %v3526 = vrot.slane %v3475, 2
    %v3527 = vsel %vm2276, %v3524, %v3526
    %v3528 = vrot.slane %v3476, 2
    %v3529 = vsel %vm2276, %v3526, %v3528
    %v3530 = vrot.slane %v3482, 2
    %v3531 = vsel %vm2276, %v3528, %v3530
    %3532 = vrot.lane.b32.xlu0 %v3485, 64
    %v3533 = vpop.permute.xlu0 %3532
    %3534 = vrot.lane.b32.xlu0 %v3487, 64
    %v3535 = vpop.permute.xlu0 %3534
    %3536 = vrot.lane.b32.xlu0 %v3489, 64
    %v3537 = vpop.permute.xlu0 %3536
    %3538 = vrot.lane.b32.xlu0 %v3491, 64
    %v3539 = vpop.permute.xlu0 %3538
    %3540 = vrot.lane.b32.xlu0 %v3493, 64
    %v3541 = vpop.permute.xlu0 %3540
    %3542 = vrot.lane.b32.xlu0 %v3495, 64
    %v3543 = vpop.permute.xlu0 %3542
    %3544 = vrot.lane.b32.xlu0 %v3497, 64
    %v3545 = vpop.permute.xlu0 %3544
    %3546 = vrot.lane.b32.xlu0 %v3499, 64
    %v3547 = vpop.permute.xlu0 %3546
    %3548 = vrot.lane.b32.xlu0 %v3501, 64
    %v3549 = vpop.permute.xlu0 %3548
    %3550 = vrot.lane.b32.xlu0 %v3503, 64
    %v3551 = vpop.permute.xlu0 %3550
    %3552 = vrot.lane.b32.xlu0 %v3505, 64
    %v3553 = vpop.permute.xlu0 %3552
    %3554 = vrot.lane.b32.xlu0 %v3507, 64
    %v3555 = vpop.permute.xlu0 %3554
    %3556 = vrot.lane.b32.xlu0 %v3509, 64
    %v3557 = vpop.permute.xlu0 %3556
    %3558 = vrot.lane.b32.xlu0 %v3511, 64
    %v3559 = vpop.permute.xlu0 %3558
    %3560 = vrot.lane.b32.xlu0 %v3513, 64
    %v3561 = vpop.permute.xlu0 %3560
    %3562 = vrot.lane.b32.xlu0 %v3515, 64
    %v3563 = vpop.permute.xlu0 %3562
    %3564 = vrot.lane.b32.xlu0 %v3517, 64
    %v3565 = vpop.permute.xlu0 %3564
    %3566 = vrot.lane.b32.xlu0 %v3519, 64
    %v3567 = vpop.permute.xlu0 %3566
    %3568 = vrot.lane.b32.xlu0 %v3521, 64
    %v3569 = vpop.permute.xlu0 %3568
    %3570 = vrot.lane.b32.xlu0 %v3523, 64
    %v3571 = vpop.permute.xlu0 %3570
    %3572 = vrot.lane.b32.xlu0 %v3525, 64
    %v3573 = vpop.permute.xlu0 %3572
    %3574 = vrot.lane.b32.xlu0 %v3527, 64
    %v3575 = vpop.permute.xlu0 %3574
    %3576 = vrot.lane.b32.xlu0 %v3529, 64
    %v3577 = vpop.permute.xlu0 %3576
    %3578 = vrot.lane.b32.xlu0 %v3531, 64
    %v3579 = vpop.permute.xlu0 %3578
    %v3581 = vunpack.c.l.b16 %v3356
    %v3582 = vpack.c.b16 %v3407, %v3406
    %v3583 = vpack.c.b16 %v3409, %v3408
    %v3584 = vpack.c.b16 %v3411, %v3410
    %v3585 = vpack.c.b16 %v3413, %v3412
    %v3586 = vpack.c.b16 %v3415, %v3414
    %v3587 = vpack.c.b16 %v3417, %v3416
    %v3588 = vpack.c.b16 %v3419, %v3418
    %v3589 = vpack.c.b16 %v3421, %v3420
    %v3590 = vpack.c.b16 %v3423, %v3422
    %v3591 = vpack.c.b16 %v3425, %v3424
    %v3592 = vpack.c.b16 %v3427, %v3426
    %v3593 = vpack.c.b16 %v3429, %v3428
    %v3594 = vpack.c.b16 %v3431, %v3430
    %v3595 = vpack.c.b16 %v3433, %v3432
    %v3596 = vpack.c.b16 %v3435, %v3434
    %v3597 = vpack.c.b16 %v3437, %v3436
    %v3598 = vpack.c.b16 %v3439, %v3438
    %v3599 = vpack.c.b16 %v3441, %v3440
    %v3600 = vpack.c.b16 %v3443, %v3442
    %v3601 = vpack.c.b16 %v3445, %v3444
    %v3602 = vpack.c.b16 %v3447, %v3446
    %v3603 = vpack.c.b16 %v3449, %v3448
    %v3604 = vpack.c.b16 %v3451, %v3450
    %v3605 = vpack.c.b16 %v3581, %v3452
    %v3608 = vsel %vm662, %v3453, %v3533
    %v3612 = vsel %vm662, %v3454, %v3535
    %v3616 = vsel %vm662, %v3455, %v3537
    %v3620 = vsel %vm662, %v3456, %v3539
    %v3624 = vsel %vm662, %v3457, %v3541
    %v3628 = vsel %vm662, %v3458, %v3543
    %v3632 = vsel %vm662, %v3459, %v3545
    %v3636 = vsel %vm662, %v3460, %v3547
    %v3640 = vsel %vm662, %v3461, %v3549
    %v3644 = vsel %vm662, %v3462, %v3551
    %v3648 = vsel %vm662, %v3463, %v3553
    %v3652 = vsel %vm662, %v3464, %v3555
    %v3656 = vsel %vm662, %v3465, %v3557
    %v3660 = vsel %vm662, %v3466, %v3559
    %v3664 = vsel %vm662, %v3467, %v3561
    %v3668 = vsel %vm662, %v3468, %v3563
    %v3672 = vsel %vm662, %v3469, %v3565
    %v3676 = vsel %vm662, %v3470, %v3567
    %v3680 = vsel %vm662, %v3471, %v3569
    %v3684 = vsel %vm662, %v3472, %v3571
    %v3688 = vsel %vm662, %v3473, %v3573
    %v3692 = vsel %vm662, %v3474, %v3575
    %v3696 = vsel %vm662, %v3475, %v3577
    %v3700 = vsel %vm662, %v3476, %v3579
    %v3702 = vld [vmem:[%s2 + $0x100] sm:$0xf]
    %v3703 = vld [vmem:[%s2 + $0x104] sm:$0xf]
    %v3704 = vld [vmem:[%s2 + $0x108] sm:$0xf]
    %v3705 = vld [vmem:[%s2 + $0x10c] sm:$0xf]
    %v3706 = vld [vmem:[%s2 + $0x110] sm:$0xf]
    %v3707 = vld [vmem:[%s2 + $0x114] sm:$0xf]
    %v3708 = vld [vmem:[%s2 + $0x118] sm:$0xf]
    %v3709 = vld [vmem:[%s2 + $0x11c] sm:$0xf]
    %v3710 = vld [vmem:[%s2 + $0x120] sm:$0xf]
    %v3711 = vld [vmem:[%s2 + $0x124] sm:$0xf]
    %v3712 = vld [vmem:[%s2 + $0x128] sm:$0xf]
    %v3713 = vld [vmem:[%s2 + $0x12c] sm:$0xf]
    %v3714 = vld [vmem:[%s2 + $0x130] sm:$0xf]
    %v3715 = vld [vmem:[%s2 + $0x134] sm:$0xf]
    %v3716 = vld [vmem:[%s2 + $0x138] sm:$0xf]
    %v3717 = vld [vmem:[%s2 + $0x13c] sm:$0xf]
    %v3718 = vld [vmem:[%s2 + $0x140] sm:$0xf]
    %v3719 = vld [vmem:[%s2 + $0x144] sm:$0xf]
    %v3720 = vld [vmem:[%s2 + $0x148] sm:$0xf]
    %v3721 = vld [vmem:[%s2 + $0x14c] sm:$0xf]
    %v3722 = vld [vmem:[%s2 + $0x150] sm:$0xf]
    %v3723 = vld [vmem:[%s2 + $0x154] sm:$0xf]
    %v3724 = vld [vmem:[%s2 + $0x158] sm:$0xf]
    %v3725 = vld [vmem:[%s2 + $0x15c] sm:$0xf]
    %v3726 = vld [vmem:[%s3 + $0x20] sm:$0x1]
    %v3727 = vperm.slane %v3726, 0
    %v3752 = vunpack.c.l.b16 %v3702
    %v3753 = vunpack.c.l.b16 %v3703
    %v3754 = vunpack.c.l.b16 %v3704
    %v3755 = vunpack.c.l.b16 %v3705
    %v3756 = vunpack.c.l.b16 %v3706
    %v3757 = vunpack.c.l.b16 %v3707
    %v3758 = vunpack.c.l.b16 %v3708
    %v3759 = vunpack.c.l.b16 %v3709
    %v3760 = vunpack.c.l.b16 %v3710
    %v3761 = vunpack.c.l.b16 %v3711
    %v3762 = vunpack.c.l.b16 %v3712
    %v3763 = vunpack.c.l.b16 %v3713
    %v3764 = vunpack.c.l.b16 %v3714
    %v3765 = vunpack.c.l.b16 %v3715
    %v3766 = vunpack.c.l.b16 %v3716
    %v3767 = vunpack.c.l.b16 %v3717
    %v3768 = vunpack.c.l.b16 %v3718
    %v3769 = vunpack.c.l.b16 %v3719
    %v3770 = vunpack.c.l.b16 %v3720
    %v3771 = vunpack.c.l.b16 %v3721
    %v3772 = vunpack.c.l.b16 %v3722
    %v3773 = vunpack.c.l.b16 %v3723
    %v3774 = vunpack.c.l.b16 %v3724
    %v3775 = vunpack.c.l.b16 %v3725
    %v3776 = vpack.c.b16 %v3753, %v3752
    %v3777 = vpack.c.b16 %v3755, %v3754
    %v3778 = vpack.c.b16 %v3757, %v3756
    %v3779 = vpack.c.b16 %v3759, %v3758
    %v3780 = vpack.c.b16 %v3761, %v3760
    %v3781 = vpack.c.b16 %v3763, %v3762
    %v3782 = vpack.c.b16 %v3765, %v3764
    %v3783 = vpack.c.b16 %v3767, %v3766
    %v3784 = vpack.c.b16 %v3769, %v3768
    %v3785 = vpack.c.b16 %v3771, %v3770
    %v3786 = vpack.c.b16 %v3773, %v3772
    %v3787 = vpack.c.b16 %v3775, %v3774
    %v3801 = vsel %vm662, %v3582, 0
    %v3804 = vsel %vm662, %v3583, 0
    %v3807 = vsel %vm662, %v3584, 0
    %v3810 = vsel %vm662, %v3585, 0
    %v3813 = vsel %vm662, %v3586, 0
    %v3816 = vsel %vm662, %v3587, 0
    %v3819 = vsel %vm662, %v3588, 0
    %v3822 = vsel %vm662, %v3589, 0
    %v3825 = vsel %vm662, %v3590, 0
    %v3828 = vsel %vm662, %v3591, 0
    %v3831 = vsel %vm662, %v3592, 0
    %v3834 = vsel %vm662, %v3593, 0
    %v3837 = vsel %vm662, %v3594, 0
    %v3840 = vsel %vm662, %v3595, 0
    %v3843 = vsel %vm662, %v3596, 0
    %v3846 = vsel %vm662, %v3597, 0
    %v3849 = vsel %vm662, %v3598, 0
    %v3852 = vsel %vm662, %v3599, 0
    %v3855 = vsel %vm662, %v3600, 0
    %v3858 = vsel %vm662, %v3601, 0
    %v3861 = vsel %vm662, %v3602, 0
    %v3864 = vsel %vm662, %v3603, 0
    %v3867 = vsel %vm662, %v3604, 0
    %v3870 = vsel %vm662, %v3605, 0
    %3872 = vmatpush.bf16.msra.mxu0 %v3783
    %3873 = vmatpush.bf16.msra.mxu0 %v3782
    %3874 = vmatpush.bf16.msra.mxu0 %v3781
    %3875 = vmatpush.bf16.msra.mxu0 %v3780
    %3876 = vmatpush.bf16.msra.mxu0 %v3779
    %3877 = vmatpush.bf16.msra.mxu0 %v3778
    %3878 = vmatpush.bf16.msra.mxu0 %v3777
    %3879 = vmatpush.bf16.msra.mxu0 %v3776
    %3880 = vmatmul.bf16.gmra.mxu0 %v3608
    %v3881 = vpop.f32.mrf.mxu0
    %v3882 = vadd.f32 %v3727, %v3881
    %v3883 = vpop.f32.mrf.mxu0
    %v3884 = vadd.f32 %v3727, %v3883
    %3885 = vmatmul.bf16.gmra.mxu0 %v3612
    %v3886 = vpop.f32.mrf.mxu0
    %v3887 = vadd.f32 %v3727, %v3886
    %v3888 = vpop.f32.mrf.mxu0
    %v3889 = vadd.f32 %v3727, %v3888
    %3890 = vmatmul.bf16.gmra.mxu0 %v3616
    %v3891 = vpop.f32.mrf.mxu0
    %v3892 = vadd.f32 %v3727, %v3891
    %v3893 = vpop.f32.mrf.mxu0
    %v3894 = vadd.f32 %v3727, %v3893
    %3895 = vmatmul.bf16.gmra.mxu0 %v3620
    %v3896 = vpop.f32.mrf.mxu0
    %v3897 = vadd.f32 %v3727, %v3896
    %v3898 = vpop.f32.mrf.mxu0
    %v3899 = vadd.f32 %v3727, %v3898
    %3900 = vmatmul.bf16.gmra.mxu0 %v3624
    %v3901 = vpop.f32.mrf.mxu0
    %v3902 = vadd.f32 %v3727, %v3901
    %v3903 = vpop.f32.mrf.mxu0
    %v3904 = vadd.f32 %v3727, %v3903
    %3905 = vmatmul.bf16.gmra.mxu0 %v3628
    %v3906 = vpop.f32.mrf.mxu0
    %v3907 = vadd.f32 %v3727, %v3906
    %v3908 = vpop.f32.mrf.mxu0
    %v3909 = vadd.f32 %v3727, %v3908
    %3910 = vmatmul.bf16.gmra.mxu0 %v3632
    %v3911 = vpop.f32.mrf.mxu0
    %v3912 = vadd.f32 %v3727, %v3911
    %v3913 = vpop.f32.mrf.mxu0
    %v3914 = vadd.f32 %v3727, %v3913
    %3915 = vmatmul.bf16.gmra.mxu0 %v3636
    %v3916 = vpop.f32.mrf.mxu0
    %v3917 = vadd.f32 %v3727, %v3916
    %v3918 = vpop.f32.mrf.mxu0
    %v3919 = vadd.f32 %v3727, %v3918
    %3920 = vmatmul.bf16.gmra.mxu0 %v3640
    %v3921 = vpop.f32.mrf.mxu0
    %v3922 = vadd.f32 %v3727, %v3921
    %v3923 = vpop.f32.mrf.mxu0
    %v3924 = vadd.f32 %v3727, %v3923
    %3925 = vmatmul.bf16.gmra.mxu0 %v3644
    %v3926 = vpop.f32.mrf.mxu0
    %v3927 = vadd.f32 %v3727, %v3926
    %v3928 = vpop.f32.mrf.mxu0
    %v3929 = vadd.f32 %v3727, %v3928
    %3930 = vmatmul.bf16.gmra.mxu0 %v3648
    %v3931 = vpop.f32.mrf.mxu0
    %v3932 = vadd.f32 %v3727, %v3931
    %v3933 = vpop.f32.mrf.mxu0
    %v3934 = vadd.f32 %v3727, %v3933
    %3935 = vmatmul.bf16.gmra.mxu0 %v3652
    %v3936 = vpop.f32.mrf.mxu0
    %v3937 = vadd.f32 %v3727, %v3936
    %v3938 = vpop.f32.mrf.mxu0
    %v3939 = vadd.f32 %v3727, %v3938
    %3940 = vmatmul.bf16.gmra.mxu0 %v3656
    %v3941 = vpop.f32.mrf.mxu0
    %v3942 = vadd.f32 %v3727, %v3941
    %v3943 = vpop.f32.mrf.mxu0
    %v3944 = vadd.f32 %v3727, %v3943
    %3945 = vmatmul.bf16.gmra.mxu0 %v3660
    %v3946 = vpop.f32.mrf.mxu0
    %v3947 = vadd.f32 %v3727, %v3946
    %v3948 = vpop.f32.mrf.mxu0
    %v3949 = vadd.f32 %v3727, %v3948
    %3950 = vmatmul.bf16.gmra.mxu0 %v3664
    %v3951 = vpop.f32.mrf.mxu0
    %v3952 = vadd.f32 %v3727, %v3951
    %v3953 = vpop.f32.mrf.mxu0
    %v3954 = vadd.f32 %v3727, %v3953
    %3955 = vmatmul.bf16.gmra.mxu0 %v3668
    %v3956 = vpop.f32.mrf.mxu0
    %v3957 = vadd.f32 %v3727, %v3956
    %v3958 = vpop.f32.mrf.mxu0
    %v3959 = vadd.f32 %v3727, %v3958
    %3960 = vmatmul.bf16.gmra.mxu0 %v3672
    %v3961 = vpop.f32.mrf.mxu0
    %v3962 = vadd.f32 %v3727, %v3961
    %v3963 = vpop.f32.mrf.mxu0
    %v3964 = vadd.f32 %v3727, %v3963
    %3965 = vmatmul.bf16.gmra.mxu0 %v3676
    %v3966 = vpop.f32.mrf.mxu0
    %v3967 = vadd.f32 %v3727, %v3966
    %v3968 = vpop.f32.mrf.mxu0
    %v3969 = vadd.f32 %v3727, %v3968
    %3970 = vmatmul.bf16.gmra.mxu0 %v3680
    %v3971 = vpop.f32.mrf.mxu0
    %v3972 = vadd.f32 %v3727, %v3971
    %v3973 = vpop.f32.mrf.mxu0
    %v3974 = vadd.f32 %v3727, %v3973
    %3975 = vmatmul.bf16.gmra.mxu0 %v3684
    %v3976 = vpop.f32.mrf.mxu0
    %v3977 = vadd.f32 %v3727, %v3976
    %v3978 = vpop.f32.mrf.mxu0
    %v3979 = vadd.f32 %v3727, %v3978
    %3980 = vmatmul.bf16.gmra.mxu0 %v3688
    %v3981 = vpop.f32.mrf.mxu0
    %v3982 = vadd.f32 %v3727, %v3981
    %v3983 = vpop.f32.mrf.mxu0
    %v3984 = vadd.f32 %v3727, %v3983
    %3985 = vmatmul.bf16.gmra.mxu0 %v3692
    %v3986 = vpop.f32.mrf.mxu0
    %v3987 = vadd.f32 %v3727, %v3986
    %v3988 = vpop.f32.mrf.mxu0
    %v3989 = vadd.f32 %v3727, %v3988
    %3990 = vmatmul.bf16.gmra.mxu0 %v3696
    %v3991 = vpop.f32.mrf.mxu0
    %v3992 = vadd.f32 %v3727, %v3991
    %v3993 = vpop.f32.mrf.mxu0
    %v3994 = vadd.f32 %v3727, %v3993
    %3995 = vmatmul.bf16.gmra.mxu0 %v3700
    %v3996 = vpop.f32.mrf.mxu0
    %v3997 = vadd.f32 %v3727, %v3996
    %v3998 = vpop.f32.mrf.mxu0
    %v3999 = vadd.f32 %v3727, %v3998
    %4000 = vdwg.mxu0
    %4001 = vmatpush.bf16.msra.mxu0 0
    %4002 = vmatpush.bf16.msra.mxu0 0
    %4003 = vmatpush.bf16.msra.mxu0 0
    %4004 = vmatpush.bf16.msra.mxu0 0
    %4005 = vmatpush.bf16.msra.mxu0 %v3787
    %4006 = vmatpush.bf16.msra.mxu0 %v3786
    %4007 = vmatpush.bf16.msra.mxu0 %v3785
    %4008 = vmatpush.bf16.msra.mxu0 %v3784
    %4009 = vmatmul.bf16.gmra.mxu0 %v3801
    %v4010 = vpop.f32.mrf.mxu0
    %v4011 = vadd.f32 %v3882, %v4010
    %v4012 = vpop.f32.mrf.mxu0
    %v4013 = vadd.f32 %v3884, %v4012
    %4014 = vmatmul.bf16.gmra.mxu0 %v3804
    %v4015 = vpop.f32.mrf.mxu0
    %v4016 = vadd.f32 %v3887, %v4015
    %v4017 = vpop.f32.mrf.mxu0
    %v4018 = vadd.f32 %v3889, %v4017
    %4019 = vmatmul.bf16.gmra.mxu0 %v3807
    %v4020 = vpop.f32.mrf.mxu0
    %v4021 = vadd.f32 %v3892, %v4020
    %v4022 = vpop.f32.mrf.mxu0
    %v4023 = vadd.f32 %v3894, %v4022
    %4024 = vmatmul.bf16.gmra.mxu0 %v3810
    %v4025 = vpop.f32.mrf.mxu0
    %v4026 = vadd.f32 %v3897, %v4025
    %v4027 = vpop.f32.mrf.mxu0
    %v4028 = vadd.f32 %v3899, %v4027
    %4029 = vmatmul.bf16.gmra.mxu0 %v3813
    %v4030 = vpop.f32.mrf.mxu0
    %v4031 = vadd.f32 %v3902, %v4030
    %v4032 = vpop.f32.mrf.mxu0
    %v4033 = vadd.f32 %v3904, %v4032
    %4034 = vmatmul.bf16.gmra.mxu0 %v3816
    %v4035 = vpop.f32.mrf.mxu0
    %v4036 = vadd.f32 %v3907, %v4035
    %v4037 = vpop.f32.mrf.mxu0
    %v4038 = vadd.f32 %v3909, %v4037
    %4039 = vmatmul.bf16.gmra.mxu0 %v3819
    %v4040 = vpop.f32.mrf.mxu0
    %v4041 = vadd.f32 %v3912, %v4040
    %v4042 = vpop.f32.mrf.mxu0
    %v4043 = vadd.f32 %v3914, %v4042
    %4044 = vmatmul.bf16.gmra.mxu0 %v3822
    %v4045 = vpop.f32.mrf.mxu0
    %v4046 = vadd.f32 %v3917, %v4045
    %v4047 = vpop.f32.mrf.mxu0
    %v4048 = vadd.f32 %v3919, %v4047
    %4049 = vmatmul.bf16.gmra.mxu0 %v3825
    %v4050 = vpop.f32.mrf.mxu0
    %v4051 = vadd.f32 %v3922, %v4050
    %v4052 = vpop.f32.mrf.mxu0
    %v4053 = vadd.f32 %v3924, %v4052
    %4054 = vmatmul.bf16.gmra.mxu0 %v3828
    %v4055 = vpop.f32.mrf.mxu0
    %v4056 = vadd.f32 %v3927, %v4055
    %v4057 = vpop.f32.mrf.mxu0
    %v4058 = vadd.f32 %v3929, %v4057
    %4059 = vmatmul.bf16.gmra.mxu0 %v3831
    %v4060 = vpop.f32.mrf.mxu0
    %v4061 = vadd.f32 %v3932, %v4060
    %v4062 = vpop.f32.mrf.mxu0
    %v4063 = vadd.f32 %v3934, %v4062
    %4064 = vmatmul.bf16.gmra.mxu0 %v3834
    %v4065 = vpop.f32.mrf.mxu0
    %v4066 = vadd.f32 %v3937, %v4065
    %v4067 = vpop.f32.mrf.mxu0
    %v4068 = vadd.f32 %v3939, %v4067
    %4069 = vmatmul.bf16.gmra.mxu0 %v3837
    %v4070 = vpop.f32.mrf.mxu0
    %v4071 = vadd.f32 %v3942, %v4070
    %v4072 = vpop.f32.mrf.mxu0
    %v4073 = vadd.f32 %v3944, %v4072
    %4074 = vmatmul.bf16.gmra.mxu0 %v3840
    %v4075 = vpop.f32.mrf.mxu0
    %v4076 = vadd.f32 %v3947, %v4075
    %v4077 = vpop.f32.mrf.mxu0
    %v4078 = vadd.f32 %v3949, %v4077
    %4079 = vmatmul.bf16.gmra.mxu0 %v3843
    %v4080 = vpop.f32.mrf.mxu0
    %v4081 = vadd.f32 %v3952, %v4080
    %v4082 = vpop.f32.mrf.mxu0
    %v4083 = vadd.f32 %v3954, %v4082
    %4084 = vmatmul.bf16.gmra.mxu0 %v3846
    %v4085 = vpop.f32.mrf.mxu0
    %v4086 = vadd.f32 %v3957, %v4085
    %v4087 = vpop.f32.mrf.mxu0
    %v4088 = vadd.f32 %v3959, %v4087
    %4089 = vmatmul.bf16.gmra.mxu0 %v3849
    %v4090 = vpop.f32.mrf.mxu0
    %v4091 = vadd.f32 %v3962, %v4090
    %v4092 = vpop.f32.mrf.mxu0
    %v4093 = vadd.f32 %v3964, %v4092
    %4094 = vmatmul.bf16.gmra.mxu0 %v3852
    %v4095 = vpop.f32.mrf.mxu0
    %v4096 = vadd.f32 %v3967, %v4095
    %v4097 = vpop.f32.mrf.mxu0
    %v4098 = vadd.f32 %v3969, %v4097
    %4099 = vmatmul.bf16.gmra.mxu0 %v3855
    %v4100 = vpop.f32.mrf.mxu0
    %v4101 = vadd.f32 %v3972, %v4100
    %v4102 = vpop.f32.mrf.mxu0
    %v4103 = vadd.f32 %v3974, %v4102
    %4104 = vmatmul.bf16.gmra.mxu0 %v3858
    %v4105 = vpop.f32.mrf.mxu0
    %v4106 = vadd.f32 %v3977, %v4105
    %v4107 = vpop.f32.mrf.mxu0
    %v4108 = vadd.f32 %v3979, %v4107
    %4109 = vmatmul.bf16.gmra.mxu0 %v3861
    %v4110 = vpop.f32.mrf.mxu0
    %v4111 = vadd.f32 %v3982, %v4110
    %v4112 = vpop.f32.mrf.mxu0
    %v4113 = vadd.f32 %v3984, %v4112
    %4114 = vmatmul.bf16.gmra.mxu0 %v3864
    %v4115 = vpop.f32.mrf.mxu0
    %v4116 = vadd.f32 %v3987, %v4115
    %v4117 = vpop.f32.mrf.mxu0
    %v4118 = vadd.f32 %v3989, %v4117
    %4119 = vmatmul.bf16.gmra.mxu0 %v3867
    %v4120 = vpop.f32.mrf.mxu0
    %v4121 = vadd.f32 %v3992, %v4120
    %v4122 = vpop.f32.mrf.mxu0
    %v4123 = vadd.f32 %v3994, %v4122
    %4124 = vmatmul.bf16.gmra.mxu0 %v3870
    %v4125 = vpop.f32.mrf.mxu0
    %v4126 = vadd.f32 %v3997, %v4125
    %v4127 = vpop.f32.mrf.mxu0
    %v4128 = vadd.f32 %v3999, %v4127
    %4129 = vdwg.mxu0
    %v4130 = vmax.f32 %v4011, 0.0
    %v4131 = vmax.f32 %v4013, 0.0
    %v4132 = vmax.f32 %v4016, 0.0
    %v4133 = vmax.f32 %v4018, 0.0
    %v4134 = vmax.f32 %v4021, 0.0
    %v4135 = vmax.f32 %v4023, 0.0
    %v4136 = vmax.f32 %v4026, 0.0
    %v4137 = vmax.f32 %v4028, 0.0
    %v4138 = vmax.f32 %v4031, 0.0
    %v4139 = vmax.f32 %v4033, 0.0
    %v4140 = vmax.f32 %v4036, 0.0
    %v4141 = vmax.f32 %v4038, 0.0
    %v4142 = vmax.f32 %v4041, 0.0
    %v4143 = vmax.f32 %v4043, 0.0
    %v4144 = vmax.f32 %v4046, 0.0
    %v4145 = vmax.f32 %v4048, 0.0
    %v4146 = vmax.f32 %v4051, 0.0
    %v4147 = vmax.f32 %v4053, 0.0
    %v4148 = vmax.f32 %v4056, 0.0
    %v4149 = vmax.f32 %v4058, 0.0
    %v4150 = vmax.f32 %v4061, 0.0
    %v4151 = vmax.f32 %v4063, 0.0
    %v4152 = vmax.f32 %v4066, 0.0
    %v4153 = vmax.f32 %v4068, 0.0
    %v4154 = vmax.f32 %v4071, 0.0
    %v4155 = vmax.f32 %v4073, 0.0
    %v4156 = vmax.f32 %v4076, 0.0
    %v4157 = vmax.f32 %v4078, 0.0
    %v4158 = vmax.f32 %v4081, 0.0
    %v4159 = vmax.f32 %v4083, 0.0
    %v4160 = vmax.f32 %v4086, 0.0
    %v4161 = vmax.f32 %v4088, 0.0
    %v4162 = vmax.f32 %v4091, 0.0
    %v4163 = vmax.f32 %v4093, 0.0
    %v4164 = vmax.f32 %v4096, 0.0
    %v4165 = vmax.f32 %v4098, 0.0
    %v4166 = vmax.f32 %v4101, 0.0
    %v4167 = vmax.f32 %v4103, 0.0
    %v4168 = vmax.f32 %v4106, 0.0
    %v4169 = vmax.f32 %v4108, 0.0
    %v4170 = vmax.f32 %v4111, 0.0
    %v4171 = vmax.f32 %v4113, 0.0
    %v4172 = vmax.f32 %v4116, 0.0
    %v4173 = vmax.f32 %v4118, 0.0
    %v4174 = vmax.f32 %v4121, 0.0
    %v4175 = vmax.f32 %v4123, 0.0
    %v4176 = vmax.f32 %v4126, 0.0
    %v4177 = vmax.f32 %v4128, 0.0
    %v4178 = vpack.c.bf16 %v4131, %v4130
    %v4179 = vpack.c.bf16 %v4133, %v4132
    %v4180 = vpack.c.bf16 %v4135, %v4134
    %v4181 = vpack.c.bf16 %v4137, %v4136
    %v4182 = vpack.c.bf16 %v4139, %v4138
    %v4183 = vpack.c.bf16 %v4141, %v4140
    %v4184 = vpack.c.bf16 %v4143, %v4142
    %v4185 = vpack.c.bf16 %v4145, %v4144
    %v4186 = vpack.c.bf16 %v4147, %v4146
    %v4187 = vpack.c.bf16 %v4149, %v4148
    %v4188 = vpack.c.bf16 %v4151, %v4150
    %v4189 = vpack.c.bf16 %v4153, %v4152
    %v4190 = vpack.c.bf16 %v4155, %v4154
    %v4191 = vpack.c.bf16 %v4157, %v4156
    %v4192 = vpack.c.bf16 %v4159, %v4158
    %v4193 = vpack.c.bf16 %v4161, %v4160
    %v4194 = vpack.c.bf16 %v4163, %v4162
    %v4195 = vpack.c.bf16 %v4165, %v4164
    %v4196 = vpack.c.bf16 %v4167, %v4166
    %v4197 = vpack.c.bf16 %v4169, %v4168
    %v4198 = vpack.c.bf16 %v4171, %v4170
    %v4199 = vpack.c.bf16 %v4173, %v4172
    %v4200 = vpack.c.bf16 %v4175, %v4174
    %v4201 = vpack.c.bf16 %v4177, %v4176
    %v4202 = vld [vmem:[%s2 + $0x160] sm:$0xf]
    %v4203 = vld [vmem:[%s2 + $0x164] sm:$0xf]
    %v4204 = vld [vmem:[%s2 + $0x168] sm:$0xf]
    %v4205 = vld [vmem:[%s2 + $0x16c] sm:$0xf]
    %v4206 = vld [vmem:[%s2 + $0x170] sm:$0xf]
    %v4207 = vld [vmem:[%s2 + $0x174] sm:$0xf]
    %v4208 = vld [vmem:[%s2 + $0x178] sm:$0xf]
    %v4209 = vld [vmem:[%s2 + $0x17c] sm:$0xf]
    %v4210 = vld [vmem:[%s3 + $0x28] sm:$0x1]
    %v4211 = vperm.slane %v4210, 0
    %v4220 = vunpack.c.l.b16 %v4202
    %v4221 = vunpack.c.l.b16 %v4203
    %v4222 = vunpack.c.l.b16 %v4204
    %v4223 = vunpack.c.l.b16 %v4205
    %v4224 = vunpack.c.l.b16 %v4206
    %v4225 = vunpack.c.l.b16 %v4207
    %v4226 = vunpack.c.l.b16 %v4208
    %v4227 = vunpack.c.l.b16 %v4209
    %v4228 = vpack.c.b16 %v4221, %v4220
    %v4229 = vpack.c.b16 %v4223, %v4222
    %v4230 = vpack.c.b16 %v4225, %v4224
    %v4231 = vpack.c.b16 %v4227, %v4226
    %v4237 = vsel %vm662, %v4178, 0
    %v4240 = vsel %vm662, %v4179, 0
    %v4243 = vsel %vm662, %v4180, 0
    %v4246 = vsel %vm662, %v4181, 0
    %v4249 = vsel %vm662, %v4182, 0
    %v4252 = vsel %vm662, %v4183, 0
    %v4255 = vsel %vm662, %v4184, 0
    %v4258 = vsel %vm662, %v4185, 0
    %v4261 = vsel %vm662, %v4186, 0
    %v4264 = vsel %vm662, %v4187, 0
    %v4267 = vsel %vm662, %v4188, 0
    %v4270 = vsel %vm662, %v4189, 0
    %v4273 = vsel %vm662, %v4190, 0
    %v4276 = vsel %vm662, %v4191, 0
    %v4279 = vsel %vm662, %v4192, 0
    %v4282 = vsel %vm662, %v4193, 0
    %v4285 = vsel %vm662, %v4194, 0
    %v4288 = vsel %vm662, %v4195, 0
    %v4291 = vsel %vm662, %v4196, 0
    %v4294 = vsel %vm662, %v4197, 0
    %v4297 = vsel %vm662, %v4198, 0
    %v4300 = vsel %vm662, %v4199, 0
    %v4303 = vsel %vm662, %v4200, 0
    %v4306 = vsel %vm662, %v4201, 0
    %4308 = vmatpush.bf16.msra.mxu0 0
    %4309 = vmatpush.bf16.msra.mxu0 0
    %4310 = vmatpush.bf16.msra.mxu0 0
    %4311 = vmatpush.bf16.msra.mxu0 0
    %4312 = vmatpush.bf16.msra.mxu0 %v4231
    %4313 = vmatpush.bf16.msra.mxu0 %v4230
    %4314 = vmatpush.bf16.msra.mxu0 %v4229
    %4315 = vmatpush.bf16.msra.mxu0 %v4228
    %4316 = vmatmul.bf16.gmra.mxu0 %v4237
    %v4317 = vpop.f32.mrf.mxu0
    %v4318 = vadd.f32 %v4211, %v4317
    %v4319 = vpop.f32.mrf.mxu0
    %v4320 = vadd.f32 %v4211, %v4319
    %4321 = vmatmul.bf16.gmra.mxu0 %v4240
    %v4322 = vpop.f32.mrf.mxu0
    %v4323 = vadd.f32 %v4211, %v4322
    %v4324 = vpop.f32.mrf.mxu0
    %v4325 = vadd.f32 %v4211, %v4324
    %4326 = vmatmul.bf16.gmra.mxu0 %v4243
    %v4327 = vpop.f32.mrf.mxu0
    %v4328 = vadd.f32 %v4211, %v4327
    %v4329 = vpop.f32.mrf.mxu0
    %v4330 = vadd.f32 %v4211, %v4329
    %4331 = vmatmul.bf16.gmra.mxu0 %v4246
    %v4332 = vpop.f32.mrf.mxu0
    %v4333 = vadd.f32 %v4211, %v4332
    %v4334 = vpop.f32.mrf.mxu0
    %v4335 = vadd.f32 %v4211, %v4334
    %4336 = vmatmul.bf16.gmra.mxu0 %v4249
    %v4337 = vpop.f32.mrf.mxu0
    %v4338 = vadd.f32 %v4211, %v4337
    %v4339 = vpop.f32.mrf.mxu0
    %v4340 = vadd.f32 %v4211, %v4339
    %4341 = vmatmul.bf16.gmra.mxu0 %v4252
    %v4342 = vpop.f32.mrf.mxu0
    %v4343 = vadd.f32 %v4211, %v4342
    %v4344 = vpop.f32.mrf.mxu0
    %v4345 = vadd.f32 %v4211, %v4344
    %4346 = vmatmul.bf16.gmra.mxu0 %v4255
    %v4347 = vpop.f32.mrf.mxu0
    %v4348 = vadd.f32 %v4211, %v4347
    %v4349 = vpop.f32.mrf.mxu0
    %v4350 = vadd.f32 %v4211, %v4349
    %4351 = vmatmul.bf16.gmra.mxu0 %v4258
    %v4352 = vpop.f32.mrf.mxu0
    %v4353 = vadd.f32 %v4211, %v4352
    %v4354 = vpop.f32.mrf.mxu0
    %v4355 = vadd.f32 %v4211, %v4354
    %4356 = vmatmul.bf16.gmra.mxu0 %v4261
    %v4357 = vpop.f32.mrf.mxu0
    %v4358 = vadd.f32 %v4211, %v4357
    %v4359 = vpop.f32.mrf.mxu0
    %v4360 = vadd.f32 %v4211, %v4359
    %4361 = vmatmul.bf16.gmra.mxu0 %v4264
    %v4362 = vpop.f32.mrf.mxu0
    %v4363 = vadd.f32 %v4211, %v4362
    %v4364 = vpop.f32.mrf.mxu0
    %v4365 = vadd.f32 %v4211, %v4364
    %4366 = vmatmul.bf16.gmra.mxu0 %v4267
    %v4367 = vpop.f32.mrf.mxu0
    %v4368 = vadd.f32 %v4211, %v4367
    %v4369 = vpop.f32.mrf.mxu0
    %v4370 = vadd.f32 %v4211, %v4369
    %4371 = vmatmul.bf16.gmra.mxu0 %v4270
    %v4372 = vpop.f32.mrf.mxu0
    %v4373 = vadd.f32 %v4211, %v4372
    %v4374 = vpop.f32.mrf.mxu0
    %v4375 = vadd.f32 %v4211, %v4374
    %4376 = vmatmul.bf16.gmra.mxu0 %v4273
    %v4377 = vpop.f32.mrf.mxu0
    %v4378 = vadd.f32 %v4211, %v4377
    %v4379 = vpop.f32.mrf.mxu0
    %v4380 = vadd.f32 %v4211, %v4379
    %4381 = vmatmul.bf16.gmra.mxu0 %v4276
    %v4382 = vpop.f32.mrf.mxu0
    %v4383 = vadd.f32 %v4211, %v4382
    %v4384 = vpop.f32.mrf.mxu0
    %v4385 = vadd.f32 %v4211, %v4384
    %4386 = vmatmul.bf16.gmra.mxu0 %v4279
    %v4387 = vpop.f32.mrf.mxu0
    %v4388 = vadd.f32 %v4211, %v4387
    %v4389 = vpop.f32.mrf.mxu0
    %v4390 = vadd.f32 %v4211, %v4389
    %4391 = vmatmul.bf16.gmra.mxu0 %v4282
    %v4392 = vpop.f32.mrf.mxu0
    %v4393 = vadd.f32 %v4211, %v4392
    %v4394 = vpop.f32.mrf.mxu0
    %v4395 = vadd.f32 %v4211, %v4394
    %4396 = vmatmul.bf16.gmra.mxu0 %v4285
    %v4397 = vpop.f32.mrf.mxu0
    %v4398 = vadd.f32 %v4211, %v4397
    %v4399 = vpop.f32.mrf.mxu0
    %v4400 = vadd.f32 %v4211, %v4399
    %4401 = vmatmul.bf16.gmra.mxu0 %v4288
    %v4402 = vpop.f32.mrf.mxu0
    %v4403 = vadd.f32 %v4211, %v4402
    %v4404 = vpop.f32.mrf.mxu0
    %v4405 = vadd.f32 %v4211, %v4404
    %4406 = vmatmul.bf16.gmra.mxu0 %v4291
    %v4407 = vpop.f32.mrf.mxu0
    %v4408 = vadd.f32 %v4211, %v4407
    %v4409 = vpop.f32.mrf.mxu0
    %v4410 = vadd.f32 %v4211, %v4409
    %4411 = vmatmul.bf16.gmra.mxu0 %v4294
    %v4412 = vpop.f32.mrf.mxu0
    %v4413 = vadd.f32 %v4211, %v4412
    %v4414 = vpop.f32.mrf.mxu0
    %v4415 = vadd.f32 %v4211, %v4414
    %4416 = vmatmul.bf16.gmra.mxu0 %v4297
    %v4417 = vpop.f32.mrf.mxu0
    %v4418 = vadd.f32 %v4211, %v4417
    %v4419 = vpop.f32.mrf.mxu0
    %v4420 = vadd.f32 %v4211, %v4419
    %4421 = vmatmul.bf16.gmra.mxu0 %v4300
    %v4422 = vpop.f32.mrf.mxu0
    %v4423 = vadd.f32 %v4211, %v4422
    %v4424 = vpop.f32.mrf.mxu0
    %v4425 = vadd.f32 %v4211, %v4424
    %4426 = vmatmul.bf16.gmra.mxu0 %v4303
    %v4427 = vpop.f32.mrf.mxu0
    %v4428 = vadd.f32 %v4211, %v4427
    %v4429 = vpop.f32.mrf.mxu0
    %v4430 = vadd.f32 %v4211, %v4429
    %4431 = vmatmul.bf16.gmra.mxu0 %v4306
    %v4432 = vpop.f32.mrf.mxu0
    %v4433 = vadd.f32 %v4211, %v4432
    %v4434 = vpop.f32.mrf.mxu0
    %v4435 = vadd.f32 %v4211, %v4434
    %4436 = vdwg.mxu0
    %v4437 = vmax.f32 %v4318, 0.0
    %v4438 = vmax.f32 %v4320, 0.0
    %v4439 = vmax.f32 %v4323, 0.0
    %v4440 = vmax.f32 %v4325, 0.0
    %v4441 = vmax.f32 %v4328, 0.0
    %v4442 = vmax.f32 %v4330, 0.0
    %v4443 = vmax.f32 %v4333, 0.0
    %v4444 = vmax.f32 %v4335, 0.0
    %v4445 = vmax.f32 %v4338, 0.0
    %v4446 = vmax.f32 %v4340, 0.0
    %v4447 = vmax.f32 %v4343, 0.0
    %v4448 = vmax.f32 %v4345, 0.0
    %v4449 = vmax.f32 %v4348, 0.0
    %v4450 = vmax.f32 %v4350, 0.0
    %v4451 = vmax.f32 %v4353, 0.0
    %v4452 = vmax.f32 %v4355, 0.0
    %v4453 = vmax.f32 %v4358, 0.0
    %v4454 = vmax.f32 %v4360, 0.0
    %v4455 = vmax.f32 %v4363, 0.0
    %v4456 = vmax.f32 %v4365, 0.0
    %v4457 = vmax.f32 %v4368, 0.0
    %v4458 = vmax.f32 %v4370, 0.0
    %v4459 = vmax.f32 %v4373, 0.0
    %v4460 = vmax.f32 %v4375, 0.0
    %v4461 = vmax.f32 %v4378, 0.0
    %v4462 = vmax.f32 %v4380, 0.0
    %v4463 = vmax.f32 %v4383, 0.0
    %v4464 = vmax.f32 %v4385, 0.0
    %v4465 = vmax.f32 %v4388, 0.0
    %v4466 = vmax.f32 %v4390, 0.0
    %v4467 = vmax.f32 %v4393, 0.0
    %v4468 = vmax.f32 %v4395, 0.0
    %v4469 = vmax.f32 %v4398, 0.0
    %v4470 = vmax.f32 %v4400, 0.0
    %v4471 = vmax.f32 %v4403, 0.0
    %v4472 = vmax.f32 %v4405, 0.0
    %v4473 = vmax.f32 %v4408, 0.0
    %v4474 = vmax.f32 %v4410, 0.0
    %v4475 = vmax.f32 %v4413, 0.0
    %v4476 = vmax.f32 %v4415, 0.0
    %v4477 = vmax.f32 %v4418, 0.0
    %v4478 = vmax.f32 %v4420, 0.0
    %v4479 = vmax.f32 %v4423, 0.0
    %v4480 = vmax.f32 %v4425, 0.0
    %v4481 = vmax.f32 %v4428, 0.0
    %v4482 = vmax.f32 %v4430, 0.0
    %v4483 = vmax.f32 %v4433, 0.0
    %v4484 = vmax.f32 %v4435, 0.0
    %vm4485 = vcmp.lt.s32.totalorder %v158, 30
    %vm4486 = vcmp.lt.s32.totalorder %v159, 30
    %vm4487 = vcmp.lt.s32.totalorder %v160, 30
    %vm4488 = vcmp.lt.s32.totalorder %v161, 30
    %vm4489 = vcmp.lt.s32.totalorder %v162, 30
    %vm4490 = vcmp.lt.s32.totalorder %v163, 30
    %v4491 = vsel %vm4485, %v4437, 0.0
    %v4492 = vsel %vm4486, %v4438, 0.0
    %v4493 = vsel %vm4487, %v4439, 0.0
    %v4494 = vsel %vm4488, %v4440, 0.0
    %v4495 = vsel %vm4489, %v4441, 0.0
    %v4496 = vsel %vm4490, %v4442, 0.0
    %v4497 = vsel %vm4485, %v4443, 0.0
    %v4498 = vsel %vm4486, %v4444, 0.0
    %v4499 = vsel %vm4487, %v4445, 0.0
    %v4500 = vsel %vm4488, %v4446, 0.0
    %v4501 = vsel %vm4489, %v4447, 0.0
    %v4502 = vsel %vm4490, %v4448, 0.0
    %v4503 = vsel %vm4485, %v4449, 0.0
    %v4504 = vsel %vm4486, %v4450, 0.0
    %v4505 = vsel %vm4487, %v4451, 0.0
    %v4506 = vsel %vm4488, %v4452, 0.0
    %v4507 = vsel %vm4489, %v4453, 0.0
    %v4508 = vsel %vm4490, %v4454, 0.0
    %v4509 = vsel %vm4485, %v4455, 0.0
    %v4510 = vsel %vm4486, %v4456, 0.0
    %v4511 = vsel %vm4487, %v4457, 0.0
    %v4512 = vsel %vm4488, %v4458, 0.0
    %v4513 = vsel %vm4489, %v4459, 0.0
    %v4514 = vsel %vm4490, %v4460, 0.0
    %v4515 = vsel %vm4485, %v4461, 0.0
    %v4516 = vsel %vm4486, %v4462, 0.0
    %v4517 = vsel %vm4487, %v4463, 0.0
    %v4518 = vsel %vm4488, %v4464, 0.0
    %v4519 = vsel %vm4489, %v4465, 0.0
    %v4520 = vsel %vm4490, %v4466, 0.0
    %v4521 = vsel %vm4485, %v4467, 0.0
    %v4522 = vsel %vm4486, %v4468, 0.0
    %v4523 = vsel %vm4487, %v4469, 0.0
    %v4524 = vsel %vm4488, %v4470, 0.0
    %v4525 = vsel %vm4489, %v4471, 0.0
    %v4526 = vsel %vm4490, %v4472, 0.0
    %v4527 = vsel %vm4485, %v4473, 0.0
    %v4528 = vsel %vm4486, %v4474, 0.0
    %v4529 = vsel %vm4487, %v4475, 0.0
    %v4530 = vsel %vm4488, %v4476, 0.0
    %v4531 = vsel %vm4489, %v4477, 0.0
    %v4532 = vsel %vm4490, %v4478, 0.0
    %v4533 = vsel %vm4485, %v4479, 0.0
    %v4534 = vsel %vm4486, %v4480, 0.0
    %v4535 = vsel %vm4487, %v4481, 0.0
    %v4536 = vsel %vm4488, %v4482, 0.0
    %v4537 = vsel %vm4489, %v4483, 0.0
    %v4538 = vsel %vm4490, %v4484, 0.0
    %v4539 = vpack.c.bf16 %v4491, %v4491
    %v4540 = vpack.c.bf16 %v4492, %v4492
    %v4541 = vpack.c.bf16 %v4493, %v4493
    %v4542 = vpack.c.bf16 %v4494, %v4494
    %v4543 = vpack.c.bf16 %v4495, %v4495
    %v4544 = vpack.c.bf16 %v4496, %v4496
    %v4545 = vpack.c.bf16 %v4497, %v4497
    %v4546 = vpack.c.bf16 %v4498, %v4498
    %v4547 = vpack.c.bf16 %v4499, %v4499
    %v4548 = vpack.c.bf16 %v4500, %v4500
    %v4549 = vpack.c.bf16 %v4501, %v4501
    %v4550 = vpack.c.bf16 %v4502, %v4502
    %v4551 = vpack.c.bf16 %v4503, %v4503
    %v4552 = vpack.c.bf16 %v4504, %v4504
    %v4553 = vpack.c.bf16 %v4505, %v4505
    %v4554 = vpack.c.bf16 %v4506, %v4506
    %v4555 = vpack.c.bf16 %v4507, %v4507
    %v4556 = vpack.c.bf16 %v4508, %v4508
    %v4557 = vpack.c.bf16 %v4509, %v4509
    %v4558 = vpack.c.bf16 %v4510, %v4510
    %v4559 = vpack.c.bf16 %v4511, %v4511
    %v4560 = vpack.c.bf16 %v4512, %v4512
    %v4561 = vpack.c.bf16 %v4513, %v4513
    %v4562 = vpack.c.bf16 %v4514, %v4514
    %v4563 = vpack.c.bf16 %v4515, %v4515
    %v4564 = vpack.c.bf16 %v4516, %v4516
    %v4565 = vpack.c.bf16 %v4517, %v4517
    %v4566 = vpack.c.bf16 %v4518, %v4518
    %v4567 = vpack.c.bf16 %v4519, %v4519
    %v4568 = vpack.c.bf16 %v4520, %v4520
    %v4569 = vpack.c.bf16 %v4521, %v4521
    %v4570 = vpack.c.bf16 %v4522, %v4522
    %v4571 = vpack.c.bf16 %v4523, %v4523
    %v4572 = vpack.c.bf16 %v4524, %v4524
    %v4573 = vpack.c.bf16 %v4525, %v4525
    %v4574 = vpack.c.bf16 %v4526, %v4526
    %v4575 = vpack.c.bf16 %v4527, %v4527
    %v4576 = vpack.c.bf16 %v4528, %v4528
    %v4577 = vpack.c.bf16 %v4529, %v4529
    %v4578 = vpack.c.bf16 %v4530, %v4530
    %v4579 = vpack.c.bf16 %v4531, %v4531
    %v4580 = vpack.c.bf16 %v4532, %v4532
    %v4581 = vpack.c.bf16 %v4533, %v4533
    %v4582 = vpack.c.bf16 %v4534, %v4534
    %v4583 = vpack.c.bf16 %v4535, %v4535
    %v4584 = vpack.c.bf16 %v4536, %v4536
    %v4585 = vpack.c.bf16 %v4537, %v4537
    %v4586 = vpack.c.bf16 %v4538, %v4538
    %4587 = vst.msk [vmem:[#allocation2 + $0x8] sm:$0xf] %vm19, %v4539
    %4588 = vst.msk [vmem:[#allocation2 + $0xc] sm:$0xf] %vm19, %v4540
    %4589 = vst.msk [vmem:[#allocation2 + $0x10] sm:$0xf] %vm19, %v4541
    %4590 = vst.msk [vmem:[#allocation2 + $0x14] sm:$0xf] %vm19, %v4542
    %4591 = vst.msk [vmem:[#allocation2 + $0x18] sm:$0xf] %vm19, %v4543
    %4592 = vst.msk [vmem:[#allocation2 + $0x1c] sm:$0xf] %vm19, %v4544
    %4593 = vst.msk [vmem:[#allocation2 + $0x20] sm:$0xf] %vm19, %v4545
    %4594 = vst.msk [vmem:[#allocation2 + $0x24] sm:$0xf] %vm19, %v4546
    %4595 = vst.msk [vmem:[#allocation2 + $0x28] sm:$0xf] %vm19, %v4547
    %4596 = vst.msk [vmem:[#allocation2 + $0x2c] sm:$0xf] %vm19, %v4548
    %4597 = vst.msk [vmem:[#allocation2 + $0x30] sm:$0xf] %vm19, %v4549
    %4598 = vst.msk [vmem:[#allocation2 + $0x34] sm:$0xf] %vm19, %v4550
    %4599 = vst.msk [vmem:[#allocation2 + $0x38] sm:$0xf] %vm19, %v4551
    %4600 = vst.msk [vmem:[#allocation2 + $0x3c] sm:$0xf] %vm19, %v4552
    %4601 = vst.msk [vmem:[#allocation2 + $0x40] sm:$0xf] %vm19, %v4553
    %4602 = vst.msk [vmem:[#allocation2 + $0x44] sm:$0xf] %vm19, %v4554
    %4603 = vst.msk [vmem:[#allocation2 + $0x48] sm:$0xf] %vm19, %v4555
    %4604 = vst.msk [vmem:[#allocation2 + $0x4c] sm:$0xf] %vm19, %v4556
    %4605 = vst.msk [vmem:[#allocation2 + $0x50] sm:$0xf] %vm19, %v4557
    %4606 = vst.msk [vmem:[#allocation2 + $0x54] sm:$0xf] %vm19, %v4558
    %4607 = vst.msk [vmem:[#allocation2 + $0x58] sm:$0xf] %vm19, %v4559
    %4608 = vst.msk [vmem:[#allocation2 + $0x5c] sm:$0xf] %vm19, %v4560
    %4609 = vst.msk [vmem:[#allocation2 + $0x60] sm:$0xf] %vm19, %v4561
    %4610 = vst.msk [vmem:[#allocation2 + $0x64] sm:$0xf] %vm19, %v4562
    %4611 = vst.msk [vmem:[#allocation2 + $0x68] sm:$0xf] %vm19, %v4563
    %4612 = vst.msk [vmem:[#allocation2 + $0x6c] sm:$0xf] %vm19, %v4564
    %4613 = vst.msk [vmem:[#allocation2 + $0x70] sm:$0xf] %vm19, %v4565
    %4614 = vst.msk [vmem:[#allocation2 + $0x74] sm:$0xf] %vm19, %v4566
    %4615 = vst.msk [vmem:[#allocation2 + $0x78] sm:$0xf] %vm19, %v4567
    %4616 = vst.msk [vmem:[#allocation2 + $0x7c] sm:$0xf] %vm19, %v4568
    %4617 = vst.msk [vmem:[#allocation2 + $0x80] sm:$0xf] %vm19, %v4569
    %4618 = vst.msk [vmem:[#allocation2 + $0x84] sm:$0xf] %vm19, %v4570
    %4619 = vst.msk [vmem:[#allocation2 + $0x88] sm:$0xf] %vm19, %v4571
    %4620 = vst.msk [vmem:[#allocation2 + $0x8c] sm:$0xf] %vm19, %v4572
    %4621 = vst.msk [vmem:[#allocation2 + $0x90] sm:$0xf] %vm19, %v4573
    %4622 = vst.msk [vmem:[#allocation2 + $0x94] sm:$0xf] %vm19, %v4574
    %4623 = vst.msk [vmem:[#allocation2 + $0x98] sm:$0xf] %vm19, %v4575
    %4624 = vst.msk [vmem:[#allocation2 + $0x9c] sm:$0xf] %vm19, %v4576
    %4625 = vst.msk [vmem:[#allocation2 + $0xa0] sm:$0xf] %vm19, %v4577
    %4626 = vst.msk [vmem:[#allocation2 + $0xa4] sm:$0xf] %vm19, %v4578
    %4627 = vst.msk [vmem:[#allocation2 + $0xa8] sm:$0xf] %vm19, %v4579
    %4628 = vst.msk [vmem:[#allocation2 + $0xac] sm:$0xf] %vm19, %v4580
    %4629 = vst.msk [vmem:[#allocation2 + $0xb0] sm:$0xf] %vm19, %v4581
    %4630 = vst.msk [vmem:[#allocation2 + $0xb4] sm:$0xf] %vm19, %v4582
    %4631 = vst.msk [vmem:[#allocation2 + $0xb8] sm:$0xf] %vm19, %v4583
    %4632 = vst.msk [vmem:[#allocation2 + $0xbc] sm:$0xf] %vm19, %v4584
    %4633 = vst.msk [vmem:[#allocation2 + $0xc0] sm:$0xf] %vm19, %v4585
    %4634 = vst.msk [vmem:[#allocation2 + $0xc4] sm:$0xf] %vm19, %v4586
    %v4635 = vld [vmem:[#allocation2] sm:$0xf]
    %v4636 = vld [vmem:[#allocation2 + $0x4] sm:$0xf]
    %v4637 = vld [vmem:[#allocation2 + $0x8] sm:$0xf]
    %v4638 = vld [vmem:[#allocation2 + $0xc] sm:$0xf]
    %v4639 = vld [vmem:[#allocation2 + $0x10] sm:$0xf]
    %v4640 = vld [vmem:[#allocation2 + $0x14] sm:$0xf]
    %v4641 = vld [vmem:[#allocation2 + $0x18] sm:$0xf]
    %v4642 = vld [vmem:[#allocation2 + $0x1c] sm:$0xf]
    %v4643 = vld [vmem:[#allocation2 + $0x20] sm:$0xf]
    %v4644 = vld [vmem:[#allocation2 + $0x24] sm:$0xf]
    %v4645 = vld [vmem:[#allocation2 + $0x28] sm:$0xf]
    %v4646 = vld [vmem:[#allocation2 + $0x2c] sm:$0xf]
    %v4647 = vld [vmem:[#allocation2 + $0x30] sm:$0xf]
    %v4648 = vld [vmem:[#allocation2 + $0x34] sm:$0xf]
    %v4649 = vld [vmem:[#allocation2 + $0x38] sm:$0xf]
    %v4650 = vld [vmem:[#allocation2 + $0x3c] sm:$0xf]
    %v4651 = vld [vmem:[#allocation2 + $0x40] sm:$0xf]
    %v4652 = vld [vmem:[#allocation2 + $0x44] sm:$0xf]
    %v4653 = vld [vmem:[#allocation2 + $0x48] sm:$0xf]
    %v4654 = vld [vmem:[#allocation2 + $0x4c] sm:$0xf]
    %v4655 = vld [vmem:[#allocation2 + $0x50] sm:$0xf]
    %v4656 = vld [vmem:[#allocation2 + $0x54] sm:$0xf]
    %v4657 = vld [vmem:[#allocation2 + $0x58] sm:$0xf]
    %v4658 = vld [vmem:[#allocation2 + $0x5c] sm:$0xf]
    %v4659 = vld [vmem:[#allocation2 + $0x60] sm:$0xf]
    %v4660 = vld [vmem:[#allocation2 + $0x64] sm:$0xf]
    %v4661 = vld [vmem:[#allocation2 + $0x68] sm:$0xf]
    %v4662 = vld [vmem:[#allocation2 + $0x6c] sm:$0xf]
    %v4663 = vld [vmem:[#allocation2 + $0x70] sm:$0xf]
    %v4664 = vld [vmem:[#allocation2 + $0x74] sm:$0xf]
    %v4665 = vld [vmem:[#allocation2 + $0x78] sm:$0xf]
    %v4666 = vld [vmem:[#allocation2 + $0x7c] sm:$0xf]
    %v4667 = vld [vmem:[#allocation2 + $0x80] sm:$0xf]
    %v4668 = vld [vmem:[#allocation2 + $0x84] sm:$0xf]
    %v4669 = vld [vmem:[#allocation2 + $0x88] sm:$0xf]
    %v4670 = vld [vmem:[#allocation2 + $0x8c] sm:$0xf]
    %v4671 = vld [vmem:[#allocation2 + $0x90] sm:$0xf]
    %v4672 = vld [vmem:[#allocation2 + $0x94] sm:$0xf]
    %v4673 = vld [vmem:[#allocation2 + $0x98] sm:$0xf]
    %v4674 = vld [vmem:[#allocation2 + $0x9c] sm:$0xf]
    %v4675 = vld [vmem:[#allocation2 + $0xa0] sm:$0xf]
    %v4676 = vld [vmem:[#allocation2 + $0xa4] sm:$0xf]
    %v4677 = vld [vmem:[#allocation2 + $0xa8] sm:$0xf]
    %v4678 = vld [vmem:[#allocation2 + $0xac] sm:$0xf]
    %v4679 = vld [vmem:[#allocation2 + $0xb0] sm:$0xf]
    %v4680 = vld [vmem:[#allocation2 + $0xb4] sm:$0xf]
    %v4681 = vld [vmem:[#allocation2 + $0xb8] sm:$0xf]
    %v4682 = vld [vmem:[#allocation2 + $0xbc] sm:$0xf]
    %v4683 = vld [vmem:[#allocation2 + $0xc0] sm:$0xf]
    %v4684 = vld [vmem:[#allocation2 + $0xc4] sm:$0xf]
    %v4733 = vunpack.c.l.b16 %v4635
    %v4734 = vunpack.c.l.b16 %v4636
    %v4735 = vunpack.c.l.b16 %v4637
    %v4736 = vunpack.c.l.b16 %v4638
    %v4737 = vunpack.c.l.b16 %v4639
    %v4738 = vunpack.c.l.b16 %v4640
    %v4739 = vunpack.c.l.b16 %v4641
    %v4740 = vunpack.c.l.b16 %v4642
    %v4741 = vunpack.c.l.b16 %v4643
    %v4742 = vunpack.c.l.b16 %v4644
    %v4743 = vunpack.c.l.b16 %v4645
    %v4744 = vunpack.c.l.b16 %v4646
    %v4745 = vunpack.c.l.b16 %v4647
    %v4746 = vunpack.c.l.b16 %v4648
    %v4747 = vunpack.c.l.b16 %v4649
    %v4748 = vunpack.c.l.b16 %v4650
    %v4749 = vunpack.c.l.b16 %v4651
    %v4750 = vunpack.c.l.b16 %v4652
    %v4751 = vunpack.c.l.b16 %v4653
    %v4752 = vunpack.c.l.b16 %v4654
    %v4753 = vunpack.c.l.b16 %v4655
    %v4754 = vunpack.c.l.b16 %v4656
    %v4755 = vunpack.c.l.b16 %v4657
    %v4756 = vunpack.c.l.b16 %v4658
    %v4757 = vunpack.c.l.b16 %v4659
    %v4758 = vunpack.c.l.b16 %v4660
    %v4759 = vunpack.c.l.b16 %v4661
    %v4760 = vunpack.c.l.b16 %v4662
    %v4761 = vunpack.c.l.b16 %v4663
    %v4762 = vunpack.c.l.b16 %v4664
    %v4763 = vunpack.c.l.b16 %v4665
    %v4764 = vunpack.c.l.b16 %v4666
    %v4765 = vunpack.c.l.b16 %v4667
    %v4766 = vunpack.c.l.b16 %v4668
    %v4767 = vunpack.c.l.b16 %v4669
    %v4768 = vunpack.c.l.b16 %v4670
    %v4769 = vunpack.c.l.b16 %v4671
    %v4770 = vunpack.c.l.b16 %v4672
    %v4771 = vunpack.c.l.b16 %v4673
    %v4772 = vunpack.c.l.b16 %v4674
    %v4773 = vunpack.c.l.b16 %v4675
    %v4774 = vunpack.c.l.b16 %v4676
    %v4775 = vunpack.c.l.b16 %v4677
    %v4776 = vunpack.c.l.b16 %v4678
    %v4777 = vunpack.c.l.b16 %v4679
    %v4778 = vunpack.c.l.b16 %v4680
    %v4779 = vunpack.c.l.b16 %v4681
    %v4780 = vunpack.c.l.b16 %v4682
    %v4781 = vpack.c.b16 %v4734, %v4733
    %v4782 = vpack.c.b16 %v4736, %v4735
    %v4783 = vpack.c.b16 %v4738, %v4737
    %v4784 = vpack.c.b16 %v4740, %v4739
    %v4785 = vpack.c.b16 %v4742, %v4741
    %v4786 = vpack.c.b16 %v4744, %v4743
    %v4787 = vpack.c.b16 %v4746, %v4745
    %v4788 = vpack.c.b16 %v4748, %v4747
    %v4789 = vpack.c.b16 %v4750, %v4749
    %v4790 = vpack.c.b16 %v4752, %v4751
    %v4791 = vpack.c.b16 %v4754, %v4753
    %v4792 = vpack.c.b16 %v4756, %v4755
    %v4793 = vpack.c.b16 %v4758, %v4757
    %v4794 = vpack.c.b16 %v4760, %v4759
    %v4795 = vpack.c.b16 %v4762, %v4761
    %v4796 = vpack.c.b16 %v4764, %v4763
    %v4797 = vpack.c.b16 %v4766, %v4765
    %v4798 = vpack.c.b16 %v4768, %v4767
    %v4799 = vpack.c.b16 %v4770, %v4769
    %v4800 = vpack.c.b16 %v4772, %v4771
    %v4801 = vpack.c.b16 %v4774, %v4773
    %v4802 = vpack.c.b16 %v4776, %v4775
    %v4803 = vpack.c.b16 %v4778, %v4777
    %v4804 = vpack.c.b16 %v4780, %v4779
    %v4806 = vunpack.c.l.b16 %v4683
    %v4807 = vpack.c.b16 %v4735, %v4734
    %v4808 = vpack.c.b16 %v4737, %v4736
    %v4809 = vpack.c.b16 %v4739, %v4738
    %v4810 = vpack.c.b16 %v4741, %v4740
    %v4811 = vpack.c.b16 %v4743, %v4742
    %v4812 = vpack.c.b16 %v4745, %v4744
    %v4813 = vpack.c.b16 %v4747, %v4746
    %v4814 = vpack.c.b16 %v4749, %v4748
    %v4815 = vpack.c.b16 %v4751, %v4750
    %v4816 = vpack.c.b16 %v4753, %v4752
    %v4817 = vpack.c.b16 %v4755, %v4754
    %v4818 = vpack.c.b16 %v4757, %v4756
    %v4819 = vpack.c.b16 %v4759, %v4758
    %v4820 = vpack.c.b16 %v4761, %v4760
    %v4821 = vpack.c.b16 %v4763, %v4762
    %v4822 = vpack.c.b16 %v4765, %v4764
    %v4823 = vpack.c.b16 %v4767, %v4766
    %v4824 = vpack.c.b16 %v4769, %v4768
    %v4825 = vpack.c.b16 %v4771, %v4770
    %v4826 = vpack.c.b16 %v4773, %v4772
    %v4827 = vpack.c.b16 %v4775, %v4774
    %v4828 = vpack.c.b16 %v4777, %v4776
    %v4829 = vpack.c.b16 %v4779, %v4778
    %v4830 = vpack.c.b16 %v4806, %v4780
    %4831 = vrot.lane.b32.xlu0 %v4807, 64
    %v4832 = vpop.permute.xlu0 %4831
    %4833 = vrot.lane.b32.xlu0 %v4808, 64
    %v4834 = vpop.permute.xlu0 %4833
    %4835 = vrot.lane.b32.xlu0 %v4809, 64
    %v4836 = vpop.permute.xlu0 %4835
    %4837 = vrot.lane.b32.xlu0 %v4810, 64
    %v4838 = vpop.permute.xlu0 %4837
    %4839 = vrot.lane.b32.xlu0 %v4811, 64
    %v4840 = vpop.permute.xlu0 %4839
    %4841 = vrot.lane.b32.xlu0 %v4812, 64
    %v4842 = vpop.permute.xlu0 %4841
    %4843 = vrot.lane.b32.xlu0 %v4813, 64
    %v4844 = vpop.permute.xlu0 %4843
    %4845 = vrot.lane.b32.xlu0 %v4814, 64
    %v4846 = vpop.permute.xlu0 %4845
    %4847 = vrot.lane.b32.xlu0 %v4815, 64
    %v4848 = vpop.permute.xlu0 %4847
    %4849 = vrot.lane.b32.xlu0 %v4816, 64
    %v4850 = vpop.permute.xlu0 %4849
    %4851 = vrot.lane.b32.xlu0 %v4817, 64
    %v4852 = vpop.permute.xlu0 %4851
    %4853 = vrot.lane.b32.xlu0 %v4818, 64
    %v4854 = vpop.permute.xlu0 %4853
    %4855 = vrot.lane.b32.xlu0 %v4819, 64
    %v4856 = vpop.permute.xlu0 %4855
    %4857 = vrot.lane.b32.xlu0 %v4820, 64
    %v4858 = vpop.permute.xlu0 %4857
    %4859 = vrot.lane.b32.xlu0 %v4821, 64
    %v4860 = vpop.permute.xlu0 %4859
    %4861 = vrot.lane.b32.xlu0 %v4822, 64
    %v4862 = vpop.permute.xlu0 %4861
    %4863 = vrot.lane.b32.xlu0 %v4823, 64
    %v4864 = vpop.permute.xlu0 %4863
    %4865 = vrot.lane.b32.xlu0 %v4824, 64
    %v4866 = vpop.permute.xlu0 %4865
    %4867 = vrot.lane.b32.xlu0 %v4825, 64
    %v4868 = vpop.permute.xlu0 %4867
    %4869 = vrot.lane.b32.xlu0 %v4826, 64
    %v4870 = vpop.permute.xlu0 %4869
    %4871 = vrot.lane.b32.xlu0 %v4827, 64
    %v4872 = vpop.permute.xlu0 %4871
    %4873 = vrot.lane.b32.xlu0 %v4828, 64
    %v4874 = vpop.permute.xlu0 %4873
    %4875 = vrot.lane.b32.xlu0 %v4829, 64
    %v4876 = vpop.permute.xlu0 %4875
    %4877 = vrot.lane.b32.xlu0 %v4830, 64
    %v4878 = vpop.permute.xlu0 %4877
    %v4880 = vunpack.c.l.b16 %v4684
    %v4881 = vpack.c.b16 %v4880, %v4806
    %v4884 = vsel %vm662, %v4781, %v4832
    %v4888 = vsel %vm662, %v4782, %v4834
    %v4892 = vsel %vm662, %v4783, %v4836
    %v4896 = vsel %vm662, %v4784, %v4838
    %v4900 = vsel %vm662, %v4785, %v4840
    %v4904 = vsel %vm662, %v4786, %v4842
    %v4908 = vsel %vm662, %v4787, %v4844
    %v4912 = vsel %vm662, %v4788, %v4846
    %v4916 = vsel %vm662, %v4789, %v4848
    %v4920 = vsel %vm662, %v4790, %v4850
    %v4924 = vsel %vm662, %v4791, %v4852
    %v4928 = vsel %vm662, %v4792, %v4854
    %v4932 = vsel %vm662, %v4793, %v4856
    %v4936 = vsel %vm662, %v4794, %v4858
    %v4940 = vsel %vm662, %v4795, %v4860
    %v4944 = vsel %vm662, %v4796, %v4862
    %v4948 = vsel %vm662, %v4797, %v4864
    %v4952 = vsel %vm662, %v4798, %v4866
    %v4956 = vsel %vm662, %v4799, %v4868
    %v4960 = vsel %vm662, %v4800, %v4870
    %v4964 = vsel %vm662, %v4801, %v4872
    %v4968 = vsel %vm662, %v4802, %v4874
    %v4972 = vsel %vm662, %v4803, %v4876
    %v4976 = vsel %vm662, %v4804, %v4878
    %v4978 = vld [vmem:[%s2 + $0x180] sm:$0xf]
    %v4979 = vld [vmem:[%s2 + $0x184] sm:$0xf]
    %v4980 = vld [vmem:[%s2 + $0x188] sm:$0xf]
    %v4981 = vld [vmem:[%s2 + $0x18c] sm:$0xf]
    %v4982 = vld [vmem:[%s2 + $0x190] sm:$0xf]
    %v4983 = vld [vmem:[%s2 + $0x194] sm:$0xf]
    %v4984 = vld [vmem:[%s2 + $0x198] sm:$0xf]
    %v4985 = vld [vmem:[%s2 + $0x19c] sm:$0xf]
    %v4986 = vld [vmem:[%s2 + $0x1a0] sm:$0xf]
    %v4987 = vld [vmem:[%s2 + $0x1a4] sm:$0xf]
    %v4988 = vld [vmem:[%s2 + $0x1a8] sm:$0xf]
    %v4989 = vld [vmem:[%s2 + $0x1ac] sm:$0xf]
    %v4990 = vld [vmem:[%s2 + $0x1b0] sm:$0xf]
    %v4991 = vld [vmem:[%s2 + $0x1b4] sm:$0xf]
    %v4992 = vld [vmem:[%s2 + $0x1b8] sm:$0xf]
    %v4993 = vld [vmem:[%s2 + $0x1bc] sm:$0xf]
    %v4994 = vld [vmem:[%s2 + $0x1c0] sm:$0xf]
    %v4995 = vld [vmem:[%s2 + $0x1c4] sm:$0xf]
    %v4996 = vld [vmem:[%s2 + $0x1c8] sm:$0xf]
    %v4997 = vld [vmem:[%s2 + $0x1cc] sm:$0xf]
    %v4998 = vld [vmem:[%s2 + $0x1d0] sm:$0xf]
    %v4999 = vld [vmem:[%s2 + $0x1d4] sm:$0xf]
    %v5000 = vld [vmem:[%s2 + $0x1d8] sm:$0xf]
    %v5001 = vld [vmem:[%s2 + $0x1dc] sm:$0xf]
    %v5002 = vld [vmem:[%s3 + $0x30] sm:$0x1]
    %v5003 = vperm.slane %v5002, 0
    %v5028 = vunpack.c.l.b16 %v4978
    %v5029 = vunpack.c.l.b16 %v4979
    %v5030 = vunpack.c.l.b16 %v4980
    %v5031 = vunpack.c.l.b16 %v4981
    %v5032 = vunpack.c.l.b16 %v4982
    %v5033 = vunpack.c.l.b16 %v4983
    %v5034 = vunpack.c.l.b16 %v4984
    %v5035 = vunpack.c.l.b16 %v4985
    %v5036 = vunpack.c.l.b16 %v4986
    %v5037 = vunpack.c.l.b16 %v4987
    %v5038 = vunpack.c.l.b16 %v4988
    %v5039 = vunpack.c.l.b16 %v4989
    %v5040 = vunpack.c.l.b16 %v4990
    %v5041 = vunpack.c.l.b16 %v4991
    %v5042 = vunpack.c.l.b16 %v4992
    %v5043 = vunpack.c.l.b16 %v4993
    %v5044 = vunpack.c.l.b16 %v4994
    %v5045 = vunpack.c.l.b16 %v4995
    %v5046 = vunpack.c.l.b16 %v4996
    %v5047 = vunpack.c.l.b16 %v4997
    %v5048 = vunpack.c.l.b16 %v4998
    %v5049 = vunpack.c.l.b16 %v4999
    %v5050 = vunpack.c.l.b16 %v5000
    %v5051 = vunpack.c.l.b16 %v5001
    %v5052 = vpack.c.b16 %v5029, %v5028
    %v5053 = vpack.c.b16 %v5031, %v5030
    %v5054 = vpack.c.b16 %v5033, %v5032
    %v5055 = vpack.c.b16 %v5035, %v5034
    %v5056 = vpack.c.b16 %v5037, %v5036
    %v5057 = vpack.c.b16 %v5039, %v5038
    %v5058 = vpack.c.b16 %v5041, %v5040
    %v5059 = vpack.c.b16 %v5043, %v5042
    %v5060 = vpack.c.b16 %v5045, %v5044
    %v5061 = vpack.c.b16 %v5047, %v5046
    %v5062 = vpack.c.b16 %v5049, %v5048
    %v5063 = vpack.c.b16 %v5051, %v5050
    %v5076 = vsel %vm662, %v4782, 0
    %v5078 = vsel %vm662, %v4783, 0
    %v5080 = vsel %vm662, %v4784, 0
    %v5082 = vsel %vm662, %v4785, 0
    %v5084 = vsel %vm662, %v4786, 0
    %v5086 = vsel %vm662, %v4787, 0
    %v5088 = vsel %vm662, %v4788, 0
    %v5090 = vsel %vm662, %v4789, 0
    %v5092 = vsel %vm662, %v4790, 0
    %v5094 = vsel %vm662, %v4791, 0
    %v5096 = vsel %vm662, %v4792, 0
    %v5098 = vsel %vm662, %v4793, 0
    %v5100 = vsel %vm662, %v4794, 0
    %v5102 = vsel %vm662, %v4795, 0
    %v5104 = vsel %vm662, %v4796, 0
    %v5106 = vsel %vm662, %v4797, 0
    %v5108 = vsel %vm662, %v4798, 0
    %v5110 = vsel %vm662, %v4799, 0
    %v5112 = vsel %vm662, %v4800, 0
    %v5114 = vsel %vm662, %v4801, 0
    %v5116 = vsel %vm662, %v4802, 0
    %v5118 = vsel %vm662, %v4803, 0
    %v5120 = vsel %vm662, %v4804, 0
    %v5123 = vsel %vm662, %v4881, 0
    %5125 = vmatpush.bf16.msra.mxu0 %v5059
    %5126 = vmatpush.bf16.msra.mxu0 %v5058
    %5127 = vmatpush.bf16.msra.mxu0 %v5057
    %5128 = vmatpush.bf16.msra.mxu0 %v5056
    %5129 = vmatpush.bf16.msra.mxu0 %v5055
    %5130 = vmatpush.bf16.msra.mxu0 %v5054
    %5131 = vmatpush.bf16.msra.mxu0 %v5053
    %5132 = vmatpush.bf16.msra.mxu0 %v5052
    %5133 = vmatmul.bf16.gmra.mxu0 %v4884
    %v5134 = vpop.f32.mrf.mxu0
    %v5135 = vadd.f32 %v5003, %v5134
    %v5136 = vpop.f32.mrf.mxu0
    %v5137 = vadd.f32 %v5003, %v5136
    %5138 = vmatmul.bf16.gmra.mxu0 %v4888
    %v5139 = vpop.f32.mrf.mxu0
    %v5140 = vadd.f32 %v5003, %v5139
    %v5141 = vpop.f32.mrf.mxu0
    %v5142 = vadd.f32 %v5003, %v5141
    %5143 = vmatmul.bf16.gmra.mxu0 %v4892
    %v5144 = vpop.f32.mrf.mxu0
    %v5145 = vadd.f32 %v5003, %v5144
    %v5146 = vpop.f32.mrf.mxu0
    %v5147 = vadd.f32 %v5003, %v5146
    %5148 = vmatmul.bf16.gmra.mxu0 %v4896
    %v5149 = vpop.f32.mrf.mxu0
    %v5150 = vadd.f32 %v5003, %v5149
    %v5151 = vpop.f32.mrf.mxu0
    %v5152 = vadd.f32 %v5003, %v5151
    %5153 = vmatmul.bf16.gmra.mxu0 %v4900
    %v5154 = vpop.f32.mrf.mxu0
    %v5155 = vadd.f32 %v5003, %v5154
    %v5156 = vpop.f32.mrf.mxu0
    %v5157 = vadd.f32 %v5003, %v5156
    %5158 = vmatmul.bf16.gmra.mxu0 %v4904
    %v5159 = vpop.f32.mrf.mxu0
    %v5160 = vadd.f32 %v5003, %v5159
    %v5161 = vpop.f32.mrf.mxu0
    %v5162 = vadd.f32 %v5003, %v5161
    %5163 = vmatmul.bf16.gmra.mxu0 %v4908
    %v5164 = vpop.f32.mrf.mxu0
    %v5165 = vadd.f32 %v5003, %v5164
    %v5166 = vpop.f32.mrf.mxu0
    %v5167 = vadd.f32 %v5003, %v5166
    %5168 = vmatmul.bf16.gmra.mxu0 %v4912
    %v5169 = vpop.f32.mrf.mxu0
    %v5170 = vadd.f32 %v5003, %v5169
    %v5171 = vpop.f32.mrf.mxu0
    %v5172 = vadd.f32 %v5003, %v5171
    %5173 = vmatmul.bf16.gmra.mxu0 %v4916
    %v5174 = vpop.f32.mrf.mxu0
    %v5175 = vadd.f32 %v5003, %v5174
    %v5176 = vpop.f32.mrf.mxu0
    %v5177 = vadd.f32 %v5003, %v5176
    %5178 = vmatmul.bf16.gmra.mxu0 %v4920
    %v5179 = vpop.f32.mrf.mxu0
    %v5180 = vadd.f32 %v5003, %v5179
    %v5181 = vpop.f32.mrf.mxu0
    %v5182 = vadd.f32 %v5003, %v5181
    %5183 = vmatmul.bf16.gmra.mxu0 %v4924
    %v5184 = vpop.f32.mrf.mxu0
    %v5185 = vadd.f32 %v5003, %v5184
    %v5186 = vpop.f32.mrf.mxu0
    %v5187 = vadd.f32 %v5003, %v5186
    %5188 = vmatmul.bf16.gmra.mxu0 %v4928
    %v5189 = vpop.f32.mrf.mxu0
    %v5190 = vadd.f32 %v5003, %v5189
    %v5191 = vpop.f32.mrf.mxu0
    %v5192 = vadd.f32 %v5003, %v5191
    %5193 = vmatmul.bf16.gmra.mxu0 %v4932
    %v5194 = vpop.f32.mrf.mxu0
    %v5195 = vadd.f32 %v5003, %v5194
    %v5196 = vpop.f32.mrf.mxu0
    %v5197 = vadd.f32 %v5003, %v5196
    %5198 = vmatmul.bf16.gmra.mxu0 %v4936
    %v5199 = vpop.f32.mrf.mxu0
    %v5200 = vadd.f32 %v5003, %v5199
    %v5201 = vpop.f32.mrf.mxu0
    %v5202 = vadd.f32 %v5003, %v5201
    %5203 = vmatmul.bf16.gmra.mxu0 %v4940
    %v5204 = vpop.f32.mrf.mxu0
    %v5205 = vadd.f32 %v5003, %v5204
    %v5206 = vpop.f32.mrf.mxu0
    %v5207 = vadd.f32 %v5003, %v5206
    %5208 = vmatmul.bf16.gmra.mxu0 %v4944
    %v5209 = vpop.f32.mrf.mxu0
    %v5210 = vadd.f32 %v5003, %v5209
    %v5211 = vpop.f32.mrf.mxu0
    %v5212 = vadd.f32 %v5003, %v5211
    %5213 = vmatmul.bf16.gmra.mxu0 %v4948
    %v5214 = vpop.f32.mrf.mxu0
    %v5215 = vadd.f32 %v5003, %v5214
    %v5216 = vpop.f32.mrf.mxu0
    %v5217 = vadd.f32 %v5003, %v5216
    %5218 = vmatmul.bf16.gmra.mxu0 %v4952
    %v5219 = vpop.f32.mrf.mxu0
    %v5220 = vadd.f32 %v5003, %v5219
    %v5221 = vpop.f32.mrf.mxu0
    %v5222 = vadd.f32 %v5003, %v5221
    %5223 = vmatmul.bf16.gmra.mxu0 %v4956
    %v5224 = vpop.f32.mrf.mxu0
    %v5225 = vadd.f32 %v5003, %v5224
    %v5226 = vpop.f32.mrf.mxu0
    %v5227 = vadd.f32 %v5003, %v5226
    %5228 = vmatmul.bf16.gmra.mxu0 %v4960
    %v5229 = vpop.f32.mrf.mxu0
    %v5230 = vadd.f32 %v5003, %v5229
    %v5231 = vpop.f32.mrf.mxu0
    %v5232 = vadd.f32 %v5003, %v5231
    %5233 = vmatmul.bf16.gmra.mxu0 %v4964
    %v5234 = vpop.f32.mrf.mxu0
    %v5235 = vadd.f32 %v5003, %v5234
    %v5236 = vpop.f32.mrf.mxu0
    %v5237 = vadd.f32 %v5003, %v5236
    %5238 = vmatmul.bf16.gmra.mxu0 %v4968
    %v5239 = vpop.f32.mrf.mxu0
    %v5240 = vadd.f32 %v5003, %v5239
    %v5241 = vpop.f32.mrf.mxu0
    %v5242 = vadd.f32 %v5003, %v5241
    %5243 = vmatmul.bf16.gmra.mxu0 %v4972
    %v5244 = vpop.f32.mrf.mxu0
    %v5245 = vadd.f32 %v5003, %v5244
    %v5246 = vpop.f32.mrf.mxu0
    %v5247 = vadd.f32 %v5003, %v5246
    %5248 = vmatmul.bf16.gmra.mxu0 %v4976
    %v5249 = vpop.f32.mrf.mxu0
    %v5250 = vadd.f32 %v5003, %v5249
    %v5251 = vpop.f32.mrf.mxu0
    %v5252 = vadd.f32 %v5003, %v5251
    %5253 = vdwg.mxu0
    %5254 = vmatpush.bf16.msra.mxu0 0
    %5255 = vmatpush.bf16.msra.mxu0 0
    %5256 = vmatpush.bf16.msra.mxu0 0
    %5257 = vmatpush.bf16.msra.mxu0 0
    %5258 = vmatpush.bf16.msra.mxu0 %v5063
    %5259 = vmatpush.bf16.msra.mxu0 %v5062
    %5260 = vmatpush.bf16.msra.mxu0 %v5061
    %5261 = vmatpush.bf16.msra.mxu0 %v5060
    %5262 = vmatmul.bf16.gmra.mxu0 %v5076
    %v5263 = vpop.f32.mrf.mxu0
    %v5264 = vadd.f32 %v5135, %v5263
    %v5265 = vpop.f32.mrf.mxu0
    %v5266 = vadd.f32 %v5137, %v5265
    %5267 = vmatmul.bf16.gmra.mxu0 %v5078
    %v5268 = vpop.f32.mrf.mxu0
    %v5269 = vadd.f32 %v5140, %v5268
    %v5270 = vpop.f32.mrf.mxu0
    %v5271 = vadd.f32 %v5142, %v5270
    %5272 = vmatmul.bf16.gmra.mxu0 %v5080
    %v5273 = vpop.f32.mrf.mxu0
    %v5274 = vadd.f32 %v5145, %v5273
    %v5275 = vpop.f32.mrf.mxu0
    %v5276 = vadd.f32 %v5147, %v5275
    %5277 = vmatmul.bf16.gmra.mxu0 %v5082
    %v5278 = vpop.f32.mrf.mxu0
    %v5279 = vadd.f32 %v5150, %v5278
    %v5280 = vpop.f32.mrf.mxu0
    %v5281 = vadd.f32 %v5152, %v5280
    %5282 = vmatmul.bf16.gmra.mxu0 %v5084
    %v5283 = vpop.f32.mrf.mxu0
    %v5284 = vadd.f32 %v5155, %v5283
    %v5285 = vpop.f32.mrf.mxu0
    %v5286 = vadd.f32 %v5157, %v5285
    %5287 = vmatmul.bf16.gmra.mxu0 %v5086
    %v5288 = vpop.f32.mrf.mxu0
    %v5289 = vadd.f32 %v5160, %v5288
    %v5290 = vpop.f32.mrf.mxu0
    %v5291 = vadd.f32 %v5162, %v5290
    %5292 = vmatmul.bf16.gmra.mxu0 %v5088
    %v5293 = vpop.f32.mrf.mxu0
    %v5294 = vadd.f32 %v5165, %v5293
    %v5295 = vpop.f32.mrf.mxu0
    %v5296 = vadd.f32 %v5167, %v5295
    %5297 = vmatmul.bf16.gmra.mxu0 %v5090
    %v5298 = vpop.f32.mrf.mxu0
    %v5299 = vadd.f32 %v5170, %v5298
    %v5300 = vpop.f32.mrf.mxu0
    %v5301 = vadd.f32 %v5172, %v5300
    %5302 = vmatmul.bf16.gmra.mxu0 %v5092
    %v5303 = vpop.f32.mrf.mxu0
    %v5304 = vadd.f32 %v5175, %v5303
    %v5305 = vpop.f32.mrf.mxu0
    %v5306 = vadd.f32 %v5177, %v5305
    %5307 = vmatmul.bf16.gmra.mxu0 %v5094
    %v5308 = vpop.f32.mrf.mxu0
    %v5309 = vadd.f32 %v5180, %v5308
    %v5310 = vpop.f32.mrf.mxu0
    %v5311 = vadd.f32 %v5182, %v5310
    %5312 = vmatmul.bf16.gmra.mxu0 %v5096
    %v5313 = vpop.f32.mrf.mxu0
    %v5314 = vadd.f32 %v5185, %v5313
    %v5315 = vpop.f32.mrf.mxu0
    %v5316 = vadd.f32 %v5187, %v5315
    %5317 = vmatmul.bf16.gmra.mxu0 %v5098
    %v5318 = vpop.f32.mrf.mxu0
    %v5319 = vadd.f32 %v5190, %v5318
    %v5320 = vpop.f32.mrf.mxu0
    %v5321 = vadd.f32 %v5192, %v5320
    %5322 = vmatmul.bf16.gmra.mxu0 %v5100
    %v5323 = vpop.f32.mrf.mxu0
    %v5324 = vadd.f32 %v5195, %v5323
    %v5325 = vpop.f32.mrf.mxu0
    %v5326 = vadd.f32 %v5197, %v5325
    %5327 = vmatmul.bf16.gmra.mxu0 %v5102
    %v5328 = vpop.f32.mrf.mxu0
    %v5329 = vadd.f32 %v5200, %v5328
    %v5330 = vpop.f32.mrf.mxu0
    %v5331 = vadd.f32 %v5202, %v5330
    %5332 = vmatmul.bf16.gmra.mxu0 %v5104
    %v5333 = vpop.f32.mrf.mxu0
    %v5334 = vadd.f32 %v5205, %v5333
    %v5335 = vpop.f32.mrf.mxu0
    %v5336 = vadd.f32 %v5207, %v5335
    %5337 = vmatmul.bf16.gmra.mxu0 %v5106
    %v5338 = vpop.f32.mrf.mxu0
    %v5339 = vadd.f32 %v5210, %v5338
    %v5340 = vpop.f32.mrf.mxu0
    %v5341 = vadd.f32 %v5212, %v5340
    %5342 = vmatmul.bf16.gmra.mxu0 %v5108
    %v5343 = vpop.f32.mrf.mxu0
    %v5344 = vadd.f32 %v5215, %v5343
    %v5345 = vpop.f32.mrf.mxu0
    %v5346 = vadd.f32 %v5217, %v5345
    %5347 = vmatmul.bf16.gmra.mxu0 %v5110
    %v5348 = vpop.f32.mrf.mxu0
    %v5349 = vadd.f32 %v5220, %v5348
    %v5350 = vpop.f32.mrf.mxu0
    %v5351 = vadd.f32 %v5222, %v5350
    %5352 = vmatmul.bf16.gmra.mxu0 %v5112
    %v5353 = vpop.f32.mrf.mxu0
    %v5354 = vadd.f32 %v5225, %v5353
    %v5355 = vpop.f32.mrf.mxu0
    %v5356 = vadd.f32 %v5227, %v5355
    %5357 = vmatmul.bf16.gmra.mxu0 %v5114
    %v5358 = vpop.f32.mrf.mxu0
    %v5359 = vadd.f32 %v5230, %v5358
    %v5360 = vpop.f32.mrf.mxu0
    %v5361 = vadd.f32 %v5232, %v5360
    %5362 = vmatmul.bf16.gmra.mxu0 %v5116
    %v5363 = vpop.f32.mrf.mxu0
    %v5364 = vadd.f32 %v5235, %v5363
    %v5365 = vpop.f32.mrf.mxu0
    %v5366 = vadd.f32 %v5237, %v5365
    %5367 = vmatmul.bf16.gmra.mxu0 %v5118
    %v5368 = vpop.f32.mrf.mxu0
    %v5369 = vadd.f32 %v5240, %v5368
    %v5370 = vpop.f32.mrf.mxu0
    %v5371 = vadd.f32 %v5242, %v5370
    %5372 = vmatmul.bf16.gmra.mxu0 %v5120
    %v5373 = vpop.f32.mrf.mxu0
    %v5374 = vadd.f32 %v5245, %v5373
    %v5375 = vpop.f32.mrf.mxu0
    %v5376 = vadd.f32 %v5247, %v5375
    %5377 = vmatmul.bf16.gmra.mxu0 %v5123
    %v5378 = vpop.f32.mrf.mxu0
    %v5379 = vadd.f32 %v5250, %v5378
    %v5380 = vpop.f32.mrf.mxu0
    %v5381 = vadd.f32 %v5252, %v5380
    %5382 = vdwg.mxu0
    %v5383 = vmax.f32 %v5264, 0.0
    %v5384 = vmax.f32 %v5266, 0.0
    %v5385 = vmax.f32 %v5269, 0.0
    %v5386 = vmax.f32 %v5271, 0.0
    %v5387 = vmax.f32 %v5274, 0.0
    %v5388 = vmax.f32 %v5276, 0.0
    %v5389 = vmax.f32 %v5279, 0.0
    %v5390 = vmax.f32 %v5281, 0.0
    %v5391 = vmax.f32 %v5284, 0.0
    %v5392 = vmax.f32 %v5286, 0.0
    %v5393 = vmax.f32 %v5289, 0.0
    %v5394 = vmax.f32 %v5291, 0.0
    %v5395 = vmax.f32 %v5294, 0.0
    %v5396 = vmax.f32 %v5296, 0.0
    %v5397 = vmax.f32 %v5299, 0.0
    %v5398 = vmax.f32 %v5301, 0.0
    %v5399 = vmax.f32 %v5304, 0.0
    %v5400 = vmax.f32 %v5306, 0.0
    %v5401 = vmax.f32 %v5309, 0.0
    %v5402 = vmax.f32 %v5311, 0.0
    %v5403 = vmax.f32 %v5314, 0.0
    %v5404 = vmax.f32 %v5316, 0.0
    %v5405 = vmax.f32 %v5319, 0.0
    %v5406 = vmax.f32 %v5321, 0.0
    %v5407 = vmax.f32 %v5324, 0.0
    %v5408 = vmax.f32 %v5326, 0.0
    %v5409 = vmax.f32 %v5329, 0.0
    %v5410 = vmax.f32 %v5331, 0.0
    %v5411 = vmax.f32 %v5334, 0.0
    %v5412 = vmax.f32 %v5336, 0.0
    %v5413 = vmax.f32 %v5339, 0.0
    %v5414 = vmax.f32 %v5341, 0.0
    %v5415 = vmax.f32 %v5344, 0.0
    %v5416 = vmax.f32 %v5346, 0.0
    %v5417 = vmax.f32 %v5349, 0.0
    %v5418 = vmax.f32 %v5351, 0.0
    %v5419 = vmax.f32 %v5354, 0.0
    %v5420 = vmax.f32 %v5356, 0.0
    %v5421 = vmax.f32 %v5359, 0.0
    %v5422 = vmax.f32 %v5361, 0.0
    %v5423 = vmax.f32 %v5364, 0.0
    %v5424 = vmax.f32 %v5366, 0.0
    %v5425 = vmax.f32 %v5369, 0.0
    %v5426 = vmax.f32 %v5371, 0.0
    %v5427 = vmax.f32 %v5374, 0.0
    %v5428 = vmax.f32 %v5376, 0.0
    %v5429 = vmax.f32 %v5379, 0.0
    %v5430 = vmax.f32 %v5381, 0.0
    %v5431 = vpack.c.bf16 %v5384, %v5383
    %v5432 = vpack.c.bf16 %v5386, %v5385
    %v5433 = vpack.c.bf16 %v5388, %v5387
    %v5434 = vpack.c.bf16 %v5390, %v5389
    %v5435 = vpack.c.bf16 %v5392, %v5391
    %v5436 = vpack.c.bf16 %v5394, %v5393
    %v5437 = vpack.c.bf16 %v5396, %v5395
    %v5438 = vpack.c.bf16 %v5398, %v5397
    %v5439 = vpack.c.bf16 %v5400, %v5399
    %v5440 = vpack.c.bf16 %v5402, %v5401
    %v5441 = vpack.c.bf16 %v5404, %v5403
    %v5442 = vpack.c.bf16 %v5406, %v5405
    %v5443 = vpack.c.bf16 %v5408, %v5407
    %v5444 = vpack.c.bf16 %v5410, %v5409
    %v5445 = vpack.c.bf16 %v5412, %v5411
    %v5446 = vpack.c.bf16 %v5414, %v5413
    %v5447 = vpack.c.bf16 %v5416, %v5415
    %v5448 = vpack.c.bf16 %v5418, %v5417
    %v5449 = vpack.c.bf16 %v5420, %v5419
    %v5450 = vpack.c.bf16 %v5422, %v5421
    %v5451 = vpack.c.bf16 %v5424, %v5423
    %v5452 = vpack.c.bf16 %v5426, %v5425
    %v5453 = vpack.c.bf16 %v5428, %v5427
    %v5454 = vpack.c.bf16 %v5430, %v5429
    %v5455 = vld [vmem:[%s2 + $0x1e0] sm:$0xf]
    %v5456 = vld [vmem:[%s2 + $0x1e4] sm:$0xf]
    %v5457 = vld [vmem:[%s2 + $0x1e8] sm:$0xf]
    %v5458 = vld [vmem:[%s2 + $0x1ec] sm:$0xf]
    %v5459 = vld [vmem:[%s2 + $0x1f0] sm:$0xf]
    %v5460 = vld [vmem:[%s2 + $0x1f4] sm:$0xf]
    %v5461 = vld [vmem:[%s2 + $0x1f8] sm:$0xf]
    %v5462 = vld [vmem:[%s2 + $0x1fc] sm:$0xf]
    %v5463 = vld [vmem:[%s3 + $0x38] sm:$0x1]
    %v5464 = vperm.slane %v5463, 0
    %v5473 = vunpack.c.l.b16 %v5455
    %v5474 = vunpack.c.l.b16 %v5456
    %v5475 = vunpack.c.l.b16 %v5457
    %v5476 = vunpack.c.l.b16 %v5458
    %v5477 = vunpack.c.l.b16 %v5459
    %v5478 = vunpack.c.l.b16 %v5460
    %v5479 = vunpack.c.l.b16 %v5461
    %v5480 = vunpack.c.l.b16 %v5462
    %v5481 = vpack.c.b16 %v5474, %v5473
    %v5482 = vpack.c.b16 %v5476, %v5475
    %v5483 = vpack.c.b16 %v5478, %v5477
    %v5484 = vpack.c.b16 %v5480, %v5479
    %v5490 = vsel %vm662, %v5431, 0
    %v5493 = vsel %vm662, %v5432, 0
    %v5496 = vsel %vm662, %v5433, 0
    %v5499 = vsel %vm662, %v5434, 0
    %v5502 = vsel %vm662, %v5435, 0
    %v5505 = vsel %vm662, %v5436, 0
    %v5508 = vsel %vm662, %v5437, 0
    %v5511 = vsel %vm662, %v5438, 0
    %v5514 = vsel %vm662, %v5439, 0
    %v5517 = vsel %vm662, %v5440, 0
    %v5520 = vsel %vm662, %v5441, 0
    %v5523 = vsel %vm662, %v5442, 0
    %v5526 = vsel %vm662, %v5443, 0
    %v5529 = vsel %vm662, %v5444, 0
    %v5532 = vsel %vm662, %v5445, 0
    %v5535 = vsel %vm662, %v5446, 0
    %v5538 = vsel %vm662, %v5447, 0
    %v5541 = vsel %vm662, %v5448, 0
    %v5544 = vsel %vm662, %v5449, 0
    %v5547 = vsel %vm662, %v5450, 0
    %v5550 = vsel %vm662, %v5451, 0
    %v5553 = vsel %vm662, %v5452, 0
    %v5556 = vsel %vm662, %v5453, 0
    %v5559 = vsel %vm662, %v5454, 0
    %5561 = vmatpush.bf16.msra.mxu0 0
    %5562 = vmatpush.bf16.msra.mxu0 0
    %5563 = vmatpush.bf16.msra.mxu0 0
    %5564 = vmatpush.bf16.msra.mxu0 0
    %5565 = vmatpush.bf16.msra.mxu0 %v5484
    %5566 = vmatpush.bf16.msra.mxu0 %v5483
    %5567 = vmatpush.bf16.msra.mxu0 %v5482
    %5568 = vmatpush.bf16.msra.mxu0 %v5481
    %5569 = vmatmul.bf16.gmra.mxu0 %v5490
    %v5570 = vpop.f32.mrf.mxu0
    %v5571 = vadd.f32 %v5464, %v5570
    %v5572 = vpop.f32.mrf.mxu0
    %v5573 = vadd.f32 %v5464, %v5572
    %5574 = vmatmul.bf16.gmra.mxu0 %v5493
    %v5575 = vpop.f32.mrf.mxu0
    %v5576 = vadd.f32 %v5464, %v5575
    %v5577 = vpop.f32.mrf.mxu0
    %v5578 = vadd.f32 %v5464, %v5577
    %5579 = vmatmul.bf16.gmra.mxu0 %v5496
    %v5580 = vpop.f32.mrf.mxu0
    %v5581 = vadd.f32 %v5464, %v5580
    %v5582 = vpop.f32.mrf.mxu0
    %v5583 = vadd.f32 %v5464, %v5582
    %5584 = vmatmul.bf16.gmra.mxu0 %v5499
    %v5585 = vpop.f32.mrf.mxu0
    %v5586 = vadd.f32 %v5464, %v5585
    %v5587 = vpop.f32.mrf.mxu0
    %v5588 = vadd.f32 %v5464, %v5587
    %5589 = vmatmul.bf16.gmra.mxu0 %v5502
    %v5590 = vpop.f32.mrf.mxu0
    %v5591 = vadd.f32 %v5464, %v5590
    %v5592 = vpop.f32.mrf.mxu0
    %v5593 = vadd.f32 %v5464, %v5592
    %5594 = vmatmul.bf16.gmra.mxu0 %v5505
    %v5595 = vpop.f32.mrf.mxu0
    %v5596 = vadd.f32 %v5464, %v5595
    %v5597 = vpop.f32.mrf.mxu0
    %v5598 = vadd.f32 %v5464, %v5597
    %5599 = vmatmul.bf16.gmra.mxu0 %v5508
    %v5600 = vpop.f32.mrf.mxu0
    %v5601 = vadd.f32 %v5464, %v5600
    %v5602 = vpop.f32.mrf.mxu0
    %v5603 = vadd.f32 %v5464, %v5602
    %5604 = vmatmul.bf16.gmra.mxu0 %v5511
    %v5605 = vpop.f32.mrf.mxu0
    %v5606 = vadd.f32 %v5464, %v5605
    %v5607 = vpop.f32.mrf.mxu0
    %v5608 = vadd.f32 %v5464, %v5607
    %5609 = vmatmul.bf16.gmra.mxu0 %v5514
    %v5610 = vpop.f32.mrf.mxu0
    %v5611 = vadd.f32 %v5464, %v5610
    %v5612 = vpop.f32.mrf.mxu0
    %v5613 = vadd.f32 %v5464, %v5612
    %5614 = vmatmul.bf16.gmra.mxu0 %v5517
    %v5615 = vpop.f32.mrf.mxu0
    %v5616 = vadd.f32 %v5464, %v5615
    %v5617 = vpop.f32.mrf.mxu0
    %v5618 = vadd.f32 %v5464, %v5617
    %5619 = vmatmul.bf16.gmra.mxu0 %v5520
    %v5620 = vpop.f32.mrf.mxu0
    %v5621 = vadd.f32 %v5464, %v5620
    %v5622 = vpop.f32.mrf.mxu0
    %v5623 = vadd.f32 %v5464, %v5622
    %5624 = vmatmul.bf16.gmra.mxu0 %v5523
    %v5625 = vpop.f32.mrf.mxu0
    %v5626 = vadd.f32 %v5464, %v5625
    %v5627 = vpop.f32.mrf.mxu0
    %v5628 = vadd.f32 %v5464, %v5627
    %5629 = vmatmul.bf16.gmra.mxu0 %v5526
    %v5630 = vpop.f32.mrf.mxu0
    %v5631 = vadd.f32 %v5464, %v5630
    %v5632 = vpop.f32.mrf.mxu0
    %v5633 = vadd.f32 %v5464, %v5632
    %5634 = vmatmul.bf16.gmra.mxu0 %v5529
    %v5635 = vpop.f32.mrf.mxu0
    %v5636 = vadd.f32 %v5464, %v5635
    %v5637 = vpop.f32.mrf.mxu0
    %v5638 = vadd.f32 %v5464, %v5637
    %5639 = vmatmul.bf16.gmra.mxu0 %v5532
    %v5640 = vpop.f32.mrf.mxu0
    %v5641 = vadd.f32 %v5464, %v5640
    %v5642 = vpop.f32.mrf.mxu0
    %v5643 = vadd.f32 %v5464, %v5642
    %5644 = vmatmul.bf16.gmra.mxu0 %v5535
    %v5645 = vpop.f32.mrf.mxu0
    %v5646 = vadd.f32 %v5464, %v5645
    %v5647 = vpop.f32.mrf.mxu0
    %v5648 = vadd.f32 %v5464, %v5647
    %5649 = vmatmul.bf16.gmra.mxu0 %v5538
    %v5650 = vpop.f32.mrf.mxu0
    %v5651 = vadd.f32 %v5464, %v5650
    %v5652 = vpop.f32.mrf.mxu0
    %v5653 = vadd.f32 %v5464, %v5652
    %5654 = vmatmul.bf16.gmra.mxu0 %v5541
    %v5655 = vpop.f32.mrf.mxu0
    %v5656 = vadd.f32 %v5464, %v5655
    %v5657 = vpop.f32.mrf.mxu0
    %v5658 = vadd.f32 %v5464, %v5657
    %5659 = vmatmul.bf16.gmra.mxu0 %v5544
    %v5660 = vpop.f32.mrf.mxu0
    %v5661 = vadd.f32 %v5464, %v5660
    %v5662 = vpop.f32.mrf.mxu0
    %v5663 = vadd.f32 %v5464, %v5662
    %5664 = vmatmul.bf16.gmra.mxu0 %v5547
    %v5665 = vpop.f32.mrf.mxu0
    %v5666 = vadd.f32 %v5464, %v5665
    %v5667 = vpop.f32.mrf.mxu0
    %v5668 = vadd.f32 %v5464, %v5667
    %5669 = vmatmul.bf16.gmra.mxu0 %v5550
    %v5670 = vpop.f32.mrf.mxu0
    %v5671 = vadd.f32 %v5464, %v5670
    %v5672 = vpop.f32.mrf.mxu0
    %v5673 = vadd.f32 %v5464, %v5672
    %5674 = vmatmul.bf16.gmra.mxu0 %v5553
    %v5675 = vpop.f32.mrf.mxu0
    %v5676 = vadd.f32 %v5464, %v5675
    %v5677 = vpop.f32.mrf.mxu0
    %v5678 = vadd.f32 %v5464, %v5677
    %5679 = vmatmul.bf16.gmra.mxu0 %v5556
    %v5680 = vpop.f32.mrf.mxu0
    %v5681 = vadd.f32 %v5464, %v5680
    %v5682 = vpop.f32.mrf.mxu0
    %v5683 = vadd.f32 %v5464, %v5682
    %5684 = vmatmul.bf16.gmra.mxu0 %v5559
    %v5685 = vpop.f32.mrf.mxu0
    %v5686 = vadd.f32 %v5464, %v5685
    %v5687 = vpop.f32.mrf.mxu0
    %v5688 = vadd.f32 %v5464, %v5687
    %5689 = vdwg.mxu0
    %v5690 = vmax.f32 %v5571, 0.0
    %v5691 = vmax.f32 %v5573, 0.0
    %v5692 = vmax.f32 %v5576, 0.0
    %v5693 = vmax.f32 %v5578, 0.0
    %v5694 = vmax.f32 %v5581, 0.0
    %v5695 = vmax.f32 %v5583, 0.0
    %v5696 = vmax.f32 %v5586, 0.0
    %v5697 = vmax.f32 %v5588, 0.0
    %v5698 = vmax.f32 %v5591, 0.0
    %v5699 = vmax.f32 %v5593, 0.0
    %v5700 = vmax.f32 %v5596, 0.0
    %v5701 = vmax.f32 %v5598, 0.0
    %v5702 = vmax.f32 %v5601, 0.0
    %v5703 = vmax.f32 %v5603, 0.0
    %v5704 = vmax.f32 %v5606, 0.0
    %v5705 = vmax.f32 %v5608, 0.0
    %v5706 = vmax.f32 %v5611, 0.0
    %v5707 = vmax.f32 %v5613, 0.0
    %v5708 = vmax.f32 %v5616, 0.0
    %v5709 = vmax.f32 %v5618, 0.0
    %v5710 = vmax.f32 %v5621, 0.0
    %v5711 = vmax.f32 %v5623, 0.0
    %v5712 = vmax.f32 %v5626, 0.0
    %v5713 = vmax.f32 %v5628, 0.0
    %v5714 = vmax.f32 %v5631, 0.0
    %v5715 = vmax.f32 %v5633, 0.0
    %v5716 = vmax.f32 %v5636, 0.0
    %v5717 = vmax.f32 %v5638, 0.0
    %v5718 = vmax.f32 %v5641, 0.0
    %v5719 = vmax.f32 %v5643, 0.0
    %v5720 = vmax.f32 %v5646, 0.0
    %v5721 = vmax.f32 %v5648, 0.0
    %v5722 = vmax.f32 %v5651, 0.0
    %v5723 = vmax.f32 %v5653, 0.0
    %v5724 = vmax.f32 %v5656, 0.0
    %v5725 = vmax.f32 %v5658, 0.0
    %v5726 = vmax.f32 %v5661, 0.0
    %v5727 = vmax.f32 %v5663, 0.0
    %v5728 = vmax.f32 %v5666, 0.0
    %v5729 = vmax.f32 %v5668, 0.0
    %v5730 = vmax.f32 %v5671, 0.0
    %v5731 = vmax.f32 %v5673, 0.0
    %v5732 = vmax.f32 %v5676, 0.0
    %v5733 = vmax.f32 %v5678, 0.0
    %v5734 = vmax.f32 %v5681, 0.0
    %v5735 = vmax.f32 %v5683, 0.0
    %v5736 = vmax.f32 %v5686, 0.0
    %v5737 = vmax.f32 %v5688, 0.0
    %vm5738 = vcmp.lt.s32.totalorder %v158, 46
    %vm5739 = vcmp.lt.s32.totalorder %v159, 46
    %vm5740 = vcmp.lt.s32.totalorder %v160, 46
    %vm5741 = vcmp.lt.s32.totalorder %v161, 46
    %vm5742 = vcmp.lt.s32.totalorder %v162, 46
    %vm5743 = vcmp.lt.s32.totalorder %v163, 46
    %v5744 = vsel %vm5738, %v5690, 0.0
    %v5745 = vsel %vm5739, %v5691, 0.0
    %v5746 = vsel %vm5740, %v5692, 0.0
    %v5747 = vsel %vm5741, %v5693, 0.0
    %v5748 = vsel %vm5742, %v5694, 0.0
    %v5749 = vsel %vm5743, %v5695, 0.0
    %v5750 = vsel %vm5738, %v5696, 0.0
    %v5751 = vsel %vm5739, %v5697, 0.0
    %v5752 = vsel %vm5740, %v5698, 0.0
    %v5753 = vsel %vm5741, %v5699, 0.0
    %v5754 = vsel %vm5742, %v5700, 0.0
    %v5755 = vsel %vm5743, %v5701, 0.0
    %v5756 = vsel %vm5738, %v5702, 0.0
    %v5757 = vsel %vm5739, %v5703, 0.0
    %v5758 = vsel %vm5740, %v5704, 0.0
    %v5759 = vsel %vm5741, %v5705, 0.0
    %v5760 = vsel %vm5742, %v5706, 0.0
    %v5761 = vsel %vm5743, %v5707, 0.0
    %v5762 = vsel %vm5738, %v5708, 0.0
    %v5763 = vsel %vm5739, %v5709, 0.0
    %v5764 = vsel %vm5740, %v5710, 0.0
    %v5765 = vsel %vm5741, %v5711, 0.0
    %v5766 = vsel %vm5742, %v5712, 0.0
    %v5767 = vsel %vm5743, %v5713, 0.0
    %v5768 = vsel %vm5738, %v5714, 0.0
    %v5769 = vsel %vm5739, %v5715, 0.0
    %v5770 = vsel %vm5740, %v5716, 0.0
    %v5771 = vsel %vm5741, %v5717, 0.0
    %v5772 = vsel %vm5742, %v5718, 0.0
    %v5773 = vsel %vm5743, %v5719, 0.0
    %v5774 = vsel %vm5738, %v5720, 0.0
    %v5775 = vsel %vm5739, %v5721, 0.0
    %v5776 = vsel %vm5740, %v5722, 0.0
    %v5777 = vsel %vm5741, %v5723, 0.0
    %v5778 = vsel %vm5742, %v5724, 0.0
    %v5779 = vsel %vm5743, %v5725, 0.0
    %v5780 = vsel %vm5738, %v5726, 0.0
    %v5781 = vsel %vm5739, %v5727, 0.0
    %v5782 = vsel %vm5740, %v5728, 0.0
    %v5783 = vsel %vm5741, %v5729, 0.0
    %v5784 = vsel %vm5742, %v5730, 0.0
    %v5785 = vsel %vm5743, %v5731, 0.0
    %v5786 = vsel %vm5738, %v5732, 0.0
    %v5787 = vsel %vm5739, %v5733, 0.0
    %v5788 = vsel %vm5740, %v5734, 0.0
    %v5789 = vsel %vm5741, %v5735, 0.0
    %v5790 = vsel %vm5742, %v5736, 0.0
    %v5791 = vsel %vm5743, %v5737, 0.0
    %v5792 = vsel %vm662, %v5744, 0.0
    %v5793 = vsel %vm662, %v5745, 0.0
    %v5794 = vadd.f32 %v5792, %v5793
    %v5795 = vsel %vm662, %v5746, 0.0
    %v5796 = vadd.f32 %v5794, %v5795
    %v5797 = vsel %vm662, %v5747, 0.0
    %v5798 = vadd.f32 %v5796, %v5797
    %v5799 = vsel %vm662, %v5748, 0.0
    %v5800 = vadd.f32 %v5798, %v5799
    %v5801 = vsel %vm662, %v5749, 0.0
    %v5802 = vadd.f32 %v5800, %v5801
    %v5803 = vrot.slane %v5802, 4
    %v5804 = vadd.f32 %v5802, %v5803
    %v5805 = vrot.slane %v5804, 2
    %v5806 = vadd.f32 %v5804, %v5805
    %v5807 = vrot.slane %v5806, 1
    %v5808 = vadd.f32 %v5806, %v5807
    %v5809 = vsel %vm662, %v5750, 0.0
    %v5810 = vsel %vm662, %v5751, 0.0
    %v5811 = vadd.f32 %v5809, %v5810
    %v5812 = vsel %vm662, %v5752, 0.0
    %v5813 = vadd.f32 %v5811, %v5812
    %v5814 = vsel %vm662, %v5753, 0.0
    %v5815 = vadd.f32 %v5813, %v5814
    %v5816 = vsel %vm662, %v5754, 0.0
    %v5817 = vadd.f32 %v5815, %v5816
    %v5818 = vsel %vm662, %v5755, 0.0
    %v5819 = vadd.f32 %v5817, %v5818
    %v5820 = vrot.slane %v5819, 4
    %v5821 = vadd.f32 %v5819, %v5820
    %v5822 = vrot.slane %v5821, 2
    %v5823 = vadd.f32 %v5821, %v5822
    %v5824 = vrot.slane %v5823, 1
    %v5825 = vadd.f32 %v5823, %v5824
    %v5826 = vsel %vm662, %v5756, 0.0
    %v5827 = vsel %vm662, %v5757, 0.0
    %v5828 = vadd.f32 %v5826, %v5827
    %v5829 = vsel %vm662, %v5758, 0.0
    %v5830 = vadd.f32 %v5828, %v5829
    %v5831 = vsel %vm662, %v5759, 0.0
    %v5832 = vadd.f32 %v5830, %v5831
    %v5833 = vsel %vm662, %v5760, 0.0
    %v5834 = vadd.f32 %v5832, %v5833
    %v5835 = vsel %vm662, %v5761, 0.0
    %v5836 = vadd.f32 %v5834, %v5835
    %v5837 = vrot.slane %v5836, 4
    %v5838 = vadd.f32 %v5836, %v5837
    %v5839 = vrot.slane %v5838, 2
    %v5840 = vadd.f32 %v5838, %v5839
    %v5841 = vrot.slane %v5840, 1
    %v5842 = vadd.f32 %v5840, %v5841
    %v5843 = vsel %vm662, %v5762, 0.0
    %v5844 = vsel %vm662, %v5763, 0.0
    %v5845 = vadd.f32 %v5843, %v5844
    %v5846 = vsel %vm662, %v5764, 0.0
    %v5847 = vadd.f32 %v5845, %v5846
    %v5848 = vsel %vm662, %v5765, 0.0
    %v5849 = vadd.f32 %v5847, %v5848
    %v5850 = vsel %vm662, %v5766, 0.0
    %v5851 = vadd.f32 %v5849, %v5850
    %v5852 = vsel %vm662, %v5767, 0.0
    %v5853 = vadd.f32 %v5851, %v5852
    %v5854 = vrot.slane %v5853, 4
    %v5855 = vadd.f32 %v5853, %v5854
    %v5856 = vrot.slane %v5855, 2
    %v5857 = vadd.f32 %v5855, %v5856
    %v5858 = vrot.slane %v5857, 1
    %v5859 = vadd.f32 %v5857, %v5858
    %v5860 = vsel %vm662, %v5768, 0.0
    %v5861 = vsel %vm662, %v5769, 0.0
    %v5862 = vadd.f32 %v5860, %v5861
    %v5863 = vsel %vm662, %v5770, 0.0
    %v5864 = vadd.f32 %v5862, %v5863
    %v5865 = vsel %vm662, %v5771, 0.0
    %v5866 = vadd.f32 %v5864, %v5865
    %v5867 = vsel %vm662, %v5772, 0.0
    %v5868 = vadd.f32 %v5866, %v5867
    %v5869 = vsel %vm662, %v5773, 0.0
    %v5870 = vadd.f32 %v5868, %v5869
    %v5871 = vrot.slane %v5870, 4
    %v5872 = vadd.f32 %v5870, %v5871
    %v5873 = vrot.slane %v5872, 2
    %v5874 = vadd.f32 %v5872, %v5873
    %v5875 = vrot.slane %v5874, 1
    %v5876 = vadd.f32 %v5874, %v5875
    %v5877 = vsel %vm662, %v5774, 0.0
    %v5878 = vsel %vm662, %v5775, 0.0
    %v5879 = vadd.f32 %v5877, %v5878
    %v5880 = vsel %vm662, %v5776, 0.0
    %v5881 = vadd.f32 %v5879, %v5880
    %v5882 = vsel %vm662, %v5777, 0.0
    %v5883 = vadd.f32 %v5881, %v5882
    %v5884 = vsel %vm662, %v5778, 0.0
    %v5885 = vadd.f32 %v5883, %v5884
    %v5886 = vsel %vm662, %v5779, 0.0
    %v5887 = vadd.f32 %v5885, %v5886
    %v5888 = vrot.slane %v5887, 4
    %v5889 = vadd.f32 %v5887, %v5888
    %v5890 = vrot.slane %v5889, 2
    %v5891 = vadd.f32 %v5889, %v5890
    %v5892 = vrot.slane %v5891, 1
    %v5893 = vadd.f32 %v5891, %v5892
    %v5894 = vsel %vm662, %v5780, 0.0
    %v5895 = vsel %vm662, %v5781, 0.0
    %v5896 = vadd.f32 %v5894, %v5895
    %v5897 = vsel %vm662, %v5782, 0.0
    %v5898 = vadd.f32 %v5896, %v5897
    %v5899 = vsel %vm662, %v5783, 0.0
    %v5900 = vadd.f32 %v5898, %v5899
    %v5901 = vsel %vm662, %v5784, 0.0
    %v5902 = vadd.f32 %v5900, %v5901
    %v5903 = vsel %vm662, %v5785, 0.0
    %v5904 = vadd.f32 %v5902, %v5903
    %v5905 = vrot.slane %v5904, 4
    %v5906 = vadd.f32 %v5904, %v5905
    %v5907 = vrot.slane %v5906, 2
    %v5908 = vadd.f32 %v5906, %v5907
    %v5909 = vrot.slane %v5908, 1
    %v5910 = vadd.f32 %v5908, %v5909
    %v5911 = vsel %vm662, %v5786, 0.0
    %v5912 = vsel %vm662, %v5787, 0.0
    %v5913 = vadd.f32 %v5911, %v5912
    %v5914 = vsel %vm662, %v5788, 0.0
    %v5915 = vadd.f32 %v5913, %v5914
    %v5916 = vsel %vm662, %v5789, 0.0
    %v5917 = vadd.f32 %v5915, %v5916
    %v5918 = vsel %vm662, %v5790, 0.0
    %v5919 = vadd.f32 %v5917, %v5918
    %v5920 = vsel %vm662, %v5791, 0.0
    %v5921 = vadd.f32 %v5919, %v5920
    %v5922 = vrot.slane %v5921, 4
    %v5923 = vadd.f32 %v5921, %v5922
    %v5924 = vrot.slane %v5923, 2
    %v5925 = vadd.f32 %v5923, %v5924
    %v5926 = vrot.slane %v5925, 1
    %v5927 = vadd.f32 %v5925, %v5926
    %v5928 = vmul.f32 %v5808, 0.02173913
    %v5929 = vmul.f32 %v5825, 0.02173913
    %v5930 = vmul.f32 %v5842, 0.02173913
    %v5931 = vmul.f32 %v5859, 0.02173913
    %v5932 = vmul.f32 %v5876, 0.02173913
    %v5933 = vmul.f32 %v5893, 0.02173913
    %v5934 = vmul.f32 %v5910, 0.02173913
    %v5935 = vmul.f32 %v5927, 0.02173913
    %v5936 = vld [vmem:[%s3 + $0x40] sm:$0xff]
    %v5937 = vld [vmem:[%s3 + $0x48] sm:$0xff]
    %v5938 = vld [vmem:[%s3 + $0x50] sm:$0xff]
    %v5939 = vld [vmem:[%s3 + $0x58] sm:$0xff]
    %v5940 = vld [vmem:[%s3 + $0x60] sm:$0xff]
    %v5941 = vld [vmem:[%s3 + $0x68] sm:$0xff]
    %v5942 = vld [vmem:[%s3 + $0x70] sm:$0xff]
    %v5943 = vld [vmem:[%s3 + $0x78] sm:$0xff]
    %v5944 = vld [vmem:[%s3 + $0x80] sm:$0x1]
    %v5945 = vperm.slane %v5944, 0
    %vm5954 = vcmask 1041409
    %v5955 = vsel %vm5954, %v5929, %v5928
    %vm5956 = vcmask 1042434
    %v5957 = vsel %vm5956, %v5930, %v5955
    %vm5958 = vcmask 1043459
    %v5959 = vsel %vm5958, %v5931, %v5957
    %vm5960 = vcmask 1044484
    %v5961 = vsel %vm5960, %v5932, %v5959
    %vm5962 = vcmask 1045509
    %v5963 = vsel %vm5962, %v5933, %v5961
    %vm5964 = vcmask 1046534
    %v5965 = vsel %vm5964, %v5934, %v5963
    %vm5966 = vcmask 1047559
    %v5967 = vsel %vm5966, %v5935, %v5965
    %v5968 = vsel %vm662, %v5967, 0
    %5970 = vmatpush.msra.mxu0 0.0
    %5971 = vmatpush.msra.mxu0 0.0
    %5972 = vmatpush.msra.mxu0 0.0
    %5973 = vmatpush.msra.mxu0 0.0
    %5974 = vmatpush.msra.mxu0 0.0
    %5975 = vmatpush.msra.mxu0 0.0
    %5976 = vmatpush.msra.mxu0 0.0
    %5977 = vmatpush.msra.mxu0 0.0
    %5978 = vmatpush.msra.mxu0 %v5943
    %5979 = vmatpush.msra.mxu0 %v5942
    %5980 = vmatpush.msra.mxu0 %v5941
    %5981 = vmatpush.msra.mxu0 %v5940
    %5982 = vmatpush.msra.mxu0 %v5939
    %5983 = vmatpush.msra.mxu0 %v5938
    %5984 = vmatpush.msra.mxu0 %v5937
    %5985 = vmatpush.msra.mxu0 %v5936
    %5986 = vmatmul.f32.gmra.mxu0 %v5968
    %v5987 = vpop.f32.mrf.mxu0
    %v5988 = vadd.f32 %v5945, %v5987
    %5989 = vdwg.mxu0
    %v5990 = vld [vmem:[%s1] sm:$0xff]
    %v5991 = vadd.f32 %v5990, %v5988
    %v5992 = vmul.f32 %v5988, 2.0
    %v5993 = vadd.f32 %v5990, %v5992
    %v5994 = vmul.f32 %v5988, 3.0
    %v5995 = vadd.f32 %v5990, %v5994
    %v5996 = vmul.f32 %v5988, 4.0
    %v5997 = vadd.f32 %v5990, %v5996
    %v5998 = vmul.f32 %v5988, 5.0
    %v5999 = vadd.f32 %v5990, %v5998
    %6001 = vrot.lane.b32.xlu0 %v5993, 18
    %v6002 = vpop.permute.xlu0 %6001
    %6005 = vrot.lane.b32.xlu0 %v5995, 36
    %v6006 = vpop.permute.xlu0 %6005
    %6009 = vrot.lane.b32.xlu0 %v5997, 54
    %v6010 = vpop.permute.xlu0 %6009
    %6013 = vrot.lane.b32.xlu0 %v5999, 72
    %v6014 = vpop.permute.xlu0 %6013
    %vm6016 = vcmask 146432
    %v6017 = vsel %vm6016, %v5991, %v6002
    %vm6018 = vcmask 293888
    %v6019 = vsel %vm6018, %v6017, %v6006
    %vm6020 = vcmask 441344
    %v6021 = vsel %vm6020, %v6019, %v6010
    %vm6022 = vcmask 588800
    %v6023 = vsel %vm6022, %v6021, %v6014
    %vm6024 = vcmask 736256
    %v6025 = vsel %vm6024, %v6023, 0.0
    %6026 = vst [vmem:[#allocation3] sm:$0xff] %v6025
    // Predicated region
    $region18: #{tpu_custom_call.1} parent=1 // pred_check
      _
    $region19: #{tpu_custom_call.1} parent=1 // pred_check_branch
      %6028 = sbr.rel (0) target = $region21
    $region20: #{tpu_custom_call.1} parent=1 // pred_region
      %6030 = vsyncadd [#allocation4], 0
      %s6032 = sshll.u32 [#allocation3], 4
      %s6033 = int_to_ptr.vmem [resolvable:$true] %s6032
      %s6034 = sshll.u32 %s4, 4
      %s6035 = int_to_ptr.hbm [resolvable:$true] %s6034
      %6037 = dma.vmem_to_hbm [thread:$0]  %s6033, 128, %s6035, [#allocation4]
    $region21: #{tpu_custom_call.1} parent=1 // pred_fallthru
      _
    // Predicated region
    $region22: #{tpu_custom_call.1} parent=1 // pred_check
      _
    $region23: #{tpu_custom_call.1} parent=1 // pred_check_branch
      %6039 = sbr.rel (0) target = $region25
    $region24: #{tpu_custom_call.1} parent=1 // pred_region
      %6041 = dma.done [#allocation4], 128
    $region25: #{tpu_custom_call.1} parent=1 // pred_fallthru
      _
    %6042 = vsyncpa [#allocation4], 1

</llo_original>
